<compile_context>
chip_gen: v6e
topology: v6e:2x2x1
jax: 0.10.0
libtpu: 0.0.40
codegen_flags: <defaults>
</compile_context>

<pallas_src>
import functools

import jax
import jax.numpy as jnp
import numpy as np
from jax.experimental import pallas as pl
from jax.experimental.pallas import tpu as pltpu


def _elu(y):
    # ELU(alpha=1): y if y > 0 else exp(y) - 1 (arg clamped so exp never overflows)
    return jnp.where(y > 0.0, y, jnp.exp(jnp.minimum(y, 0.0)) - 1.0)


def _round_up(x, m):
    return ((x + m - 1) // m) * m


# ----------------------------------------------------------------------------
# The fused kernel
# ----------------------------------------------------------------------------
def _conv_encoder_kernel(
    obs_ref, vec_ref, w1_ref, w2_ref, w3_ref, cb_ref, wvb_ref, wf_hbm,
    out_ref,
    x1_ref, x2_ref, wf_vmem, wf_sem,
    *, batch, width, hw, nl, ks, couts, h_out, w_out,
):
    # ---- kick off the big final-linear weight DMA so it overlaps the convs --
    wf_copy = pltpu.make_async_copy(wf_hbm, wf_vmem, wf_sem)
    wf_copy.start()

    # ---- zero only the lane-padding tails that conv taps actually read
    #      (the valid [:, :nl] regions are fully written before being read) ---
    x1_ref[:, nl:] = jnp.zeros((x1_ref.shape[0], x1_ref.shape[1] - nl), x1_ref.dtype)
    x2_ref[:, nl:] = jnp.zeros((x2_ref.shape[0], x2_ref.shape[1] - nl), x2_ref.dtype)

    # ---- conv layer = implicit im2col accumulated one kernel row at a time
    #      (live lhs chunk is (k*cin_pad, nl) bf16, never the full k*k block) -
    def conv_layer(x_ref, w_ref, bias, k, last):
        acc = None
        for ki in range(k):
            chunk = jnp.concatenate(
                [x_ref[:, ki * width + kj: ki * width + kj + nl] for kj in range(k)],
                axis=0)                                    # (k*cin_pad, nl) bf16
            part = jnp.dot(w_ref[ki], chunk, preferred_element_type=jnp.float32)
            acc = part if acc is None else acc + part
        y = acc + bias                                     # f32, (Cout, nl)
        if last:                                           # ReLU(ELU(x)) == ReLU(x)
            return jnp.maximum(y, 0.0)
        return _elu(y)                                     # ELU kept in f32

    x1_ref[:, :nl] = conv_layer(obs_ref, w1_ref, cb_ref[:couts[0], 0:1],
                                ks[0], last=False).astype(x1_ref.dtype)
    x2_ref[:, :nl] = conv_layer(x1_ref, w2_ref, cb_ref[:couts[1], 1:2],
                                ks[1], last=False).astype(x2_ref.dtype)
    y3 = conv_layer(x2_ref, w3_ref, cb_ref[:couts[2], 2:3],
                    ks[2], last=True)                      # (c3, nl) f32

    # ---- flatten: gather only the valid conv-3 columns of each image (8
    #      contiguous lane groups), pad the lane dim to a 128 multiple and
    #      transpose once.  Rows of yvt are ordered (b, i, j). ----------------
    c3 = couts[2]
    npos = h_out * w_out
    nv = batch * npos
    groups = [y3[:, b * hw + i * width: b * hw + i * width + w_out]
              for b in range(batch) for i in range(h_out)]
    nv_pad = _round_up(nv, 128)
    if nv_pad > nv:
        groups.append(jnp.zeros((c3, nv_pad - nv), jnp.float32))
    yvt = jnp.transpose(jnp.concatenate(groups, axis=1))   # (nv_pad, c3)

    # ---- post_encoder Linear + ReLU: vector slab (bias folded into a leading
    #      ones column of vec) + 16 per-position MXU matmuls against the
    #      pre-permuted CNN weight slab that just finished its async DMA. -----
    emb = jnp.dot(vec_ref[...], wvb_ref[...], preferred_element_type=jnp.float32)
    wf_copy.wait()
    for p in range(npos):
        rows = jnp.concatenate(
            [yvt[b * npos + p: b * npos + p + 1, :] for b in range(batch)], axis=0)
        emb = emb + jnp.dot(rows.astype(wf_vmem.dtype),
                            wf_vmem[p * c3:(p + 1) * c3, :],
                            preferred_element_type=jnp.float32)
    out_ref[...] = jnp.maximum(emb, 0.0).astype(out_ref.dtype)


# ----------------------------------------------------------------------------
# Parameter init (PyTorch layout) + one-time repack into kernel layouts
# ----------------------------------------------------------------------------
def init_conv_encoder_params(key, raster_shape, cnn_channels=(16, 32, 64),
                             kernel_sizes=(8, 4, 3), vec_dim=14, vec_out=256):
    """PyTorch-layout parameters (Conv2d: (Cout, Cin, k, k); the Linear acts on
    concat([cnn_features_flattened_NCHW, vector]))."""
    in_ch, h, w = raster_shape
    params = {"conv": []}
    ch = in_ch
    for cout, k in zip(cnn_channels, kernel_sizes):
        key, kw, kb = jax.random.split(key, 3)
        bound = 1.0 / jnp.sqrt(ch * k * k)
        w_ = jax.random.uniform(kw, (cout, ch, k, k), jnp.float32, -bound, bound)
        b_ = jax.random.uniform(kb, (cout,), jnp.float32, -bound, bound)
        params["conv"].append((w_, b_))
        ch = cout
        h, w = h - k + 1, w - k + 1            # stride 1, valid padding
    in_features = ch * h * w + vec_dim
    key, kw, kb = jax.random.split(key, 3)
    bound = 1.0 / jnp.sqrt(in_features)
    params["lin_w"] = jax.random.uniform(kw, (in_features, vec_out), jnp.float32,
                                         -bound, bound)
    params["lin_b"] = jax.random.uniform(kb, (vec_out,), jnp.float32,
                                         -bound, bound)
    return params


def pack_conv_encoder_params(params, raster_shape):
    """One-time repack of PyTorch-layout params into the kernel's layouts:
      * conv weights -> bf16 (k, Cout, k*Cin_pad): leading dim = kernel row ki
        (free ref index in-kernel), columns in (kj, cin) order matching the
        kernel's per-row im2col chunk;
      * conv biases  -> one f32 (max_Cout, 3) array, column l = layer l;
      * final Linear -> bf16 CNN slab `wf` with rows permuted so the NCHW
        flatten is free in-kernel ((i, j, c) row order), plus an f32 (1+14, 256)
        vector slab `wvb` whose first row is the Linear bias (the kernel's
        vector input gets a leading ones column).
    """
    in_ch, h, w = raster_shape
    packed = {}
    conv_bs = []
    ws = []
    ch = in_ch
    for wt, bt in params["conv"]:
        cout, cin, k, _ = wt.shape
        cin_p = _round_up(cin, 8)
        w2 = jnp.transpose(wt, (2, 0, 3, 1))               # (kh, Cout, kw, Cin)
        w2 = jnp.pad(w2, ((0, 0), (0, 0), (0, 0), (0, cin_p - cin)))
        ws.append(w2.reshape(k, cout, k * cin_p).astype(jnp.bfloat16))
        conv_bs.append(bt)
        ch = cout
        h, w = h - k + 1, w - k + 1
    packed["w1"], packed["w2"], packed["w3"] = ws
    max_c = max(b.shape[0] for b in conv_bs)
    cb = jnp.zeros((max_c, len(conv_bs)), jnp.float32)
    for l, b in enumerate(conv_bs):
        cb = cb.at[:b.shape[0], l].set(b)
    packed["cb"] = cb

    cnn_flat = ch * h * w
    vec_out = params["lin_w"].shape[1]
    wf = params["lin_w"][:cnn_flat, :]                     # rows in NCHW order
    # rows c*(h*w) + p  ->  p*ch + c  (kernel gathers features as (i, j, c))
    packed["wf"] = (wf.reshape(ch, h * w, vec_out)
                      .transpose(1, 0, 2)
                      .reshape(cnn_flat, vec_out)
                      .astype(jnp.bfloat16))
    packed["wvb"] = jnp.concatenate(
        [params["lin_b"].reshape(1, vec_out), params["lin_w"][cnn_flat:, :]],
        axis=0)                                            # (1 + vec_dim, 256) f32
    return packed


# ----------------------------------------------------------------------------
# Forward: one fused pallas_call
# ----------------------------------------------------------------------------
@jax.jit
def conv_encoder_forward(packed, observation_nchw, vector):
    # TODO(synk): the fused lane-shift im2col assumes stride 1 (module default)
    # and exactly 3 conv blocks.
    batch, c0, h0, w0 = observation_nchw.shape
    hw = h0 * w0
    nl = batch * hw
    c0p = _round_up(c0, 8)

    w_list = [packed["w1"], packed["w2"], packed["w3"]]
    assert len(w_list) == 3, "fused kernel is specialized to 3 conv blocks"
    ks = [wt.shape[0] for wt in w_list]
    couts = [wt.shape[1] for wt in w_list]
    assert packed["w1"].shape[2] == ks[0] * c0p
    h, w = h0, w0
    for k in ks:
        h, w = h - k + 1, w - k + 1            # stride 1, valid padding
    h_out, w_out, c3 = h, w, couts[-1]
    vec_out = packed["wvb"].shape[1]

    # lane padding so every tap slice x[:, s : s + nl] stays in bounds
    max_shift = max((k - 1) * w0 + (k - 1) for k in ks)
    nlp = nl + _round_up(max_shift, 128)

    # lay the observation out as (channels_pad, batch*H*W + pad) bf16 so the
    # kernel's conv-1 activation ref is the input itself (no stage-0 copy);
    # the zero padding keeps all out-of-range tap reads finite (never Inf/NaN).
    obs_lay = (observation_nchw.reshape(batch, c0, hw)
               .transpose(1, 0, 2)
               .reshape(c0, nl)
               .astype(jnp.bfloat16))
    obs_pad = jnp.pad(obs_lay, ((0, c0p - c0), (0, nlp - nl)))

    # fold the Linear bias into the vector slab via a leading ones column
    vec_aug = jnp.concatenate(
        [jnp.ones((batch, 1), vector.dtype), vector], axis=1)

    kernel = functools.partial(
        _conv_encoder_kernel,
        batch=batch, width=w0, hw=hw, nl=nl, ks=tuple(ks),
        couts=tuple(couts), h_out=h_out, w_out=w_out)

    vmem = pl.BlockSpec(memory_space=pltpu.MemorySpace.VMEM)
    hbm = pl.BlockSpec(memory_space=pl.ANY)
    return pl.pallas_call(
        kernel,
        out_shape=jax.ShapeDtypeStruct((batch, vec_out), jnp.float32),
        in_specs=[vmem, vmem, vmem, vmem, vmem, vmem, vmem, hbm],
        out_specs=vmem,
        scratch_shapes=[
            pltpu.VMEM((couts[0], nlp), jnp.bfloat16),           # x1
            pltpu.VMEM((couts[1], nlp), jnp.bfloat16),           # x2
            pltpu.VMEM(packed["wf"].shape, packed["wf"].dtype),  # wf landing buf
            pltpu.SemaphoreType.DMA(()),                         # wf DMA sem
        ],
    )(obs_pad, vec_aug, packed["w1"], packed["w2"], packed["w3"],
      packed["cb"], packed["wvb"], packed["wf"])


# ----------------------------------------------------------------------------
# Pure-JAX reference (mirrors the PyTorch module) for a correctness check
# ----------------------------------------------------------------------------
def conv_encoder_reference(params, observation, vector):
    x = observation
    for w, b in params["conv"]:
        x = jax.lax.conv_general_dilated(
            x, w, window_strides=(1, 1), padding="VALID",
            dimension_numbers=("NCHW", "OIHW", "NCHW"),
            precision=jax.lax.Precision.HIGHEST)
        x = x + b.reshape(1, -1, 1, 1)
        x = jnp.where(x > 0, x, jnp.exp(jnp.minimum(x, 0.0)) - 1.0)   # ELU
    x = jnp.maximum(x, 0.0)                                           # ReLU
    feat = x.reshape(x.shape[0], -1)                                  # NCHW flatten
    embed = jnp.concatenate([feat, vector], axis=-1)
    out = jnp.dot(embed, params["lin_w"],
                  precision=jax.lax.Precision.HIGHEST) + params["lin_b"]
    return jnp.maximum(out, 0.0)


# ----------------------------------------------------------------------------
if __name__ == "__main__":
    raster_shape = (4, 16, 16)          # (C, H, W)
    cnn_channels = (16, 32, 64)
    kernel_sizes = (8, 4, 3)
    vec_dim = 14
    vec_out = 256
    batch = 2

    key = jax.random.PRNGKey(0)
    kp, kx, kv = jax.random.split(key, 3)

    params = init_conv_encoder_params(kp, raster_shape, cnn_channels,
                                      kernel_sizes, vec_dim, vec_out)
    observation = jax.random.normal(kx, (batch,) + raster_shape, jnp.float32)
    vector = jax.random.normal(kv, (batch, vec_dim), jnp.float32)

    packed = pack_conv_encoder_params(params, raster_shape)

    out = conv_encoder_forward(packed, observation, vector)
    out = jax.block_until_ready(out)
    assert out.shape == (batch, vec_out), out.shape

    ref = jax.block_until_ready(conv_encoder_reference(params, observation, vector))
    np.testing.assert_allclose(np.asarray(out), np.asarray(ref),
                               rtol=2e-2, atol=2e-2)
    print("KERNEL_OK")
</pallas_src>

<mosaic_0001>
module attributes {stable_mosaic.version = 11 : i64} {
  func.func @_conv_encoder_kernel(%arg0: memref<8x640xbf16, #tpu.memory_space<vmem>>, %arg1: memref<2x15xf32, #tpu.memory_space<vmem>>, %arg2: memref<8x16x64xbf16, #tpu.memory_space<vmem>>, %arg3: memref<4x32x64xbf16, #tpu.memory_space<vmem>>, %arg4: memref<3x64x96xbf16, #tpu.memory_space<vmem>>, %arg5: memref<64x3xf32, #tpu.memory_space<vmem>>, %arg6: memref<15x256xf32, #tpu.memory_space<vmem>>, %arg7: memref<1024x256xbf16, #tpu.memory_space<any>>, %arg8: memref<2x256xf32, #tpu.memory_space<vmem>>, %arg9: memref<16x640xbf16, #tpu.memory_space<vmem>>, %arg10: memref<32x640xbf16, #tpu.memory_space<vmem>>, %arg11: memref<1024x256xbf16, #tpu.memory_space<vmem>>, %arg12: memref<!tpu.dma_semaphore, #tpu.memory_space<semaphore_mem>>) attributes {dimension_semantics = [], scalar_prefetch = 0 : i64, scratch_operands = 4 : i64, tpu.core_type = #tpu.core_type<tc>} {
    tpu.enqueue_dma source(%arg7 : memref<1024x256xbf16, #tpu.memory_space<any>>) target(%arg11 : memref<1024x256xbf16, #tpu.memory_space<vmem>>) target_semaphore(%arg12 : memref<!tpu.dma_semaphore, #tpu.memory_space<semaphore_mem>>)
    %cst = arith.constant 0.000000e+00 : bf16
    %0 = vector.broadcast %cst : bf16 to vector<16x128xbf16>
    %c0 = arith.constant 0 : index
    %c512 = arith.constant 512 : index
    %1 = vector.load %arg9[%c0, %c512] : memref<16x640xbf16, #tpu.memory_space<vmem>>, vector<16x128xbf16>
    tpu.vector_store %arg9[%c0, %c512], %0 {strides = array<i32>} : memref<16x640xbf16, #tpu.memory_space<vmem>>, vector<16x128xbf16>,
    %cst_0 = arith.constant 0.000000e+00 : bf16
    %2 = vector.broadcast %cst_0 : bf16 to vector<32x128xbf16>
    %c0_1 = arith.constant 0 : index
    %c512_2 = arith.constant 512 : index
    %3 = vector.load %arg10[%c0_1, %c512_2] : memref<32x640xbf16, #tpu.memory_space<vmem>>, vector<32x128xbf16>
    tpu.vector_store %arg10[%c0_1, %c512_2], %2 {strides = array<i32>} : memref<32x640xbf16, #tpu.memory_space<vmem>>, vector<32x128xbf16>,
    %c0_3 = arith.constant 0 : index
    %c0_4 = arith.constant 0 : index
    %4 = vector.load %arg5[%c0_3, %c0_4] : memref<64x3xf32, #tpu.memory_space<vmem>>, vector<16x1xf32>
    %c0_5 = arith.constant 0 : index
    %c0_6 = arith.constant 0 : index
    %5 = vector.load %arg0[%c0_5, %c0_6] : memref<8x640xbf16, #tpu.memory_space<vmem>>, vector<8x512xbf16>
    %c0_7 = arith.constant 0 : index
    %c1 = arith.constant 1 : index
    %6 = vector.load %arg0[%c0_7, %c1] : memref<8x640xbf16, #tpu.memory_space<vmem>>, vector<8x512xbf16>
    %c0_8 = arith.constant 0 : index
    %c2 = arith.constant 2 : index
    %7 = vector.load %arg0[%c0_8, %c2] : memref<8x640xbf16, #tpu.memory_space<vmem>>, vector<8x512xbf16>
    %c0_9 = arith.constant 0 : index
    %c3 = arith.constant 3 : index
    %8 = vector.load %arg0[%c0_9, %c3] : memref<8x640xbf16, #tpu.memory_space<vmem>>, vector<8x512xbf16>
    %c0_10 = arith.constant 0 : index
    %c4 = arith.constant 4 : index
    %9 = vector.load %arg0[%c0_10, %c4] : memref<8x640xbf16, #tpu.memory_space<vmem>>, vector<8x512xbf16>
    %c0_11 = arith.constant 0 : index
    %c5 = arith.constant 5 : index
    %10 = vector.load %arg0[%c0_11, %c5] : memref<8x640xbf16, #tpu.memory_space<vmem>>, vector<8x512xbf16>
    %c0_12 = arith.constant 0 : index
    %c6 = arith.constant 6 : index
    %11 = vector.load %arg0[%c0_12, %c6] : memref<8x640xbf16, #tpu.memory_space<vmem>>, vector<8x512xbf16>
    %c0_13 = arith.constant 0 : index
    %c7 = arith.constant 7 : index
    %12 = vector.load %arg0[%c0_13, %c7] : memref<8x640xbf16, #tpu.memory_space<vmem>>, vector<8x512xbf16>
    %13 = tpu.concatenate %5, %6, %7, %8, %9, %10, %11, %12 in 0 : vector<8x512xbf16>, vector<8x512xbf16>, vector<8x512xbf16>, vector<8x512xbf16>, vector<8x512xbf16>, vector<8x512xbf16>, vector<8x512xbf16>, vector<8x512xbf16> -> vector<64x512xbf16>
    %c0_14 = arith.constant 0 : index
    %c0_15 = arith.constant 0 : index
    %c0_16 = arith.constant 0 : index
    %14 = vector.load %arg2[%c0_14, %c0_15, %c0_16] : memref<8x16x64xbf16, #tpu.memory_space<vmem>>, vector<1x16x64xbf16>
    %15 = vector.shape_cast %14 : vector<1x16x64xbf16> to vector<16x64xbf16>
    %cst_17 = arith.constant dense<0.000000e+00> : vector<16x512xf32>
    %16 = tpu.matmul %15, %13, %cst_17 {dimension_numbers = #tpu.dot_dimension_numbers<[1], [0], [0], [1], [0, 0, 1, 1], [], []>} : vector<16x64xbf16>, vector<64x512xbf16>, vector<16x512xf32> -> vector<16x512xf32>
    %c0_18 = arith.constant 0 : index
    %c16 = arith.constant 16 : index
    %17 = vector.load %arg0[%c0_18, %c16] : memref<8x640xbf16, #tpu.memory_space<vmem>>, vector<8x512xbf16>
    %c0_19 = arith.constant 0 : index
    %c17 = arith.constant 17 : index
    %18 = vector.load %arg0[%c0_19, %c17] : memref<8x640xbf16, #tpu.memory_space<vmem>>, vector<8x512xbf16>
    %c0_20 = arith.constant 0 : index
    %c18 = arith.constant 18 : index
    %19 = vector.load %arg0[%c0_20, %c18] : memref<8x640xbf16, #tpu.memory_space<vmem>>, vector<8x512xbf16>
    %c0_21 = arith.constant 0 : index
    %c19 = arith.constant 19 : index
    %20 = vector.load %arg0[%c0_21, %c19] : memref<8x640xbf16, #tpu.memory_space<vmem>>, vector<8x512xbf16>
    %c0_22 = arith.constant 0 : index
    %c20 = arith.constant 20 : index
    %21 = vector.load %arg0[%c0_22, %c20] : memref<8x640xbf16, #tpu.memory_space<vmem>>, vector<8x512xbf16>
    %c0_23 = arith.constant 0 : index
    %c21 = arith.constant 21 : index
    %22 = vector.load %arg0[%c0_23, %c21] : memref<8x640xbf16, #tpu.memory_space<vmem>>, vector<8x512xbf16>
    %c0_24 = arith.constant 0 : index
    %c22 = arith.constant 22 : index
    %23 = vector.load %arg0[%c0_24, %c22] : memref<8x640xbf16, #tpu.memory_space<vmem>>, vector<8x512xbf16>
    %c0_25 = arith.constant 0 : index
    %c23 = arith.constant 23 : index
    %24 = vector.load %arg0[%c0_25, %c23] : memref<8x640xbf16, #tpu.memory_space<vmem>>, vector<8x512xbf16>
    %25 = tpu.concatenate %17, %18, %19, %20, %21, %22, %23, %24 in 0 : vector<8x512xbf16>, vector<8x512xbf16>, vector<8x512xbf16>, vector<8x512xbf16>, vector<8x512xbf16>, vector<8x512xbf16>, vector<8x512xbf16>, vector<8x512xbf16> -> vector<64x512xbf16>
    %c1_26 = arith.constant 1 : index
    %c0_27 = arith.constant 0 : index
    %c0_28 = arith.constant 0 : index
    %26 = vector.load %arg2[%c1_26, %c0_27, %c0_28] : memref<8x16x64xbf16, #tpu.memory_space<vmem>>, vector<1x16x64xbf16>
    %27 = vector.shape_cast %26 : vector<1x16x64xbf16> to vector<16x64xbf16>
    %cst_29 = arith.constant dense<0.000000e+00> : vector<16x512xf32>
    %28 = tpu.matmul %27, %25, %cst_29 {dimension_numbers = #tpu.dot_dimension_numbers<[1], [0], [0], [1], [0, 0, 1, 1], [], []>} : vector<16x64xbf16>, vector<64x512xbf16>, vector<16x512xf32> -> vector<16x512xf32>
    %29 = arith.addf %16, %28 : vector<16x512xf32>
    %c0_30 = arith.constant 0 : index
    %c32 = arith.constant 32 : index
    %30 = vector.load %arg0[%c0_30, %c32] : memref<8x640xbf16, #tpu.memory_space<vmem>>, vector<8x512xbf16>
    %c0_31 = arith.constant 0 : index
    %c33 = arith.constant 33 : index
    %31 = vector.load %arg0[%c0_31, %c33] : memref<8x640xbf16, #tpu.memory_space<vmem>>, vector<8x512xbf16>
    %c0_32 = arith.constant 0 : index
    %c34 = arith.constant 34 : index
    %32 = vector.load %arg0[%c0_32, %c34] : memref<8x640xbf16, #tpu.memory_space<vmem>>, vector<8x512xbf16>
    %c0_33 = arith.constant 0 : index
    %c35 = arith.constant 35 : index
    %33 = vector.load %arg0[%c0_33, %c35] : memref<8x640xbf16, #tpu.memory_space<vmem>>, vector<8x512xbf16>
    %c0_34 = arith.constant 0 : index
    %c36 = arith.constant 36 : index
    %34 = vector.load %arg0[%c0_34, %c36] : memref<8x640xbf16, #tpu.memory_space<vmem>>, vector<8x512xbf16>
    %c0_35 = arith.constant 0 : index
    %c37 = arith.constant 37 : index
    %35 = vector.load %arg0[%c0_35, %c37] : memref<8x640xbf16, #tpu.memory_space<vmem>>, vector<8x512xbf16>
    %c0_36 = arith.constant 0 : index
    %c38 = arith.constant 38 : index
    %36 = vector.load %arg0[%c0_36, %c38] : memref<8x640xbf16, #tpu.memory_space<vmem>>, vector<8x512xbf16>
    %c0_37 = arith.constant 0 : index
    %c39 = arith.constant 39 : index
    %37 = vector.load %arg0[%c0_37, %c39] : memref<8x640xbf16, #tpu.memory_space<vmem>>, vector<8x512xbf16>
    %38 = tpu.concatenate %30, %31, %32, %33, %34, %35, %36, %37 in 0 : vector<8x512xbf16>, vector<8x512xbf16>, vector<8x512xbf16>, vector<8x512xbf16>, vector<8x512xbf16>, vector<8x512xbf16>, vector<8x512xbf16>, vector<8x512xbf16> -> vector<64x512xbf16>
    %c2_38 = arith.constant 2 : index
    %c0_39 = arith.constant 0 : index
    %c0_40 = arith.constant 0 : index
    %39 = vector.load %arg2[%c2_38, %c0_39, %c0_40] : memref<8x16x64xbf16, #tpu.memory_space<vmem>>, vector<1x16x64xbf16>
    %40 = vector.shape_cast %39 : vector<1x16x64xbf16> to vector<16x64xbf16>
    %cst_41 = arith.constant dense<0.000000e+00> : vector<16x512xf32>
    %41 = tpu.matmul %40, %38, %cst_41 {dimension_numbers = #tpu.dot_dimension_numbers<[1], [0], [0], [1], [0, 0, 1, 1], [], []>} : vector<16x64xbf16>, vector<64x512xbf16>, vector<16x512xf32> -> vector<16x512xf32>
    %42 = arith.addf %29, %41 : vector<16x512xf32>
    %c0_42 = arith.constant 0 : index
    %c48 = arith.constant 48 : index
    %43 = vector.load %arg0[%c0_42, %c48] : memref<8x640xbf16, #tpu.memory_space<vmem>>, vector<8x512xbf16>
    %c0_43 = arith.constant 0 : index
    %c49 = arith.constant 49 : index
    %44 = vector.load %arg0[%c0_43, %c49] : memref<8x640xbf16, #tpu.memory_space<vmem>>, vector<8x512xbf16>
    %c0_44 = arith.constant 0 : index
    %c50 = arith.constant 50 : index
    %45 = vector.load %arg0[%c0_44, %c50] : memref<8x640xbf16, #tpu.memory_space<vmem>>, vector<8x512xbf16>
    %c0_45 = arith.constant 0 : index
    %c51 = arith.constant 51 : index
    %46 = vector.load %arg0[%c0_45, %c51] : memref<8x640xbf16, #tpu.memory_space<vmem>>, vector<8x512xbf16>
    %c0_46 = arith.constant 0 : index
    %c52 = arith.constant 52 : index
    %47 = vector.load %arg0[%c0_46, %c52] : memref<8x640xbf16, #tpu.memory_space<vmem>>, vector<8x512xbf16>
    %c0_47 = arith.constant 0 : index
    %c53 = arith.constant 53 : index
    %48 = vector.load %arg0[%c0_47, %c53] : memref<8x640xbf16, #tpu.memory_space<vmem>>, vector<8x512xbf16>
    %c0_48 = arith.constant 0 : index
    %c54 = arith.constant 54 : index
    %49 = vector.load %arg0[%c0_48, %c54] : memref<8x640xbf16, #tpu.memory_space<vmem>>, vector<8x512xbf16>
    %c0_49 = arith.constant 0 : index
    %c55 = arith.constant 55 : index
    %50 = vector.load %arg0[%c0_49, %c55] : memref<8x640xbf16, #tpu.memory_space<vmem>>, vector<8x512xbf16>
    %51 = tpu.concatenate %43, %44, %45, %46, %47, %48, %49, %50 in 0 : vector<8x512xbf16>, vector<8x512xbf16>, vector<8x512xbf16>, vector<8x512xbf16>, vector<8x512xbf16>, vector<8x512xbf16>, vector<8x512xbf16>, vector<8x512xbf16> -> vector<64x512xbf16>
    %c3_50 = arith.constant 3 : index
    %c0_51 = arith.constant 0 : index
    %c0_52 = arith.constant 0 : index
    %52 = vector.load %arg2[%c3_50, %c0_51, %c0_52] : memref<8x16x64xbf16, #tpu.memory_space<vmem>>, vector<1x16x64xbf16>
    %53 = vector.shape_cast %52 : vector<1x16x64xbf16> to vector<16x64xbf16>
    %cst_53 = arith.constant dense<0.000000e+00> : vector<16x512xf32>
    %54 = tpu.matmul %53, %51, %cst_53 {dimension_numbers = #tpu.dot_dimension_numbers<[1], [0], [0], [1], [0, 0, 1, 1], [], []>} : vector<16x64xbf16>, vector<64x512xbf16>, vector<16x512xf32> -> vector<16x512xf32>
    %55 = arith.addf %42, %54 : vector<16x512xf32>
    %c0_54 = arith.constant 0 : index
    %c64 = arith.constant 64 : index
    %56 = vector.load %arg0[%c0_54, %c64] : memref<8x640xbf16, #tpu.memory_space<vmem>>, vector<8x512xbf16>
    %c0_55 = arith.constant 0 : index
    %c65 = arith.constant 65 : index
    %57 = vector.load %arg0[%c0_55, %c65] : memref<8x640xbf16, #tpu.memory_space<vmem>>, vector<8x512xbf16>
    %c0_56 = arith.constant 0 : index
    %c66 = arith.constant 66 : index
    %58 = vector.load %arg0[%c0_56, %c66] : memref<8x640xbf16, #tpu.memory_space<vmem>>, vector<8x512xbf16>
    %c0_57 = arith.constant 0 : index
    %c67 = arith.constant 67 : index
    %59 = vector.load %arg0[%c0_57, %c67] : memref<8x640xbf16, #tpu.memory_space<vmem>>, vector<8x512xbf16>
    %c0_58 = arith.constant 0 : index
    %c68 = arith.constant 68 : index
    %60 = vector.load %arg0[%c0_58, %c68] : memref<8x640xbf16, #tpu.memory_space<vmem>>, vector<8x512xbf16>
    %c0_59 = arith.constant 0 : index
    %c69 = arith.constant 69 : index
    %61 = vector.load %arg0[%c0_59, %c69] : memref<8x640xbf16, #tpu.memory_space<vmem>>, vector<8x512xbf16>
    %c0_60 = arith.constant 0 : index
    %c70 = arith.constant 70 : index
    %62 = vector.load %arg0[%c0_60, %c70] : memref<8x640xbf16, #tpu.memory_space<vmem>>, vector<8x512xbf16>
    %c0_61 = arith.constant 0 : index
    %c71 = arith.constant 71 : index
    %63 = vector.load %arg0[%c0_61, %c71] : memref<8x640xbf16, #tpu.memory_space<vmem>>, vector<8x512xbf16>
    %64 = tpu.concatenate %56, %57, %58, %59, %60, %61, %62, %63 in 0 : vector<8x512xbf16>, vector<8x512xbf16>, vector<8x512xbf16>, vector<8x512xbf16>, vector<8x512xbf16>, vector<8x512xbf16>, vector<8x512xbf16>, vector<8x512xbf16> -> vector<64x512xbf16>
    %c4_62 = arith.constant 4 : index
    %c0_63 = arith.constant 0 : index
    %c0_64 = arith.constant 0 : index
    %65 = vector.load %arg2[%c4_62, %c0_63, %c0_64] : memref<8x16x64xbf16, #tpu.memory_space<vmem>>, vector<1x16x64xbf16>
    %66 = vector.shape_cast %65 : vector<1x16x64xbf16> to vector<16x64xbf16>
    %cst_65 = arith.constant dense<0.000000e+00> : vector<16x512xf32>
    %67 = tpu.matmul %66, %64, %cst_65 {dimension_numbers = #tpu.dot_dimension_numbers<[1], [0], [0], [1], [0, 0, 1, 1], [], []>} : vector<16x64xbf16>, vector<64x512xbf16>, vector<16x512xf32> -> vector<16x512xf32>
    %68 = arith.addf %55, %67 : vector<16x512xf32>
    %c0_66 = arith.constant 0 : index
    %c80 = arith.constant 80 : index
    %69 = vector.load %arg0[%c0_66, %c80] : memref<8x640xbf16, #tpu.memory_space<vmem>>, vector<8x512xbf16>
    %c0_67 = arith.constant 0 : index
    %c81 = arith.constant 81 : index
    %70 = vector.load %arg0[%c0_67, %c81] : memref<8x640xbf16, #tpu.memory_space<vmem>>, vector<8x512xbf16>
    %c0_68 = arith.constant 0 : index
    %c82 = arith.constant 82 : index
    %71 = vector.load %arg0[%c0_68, %c82] : memref<8x640xbf16, #tpu.memory_space<vmem>>, vector<8x512xbf16>
    %c0_69 = arith.constant 0 : index
    %c83 = arith.constant 83 : index
    %72 = vector.load %arg0[%c0_69, %c83] : memref<8x640xbf16, #tpu.memory_space<vmem>>, vector<8x512xbf16>
    %c0_70 = arith.constant 0 : index
    %c84 = arith.constant 84 : index
    %73 = vector.load %arg0[%c0_70, %c84] : memref<8x640xbf16, #tpu.memory_space<vmem>>, vector<8x512xbf16>
    %c0_71 = arith.constant 0 : index
    %c85 = arith.constant 85 : index
    %74 = vector.load %arg0[%c0_71, %c85] : memref<8x640xbf16, #tpu.memory_space<vmem>>, vector<8x512xbf16>
    %c0_72 = arith.constant 0 : index
    %c86 = arith.constant 86 : index
    %75 = vector.load %arg0[%c0_72, %c86] : memref<8x640xbf16, #tpu.memory_space<vmem>>, vector<8x512xbf16>
    %c0_73 = arith.constant 0 : index
    %c87 = arith.constant 87 : index
    %76 = vector.load %arg0[%c0_73, %c87] : memref<8x640xbf16, #tpu.memory_space<vmem>>, vector<8x512xbf16>
    %77 = tpu.concatenate %69, %70, %71, %72, %73, %74, %75, %76 in 0 : vector<8x512xbf16>, vector<8x512xbf16>, vector<8x512xbf16>, vector<8x512xbf16>, vector<8x512xbf16>, vector<8x512xbf16>, vector<8x512xbf16>, vector<8x512xbf16> -> vector<64x512xbf16>
    %c5_74 = arith.constant 5 : index
    %c0_75 = arith.constant 0 : index
    %c0_76 = arith.constant 0 : index
    %78 = vector.load %arg2[%c5_74, %c0_75, %c0_76] : memref<8x16x64xbf16, #tpu.memory_space<vmem>>, vector<1x16x64xbf16>
    %79 = vector.shape_cast %78 : vector<1x16x64xbf16> to vector<16x64xbf16>
    %cst_77 = arith.constant dense<0.000000e+00> : vector<16x512xf32>
    %80 = tpu.matmul %79, %77, %cst_77 {dimension_numbers = #tpu.dot_dimension_numbers<[1], [0], [0], [1], [0, 0, 1, 1], [], []>} : vector<16x64xbf16>, vector<64x512xbf16>, vector<16x512xf32> -> vector<16x512xf32>
    %81 = arith.addf %68, %80 : vector<16x512xf32>
    %c0_78 = arith.constant 0 : index
    %c96 = arith.constant 96 : index
    %82 = vector.load %arg0[%c0_78, %c96] : memref<8x640xbf16, #tpu.memory_space<vmem>>, vector<8x512xbf16>
    %c0_79 = arith.constant 0 : index
    %c97 = arith.constant 97 : index
    %83 = vector.load %arg0[%c0_79, %c97] : memref<8x640xbf16, #tpu.memory_space<vmem>>, vector<8x512xbf16>
    %c0_80 = arith.constant 0 : index
    %c98 = arith.constant 98 : index
    %84 = vector.load %arg0[%c0_80, %c98] : memref<8x640xbf16, #tpu.memory_space<vmem>>, vector<8x512xbf16>
    %c0_81 = arith.constant 0 : index
    %c99 = arith.constant 99 : index
    %85 = vector.load %arg0[%c0_81, %c99] : memref<8x640xbf16, #tpu.memory_space<vmem>>, vector<8x512xbf16>
    %c0_82 = arith.constant 0 : index
    %c100 = arith.constant 100 : index
    %86 = vector.load %arg0[%c0_82, %c100] : memref<8x640xbf16, #tpu.memory_space<vmem>>, vector<8x512xbf16>
    %c0_83 = arith.constant 0 : index
    %c101 = arith.constant 101 : index
    %87 = vector.load %arg0[%c0_83, %c101] : memref<8x640xbf16, #tpu.memory_space<vmem>>, vector<8x512xbf16>
    %c0_84 = arith.constant 0 : index
    %c102 = arith.constant 102 : index
    %88 = vector.load %arg0[%c0_84, %c102] : memref<8x640xbf16, #tpu.memory_space<vmem>>, vector<8x512xbf16>
    %c0_85 = arith.constant 0 : index
    %c103 = arith.constant 103 : index
    %89 = vector.load %arg0[%c0_85, %c103] : memref<8x640xbf16, #tpu.memory_space<vmem>>, vector<8x512xbf16>
    %90 = tpu.concatenate %82, %83, %84, %85, %86, %87, %88, %89 in 0 : vector<8x512xbf16>, vector<8x512xbf16>, vector<8x512xbf16>, vector<8x512xbf16>, vector<8x512xbf16>, vector<8x512xbf16>, vector<8x512xbf16>, vector<8x512xbf16> -> vector<64x512xbf16>
    %c6_86 = arith.constant 6 : index
    %c0_87 = arith.constant 0 : index
    %c0_88 = arith.constant 0 : index
    %91 = vector.load %arg2[%c6_86, %c0_87, %c0_88] : memref<8x16x64xbf16, #tpu.memory_space<vmem>>, vector<1x16x64xbf16>
    %92 = vector.shape_cast %91 : vector<1x16x64xbf16> to vector<16x64xbf16>
    %cst_89 = arith.constant dense<0.000000e+00> : vector<16x512xf32>
    %93 = tpu.matmul %92, %90, %cst_89 {dimension_numbers = #tpu.dot_dimension_numbers<[1], [0], [0], [1], [0, 0, 1, 1], [], []>} : vector<16x64xbf16>, vector<64x512xbf16>, vector<16x512xf32> -> vector<16x512xf32>
    %94 = arith.addf %81, %93 : vector<16x512xf32>
    %c0_90 = arith.constant 0 : index
    %c112 = arith.constant 112 : index
    %95 = vector.load %arg0[%c0_90, %c112] : memref<8x640xbf16, #tpu.memory_space<vmem>>, vector<8x512xbf16>
    %c0_91 = arith.constant 0 : index
    %c113 = arith.constant 113 : index
    %96 = vector.load %arg0[%c0_91, %c113] : memref<8x640xbf16, #tpu.memory_space<vmem>>, vector<8x512xbf16>
    %c0_92 = arith.constant 0 : index
    %c114 = arith.constant 114 : index
    %97 = vector.load %arg0[%c0_92, %c114] : memref<8x640xbf16, #tpu.memory_space<vmem>>, vector<8x512xbf16>
    %c0_93 = arith.constant 0 : index
    %c115 = arith.constant 115 : index
    %98 = vector.load %arg0[%c0_93, %c115] : memref<8x640xbf16, #tpu.memory_space<vmem>>, vector<8x512xbf16>
    %c0_94 = arith.constant 0 : index
    %c116 = arith.constant 116 : index
    %99 = vector.load %arg0[%c0_94, %c116] : memref<8x640xbf16, #tpu.memory_space<vmem>>, vector<8x512xbf16>
    %c0_95 = arith.constant 0 : index
    %c117 = arith.constant 117 : index
    %100 = vector.load %arg0[%c0_95, %c117] : memref<8x640xbf16, #tpu.memory_space<vmem>>, vector<8x512xbf16>
    %c0_96 = arith.constant 0 : index
    %c118 = arith.constant 118 : index
    %101 = vector.load %arg0[%c0_96, %c118] : memref<8x640xbf16, #tpu.memory_space<vmem>>, vector<8x512xbf16>
    %c0_97 = arith.constant 0 : index
    %c119 = arith.constant 119 : index
    %102 = vector.load %arg0[%c0_97, %c119] : memref<8x640xbf16, #tpu.memory_space<vmem>>, vector<8x512xbf16>
    %103 = tpu.concatenate %95, %96, %97, %98, %99, %100, %101, %102 in 0 : vector<8x512xbf16>, vector<8x512xbf16>, vector<8x512xbf16>, vector<8x512xbf16>, vector<8x512xbf16>, vector<8x512xbf16>, vector<8x512xbf16>, vector<8x512xbf16> -> vector<64x512xbf16>
    %c7_98 = arith.constant 7 : index
    %c0_99 = arith.constant 0 : index
    %c0_100 = arith.constant 0 : index
    %104 = vector.load %arg2[%c7_98, %c0_99, %c0_100] : memref<8x16x64xbf16, #tpu.memory_space<vmem>>, vector<1x16x64xbf16>
    %105 = vector.shape_cast %104 : vector<1x16x64xbf16> to vector<16x64xbf16>
    %cst_101 = arith.constant dense<0.000000e+00> : vector<16x512xf32>
    %106 = tpu.matmul %105, %103, %cst_101 {dimension_numbers = #tpu.dot_dimension_numbers<[1], [0], [0], [1], [0, 0, 1, 1], [], []>} : vector<16x64xbf16>, vector<64x512xbf16>, vector<16x512xf32> -> vector<16x512xf32>
    %107 = arith.addf %94, %106 : vector<16x512xf32>
    %108 = vector.broadcast %4 : vector<16x1xf32> to vector<16x512xf32>
    %109 = arith.addf %107, %108 : vector<16x512xf32>
    %cst_102 = arith.constant 0.000000e+00 : f32
    %110 = vector.broadcast %cst_102 : f32 to vector<16x512xf32>
    %111 = arith.cmpf ogt, %109, %110 : vector<16x512xf32>
    %cst_103 = arith.constant 0.000000e+00 : f32
    %112 = vector.broadcast %cst_103 : f32 to vector<16x512xf32>
    %113 = arith.minimumf %109, %112 : vector<16x512xf32>
    %114 = math.exp %113 : vector<16x512xf32>
    %cst_104 = arith.constant 1.000000e+00 : f32
    %115 = vector.broadcast %cst_104 : f32 to vector<16x512xf32>
    %116 = arith.subf %114, %115 : vector<16x512xf32>
    %117 = arith.select %111, %109, %116 : vector<16x512xi1>, vector<16x512xf32>
    %118 = arith.truncf %117 : vector<16x512xf32> to vector<16x512xbf16>
    %c0_105 = arith.constant 0 : index
    %c0_106 = arith.constant 0 : index
    %119 = vector.load %arg9[%c0_105, %c0_106] : memref<16x640xbf16, #tpu.memory_space<vmem>>, vector<16x512xbf16>
    tpu.vector_store %arg9[%c0_105, %c0_106], %118 {strides = array<i32>} : memref<16x640xbf16, #tpu.memory_space<vmem>>, vector<16x512xbf16>,
    %c0_107 = arith.constant 0 : index
    %c1_108 = arith.constant 1 : index
    %120 = vector.load %arg5[%c0_107, %c1_108] : memref<64x3xf32, #tpu.memory_space<vmem>>, vector<32x1xf32>
    %c0_109 = arith.constant 0 : index
    %c0_110 = arith.constant 0 : index
    %121 = vector.load %arg9[%c0_109, %c0_110] : memref<16x640xbf16, #tpu.memory_space<vmem>>, vector<16x512xbf16>
    %c0_111 = arith.constant 0 : index
    %c1_112 = arith.constant 1 : index
    %122 = vector.load %arg9[%c0_111, %c1_112] : memref<16x640xbf16, #tpu.memory_space<vmem>>, vector<16x512xbf16>
    %c0_113 = arith.constant 0 : index
    %c2_114 = arith.constant 2 : index
    %123 = vector.load %arg9[%c0_113, %c2_114] : memref<16x640xbf16, #tpu.memory_space<vmem>>, vector<16x512xbf16>
    %c0_115 = arith.constant 0 : index
    %c3_116 = arith.constant 3 : index
    %124 = vector.load %arg9[%c0_115, %c3_116] : memref<16x640xbf16, #tpu.memory_space<vmem>>, vector<16x512xbf16>
    %125 = tpu.concatenate %121, %122, %123, %124 in 0 : vector<16x512xbf16>, vector<16x512xbf16>, vector<16x512xbf16>, vector<16x512xbf16> -> vector<64x512xbf16>
    %c0_117 = arith.constant 0 : index
    %c0_118 = arith.constant 0 : index
    %c0_119 = arith.constant 0 : index
    %126 = vector.load %arg3[%c0_117, %c0_118, %c0_119] : memref<4x32x64xbf16, #tpu.memory_space<vmem>>, vector<1x32x64xbf16>
    %127 = vector.shape_cast %126 : vector<1x32x64xbf16> to vector<32x64xbf16>
    %cst_120 = arith.constant dense<0.000000e+00> : vector<32x512xf32>
    %128 = tpu.matmul %127, %125, %cst_120 {dimension_numbers = #tpu.dot_dimension_numbers<[1], [0], [0], [1], [0, 0, 1, 1], [], []>} : vector<32x64xbf16>, vector<64x512xbf16>, vector<32x512xf32> -> vector<32x512xf32>
    %c0_121 = arith.constant 0 : index
    %c16_122 = arith.constant 16 : index
    %129 = vector.load %arg9[%c0_121, %c16_122] : memref<16x640xbf16, #tpu.memory_space<vmem>>, vector<16x512xbf16>
    %c0_123 = arith.constant 0 : index
    %c17_124 = arith.constant 17 : index
    %130 = vector.load %arg9[%c0_123, %c17_124] : memref<16x640xbf16, #tpu.memory_space<vmem>>, vector<16x512xbf16>
    %c0_125 = arith.constant 0 : index
    %c18_126 = arith.constant 18 : index
    %131 = vector.load %arg9[%c0_125, %c18_126] : memref<16x640xbf16, #tpu.memory_space<vmem>>, vector<16x512xbf16>
    %c0_127 = arith.constant 0 : index
    %c19_128 = arith.constant 19 : index
    %132 = vector.load %arg9[%c0_127, %c19_128] : memref<16x640xbf16, #tpu.memory_space<vmem>>, vector<16x512xbf16>
    %133 = tpu.concatenate %129, %130, %131, %132 in 0 : vector<16x512xbf16>, vector<16x512xbf16>, vector<16x512xbf16>, vector<16x512xbf16> -> vector<64x512xbf16>
    %c1_129 = arith.constant 1 : index
    %c0_130 = arith.constant 0 : index
    %c0_131 = arith.constant 0 : index
    %134 = vector.load %arg3[%c1_129, %c0_130, %c0_131] : memref<4x32x64xbf16, #tpu.memory_space<vmem>>, vector<1x32x64xbf16>
    %135 = vector.shape_cast %134 : vector<1x32x64xbf16> to vector<32x64xbf16>
    %cst_132 = arith.constant dense<0.000000e+00> : vector<32x512xf32>
    %136 = tpu.matmul %135, %133, %cst_132 {dimension_numbers = #tpu.dot_dimension_numbers<[1], [0], [0], [1], [0, 0, 1, 1], [], []>} : vector<32x64xbf16>, vector<64x512xbf16>, vector<32x512xf32> -> vector<32x512xf32>
    %137 = arith.addf %128, %136 : vector<32x512xf32>
    %c0_133 = arith.constant 0 : index
    %c32_134 = arith.constant 32 : index
    %138 = vector.load %arg9[%c0_133, %c32_134] : memref<16x640xbf16, #tpu.memory_space<vmem>>, vector<16x512xbf16>
    %c0_135 = arith.constant 0 : index
    %c33_136 = arith.constant 33 : index
    %139 = vector.load %arg9[%c0_135, %c33_136] : memref<16x640xbf16, #tpu.memory_space<vmem>>, vector<16x512xbf16>
    %c0_137 = arith.constant 0 : index
    %c34_138 = arith.constant 34 : index
    %140 = vector.load %arg9[%c0_137, %c34_138] : memref<16x640xbf16, #tpu.memory_space<vmem>>, vector<16x512xbf16>
    %c0_139 = arith.constant 0 : index
    %c35_140 = arith.constant 35 : index
    %141 = vector.load %arg9[%c0_139, %c35_140] : memref<16x640xbf16, #tpu.memory_space<vmem>>, vector<16x512xbf16>
    %142 = tpu.concatenate %138, %139, %140, %141 in 0 : vector<16x512xbf16>, vector<16x512xbf16>, vector<16x512xbf16>, vector<16x512xbf16> -> vector<64x512xbf16>
    %c2_141 = arith.constant 2 : index
    %c0_142 = arith.constant 0 : index
    %c0_143 = arith.constant 0 : index
    %143 = vector.load %arg3[%c2_141, %c0_142, %c0_143] : memref<4x32x64xbf16, #tpu.memory_space<vmem>>, vector<1x32x64xbf16>
    %144 = vector.shape_cast %143 : vector<1x32x64xbf16> to vector<32x64xbf16>
    %cst_144 = arith.constant dense<0.000000e+00> : vector<32x512xf32>
    %145 = tpu.matmul %144, %142, %cst_144 {dimension_numbers = #tpu.dot_dimension_numbers<[1], [0], [0], [1], [0, 0, 1, 1], [], []>} : vector<32x64xbf16>, vector<64x512xbf16>, vector<32x512xf32> -> vector<32x512xf32>
    %146 = arith.addf %137, %145 : vector<32x512xf32>
    %c0_145 = arith.constant 0 : index
    %c48_146 = arith.constant 48 : index
    %147 = vector.load %arg9[%c0_145, %c48_146] : memref<16x640xbf16, #tpu.memory_space<vmem>>, vector<16x512xbf16>
    %c0_147 = arith.constant 0 : index
    %c49_148 = arith.constant 49 : index
    %148 = vector.load %arg9[%c0_147, %c49_148] : memref<16x640xbf16, #tpu.memory_space<vmem>>, vector<16x512xbf16>
    %c0_149 = arith.constant 0 : index
    %c50_150 = arith.constant 50 : index
    %149 = vector.load %arg9[%c0_149, %c50_150] : memref<16x640xbf16, #tpu.memory_space<vmem>>, vector<16x512xbf16>
    %c0_151 = arith.constant 0 : index
    %c51_152 = arith.constant 51 : index
    %150 = vector.load %arg9[%c0_151, %c51_152] : memref<16x640xbf16, #tpu.memory_space<vmem>>, vector<16x512xbf16>
    %151 = tpu.concatenate %147, %148, %149, %150 in 0 : vector<16x512xbf16>, vector<16x512xbf16>, vector<16x512xbf16>, vector<16x512xbf16> -> vector<64x512xbf16>
    %c3_153 = arith.constant 3 : index
    %c0_154 = arith.constant 0 : index
    %c0_155 = arith.constant 0 : index
    %152 = vector.load %arg3[%c3_153, %c0_154, %c0_155] : memref<4x32x64xbf16, #tpu.memory_space<vmem>>, vector<1x32x64xbf16>
    %153 = vector.shape_cast %152 : vector<1x32x64xbf16> to vector<32x64xbf16>
    %cst_156 = arith.constant dense<0.000000e+00> : vector<32x512xf32>
    %154 = tpu.matmul %153, %151, %cst_156 {dimension_numbers = #tpu.dot_dimension_numbers<[1], [0], [0], [1], [0, 0, 1, 1], [], []>} : vector<32x64xbf16>, vector<64x512xbf16>, vector<32x512xf32> -> vector<32x512xf32>
    %155 = arith.addf %146, %154 : vector<32x512xf32>
    %156 = vector.broadcast %120 : vector<32x1xf32> to vector<32x512xf32>
    %157 = arith.addf %155, %156 : vector<32x512xf32>
    %cst_157 = arith.constant 0.000000e+00 : f32
    %158 = vector.broadcast %cst_157 : f32 to vector<32x512xf32>
    %159 = arith.cmpf ogt, %157, %158 : vector<32x512xf32>
    %cst_158 = arith.constant 0.000000e+00 : f32
    %160 = vector.broadcast %cst_158 : f32 to vector<32x512xf32>
    %161 = arith.minimumf %157, %160 : vector<32x512xf32>
    %162 = math.exp %161 : vector<32x512xf32>
    %cst_159 = arith.constant 1.000000e+00 : f32
    %163 = vector.broadcast %cst_159 : f32 to vector<32x512xf32>
    %164 = arith.subf %162, %163 : vector<32x512xf32>
    %165 = arith.select %159, %157, %164 : vector<32x512xi1>, vector<32x512xf32>
    %166 = arith.truncf %165 : vector<32x512xf32> to vector<32x512xbf16>
    %c0_160 = arith.constant 0 : index
    %c0_161 = arith.constant 0 : index
    %167 = vector.load %arg10[%c0_160, %c0_161] : memref<32x640xbf16, #tpu.memory_space<vmem>>, vector<32x512xbf16>
    tpu.vector_store %arg10[%c0_160, %c0_161], %166 {strides = array<i32>} : memref<32x640xbf16, #tpu.memory_space<vmem>>, vector<32x512xbf16>,
    %c0_162 = arith.constant 0 : index
    %c2_163 = arith.constant 2 : index
    %168 = vector.load %arg5[%c0_162, %c2_163] : memref<64x3xf32, #tpu.memory_space<vmem>>, vector<64x1xf32>
    %c0_164 = arith.constant 0 : index
    %c0_165 = arith.constant 0 : index
    %169 = vector.load %arg10[%c0_164, %c0_165] : memref<32x640xbf16, #tpu.memory_space<vmem>>, vector<32x512xbf16>
    %c0_166 = arith.constant 0 : index
    %c1_167 = arith.constant 1 : index
    %170 = vector.load %arg10[%c0_166, %c1_167] : memref<32x640xbf16, #tpu.memory_space<vmem>>, vector<32x512xbf16>
    %c0_168 = arith.constant 0 : index
    %c2_169 = arith.constant 2 : index
    %171 = vector.load %arg10[%c0_168, %c2_169] : memref<32x640xbf16, #tpu.memory_space<vmem>>, vector<32x512xbf16>
    %172 = tpu.concatenate %169, %170, %171 in 0 : vector<32x512xbf16>, vector<32x512xbf16>, vector<32x512xbf16> -> vector<96x512xbf16>
    %c0_170 = arith.constant 0 : index
    %c0_171 = arith.constant 0 : index
    %c0_172 = arith.constant 0 : index
    %173 = vector.load %arg4[%c0_170, %c0_171, %c0_172] : memref<3x64x96xbf16, #tpu.memory_space<vmem>>, vector<1x64x96xbf16>
    %174 = vector.shape_cast %173 : vector<1x64x96xbf16> to vector<64x96xbf16>
    %cst_173 = arith.constant dense<0.000000e+00> : vector<64x512xf32>
    %175 = tpu.matmul %174, %172, %cst_173 {dimension_numbers = #tpu.dot_dimension_numbers<[1], [0], [0], [1], [0, 0, 1, 1], [], []>} : vector<64x96xbf16>, vector<96x512xbf16>, vector<64x512xf32> -> vector<64x512xf32>
    %c0_174 = arith.constant 0 : index
    %c16_175 = arith.constant 16 : index
    %176 = vector.load %arg10[%c0_174, %c16_175] : memref<32x640xbf16, #tpu.memory_space<vmem>>, vector<32x512xbf16>
    %c0_176 = arith.constant 0 : index
    %c17_177 = arith.constant 17 : index
    %177 = vector.load %arg10[%c0_176, %c17_177] : memref<32x640xbf16, #tpu.memory_space<vmem>>, vector<32x512xbf16>
    %c0_178 = arith.constant 0 : index
    %c18_179 = arith.constant 18 : index
    %178 = vector.load %arg10[%c0_178, %c18_179] : memref<32x640xbf16, #tpu.memory_space<vmem>>, vector<32x512xbf16>
    %179 = tpu.concatenate %176, %177, %178 in 0 : vector<32x512xbf16>, vector<32x512xbf16>, vector<32x512xbf16> -> vector<96x512xbf16>
    %c1_180 = arith.constant 1 : index
    %c0_181 = arith.constant 0 : index
    %c0_182 = arith.constant 0 : index
    %180 = vector.load %arg4[%c1_180, %c0_181, %c0_182] : memref<3x64x96xbf16, #tpu.memory_space<vmem>>, vector<1x64x96xbf16>
    %181 = vector.shape_cast %180 : vector<1x64x96xbf16> to vector<64x96xbf16>
    %cst_183 = arith.constant dense<0.000000e+00> : vector<64x512xf32>
    %182 = tpu.matmul %181, %179, %cst_183 {dimension_numbers = #tpu.dot_dimension_numbers<[1], [0], [0], [1], [0, 0, 1, 1], [], []>} : vector<64x96xbf16>, vector<96x512xbf16>, vector<64x512xf32> -> vector<64x512xf32>
    %183 = arith.addf %175, %182 : vector<64x512xf32>
    %c0_184 = arith.constant 0 : index
    %c32_185 = arith.constant 32 : index
    %184 = vector.load %arg10[%c0_184, %c32_185] : memref<32x640xbf16, #tpu.memory_space<vmem>>, vector<32x512xbf16>
    %c0_186 = arith.constant 0 : index
    %c33_187 = arith.constant 33 : index
    %185 = vector.load %arg10[%c0_186, %c33_187] : memref<32x640xbf16, #tpu.memory_space<vmem>>, vector<32x512xbf16>
    %c0_188 = arith.constant 0 : index
    %c34_189 = arith.constant 34 : index
    %186 = vector.load %arg10[%c0_188, %c34_189] : memref<32x640xbf16, #tpu.memory_space<vmem>>, vector<32x512xbf16>
    %187 = tpu.concatenate %184, %185, %186 in 0 : vector<32x512xbf16>, vector<32x512xbf16>, vector<32x512xbf16> -> vector<96x512xbf16>
    %c2_190 = arith.constant 2 : index
    %c0_191 = arith.constant 0 : index
    %c0_192 = arith.constant 0 : index
    %188 = vector.load %arg4[%c2_190, %c0_191, %c0_192] : memref<3x64x96xbf16, #tpu.memory_space<vmem>>, vector<1x64x96xbf16>
    %189 = vector.shape_cast %188 : vector<1x64x96xbf16> to vector<64x96xbf16>
    %cst_193 = arith.constant dense<0.000000e+00> : vector<64x512xf32>
    %190 = tpu.matmul %189, %187, %cst_193 {dimension_numbers = #tpu.dot_dimension_numbers<[1], [0], [0], [1], [0, 0, 1, 1], [], []>} : vector<64x96xbf16>, vector<96x512xbf16>, vector<64x512xf32> -> vector<64x512xf32>
    %191 = arith.addf %183, %190 : vector<64x512xf32>
    %192 = vector.broadcast %168 : vector<64x1xf32> to vector<64x512xf32>
    %193 = arith.addf %191, %192 : vector<64x512xf32>
    %cst_194 = arith.constant 0.000000e+00 : f32
    %194 = vector.broadcast %cst_194 : f32 to vector<64x512xf32>
    %195 = arith.maximumf %193, %194 : vector<64x512xf32>
    %196 = vector.extract_strided_slice %195 {offsets = [0, 0], sizes = [64, 4], strides = [1, 1]} : vector<64x512xf32> to vector<64x4xf32>
    %197 = vector.extract_strided_slice %195 {offsets = [0, 16], sizes = [64, 4], strides = [1, 1]} : vector<64x512xf32> to vector<64x4xf32>
    %198 = vector.extract_strided_slice %195 {offsets = [0, 32], sizes = [64, 4], strides = [1, 1]} : vector<64x512xf32> to vector<64x4xf32>
    %199 = vector.extract_strided_slice %195 {offsets = [0, 48], sizes = [64, 4], strides = [1, 1]} : vector<64x512xf32> to vector<64x4xf32>
    %200 = vector.extract_strided_slice %195 {offsets = [0, 256], sizes = [64, 4], strides = [1, 1]} : vector<64x512xf32> to vector<64x4xf32>
    %201 = vector.extract_strided_slice %195 {offsets = [0, 272], sizes = [64, 4], strides = [1, 1]} : vector<64x512xf32> to vector<64x4xf32>
    %202 = vector.extract_strided_slice %195 {offsets = [0, 288], sizes = [64, 4], strides = [1, 1]} : vector<64x512xf32> to vector<64x4xf32>
    %203 = vector.extract_strided_slice %195 {offsets = [0, 304], sizes = [64, 4], strides = [1, 1]} : vector<64x512xf32> to vector<64x4xf32>
    %cst_195 = arith.constant 0.000000e+00 : f32
    %204 = vector.broadcast %cst_195 : f32 to vector<64x96xf32>
    %205 = tpu.concatenate %196, %197, %198, %199, %200, %201, %202, %203, %204 in 1 : vector<64x4xf32>, vector<64x4xf32>, vector<64x4xf32>, vector<64x4xf32>, vector<64x4xf32>, vector<64x4xf32>, vector<64x4xf32>, vector<64x4xf32>, vector<64x96xf32> -> vector<64x128xf32>
    %206 = tpu.transpose %205, [1, 0] : vector<64x128xf32> -> vector<128x64xf32>
    %c0_196 = arith.constant 0 : index
    %c0_197 = arith.constant 0 : index
    %207 = vector.load %arg1[%c0_196, %c0_197] : memref<2x15xf32, #tpu.memory_space<vmem>>, vector<2x15xf32>
    %c0_198 = arith.constant 0 : index
    %c0_199 = arith.constant 0 : index
    %208 = vector.load %arg6[%c0_198, %c0_199] : memref<15x256xf32, #tpu.memory_space<vmem>>, vector<15x256xf32>
    %cst_200 = arith.constant dense<0.000000e+00> : vector<2x256xf32>
    %209 = tpu.matmul %207, %208, %cst_200 {dimension_numbers = #tpu.dot_dimension_numbers<[1], [0], [0], [1], [0, 0, 1, 1], [], []>} : vector<2x15xf32>, vector<15x256xf32>, vector<2x256xf32> -> vector<2x256xf32>
    tpu.wait_dma2 semaphore(%arg12 : memref<!tpu.dma_semaphore, #tpu.memory_space<semaphore_mem>>) src(%arg7 : memref<1024x256xbf16, #tpu.memory_space<any>>) dst(%arg11 : memref<1024x256xbf16, #tpu.memory_space<vmem>>)
    %210 = vector.extract_strided_slice %206 {offsets = [0, 0], sizes = [1, 64], strides = [1, 1]} : vector<128x64xf32> to vector<1x64xf32>
    %211 = vector.extract_strided_slice %206 {offsets = [16, 0], sizes = [1, 64], strides = [1, 1]} : vector<128x64xf32> to vector<1x64xf32>
    %212 = tpu.concatenate %210, %211 in 0 : vector<1x64xf32>, vector<1x64xf32> -> vector<2x64xf32>
    %213 = arith.truncf %212 : vector<2x64xf32> to vector<2x64xbf16>
    %c0_201 = arith.constant 0 : index
    %c0_202 = arith.constant 0 : index
    %214 = vector.load %arg11[%c0_201, %c0_202] : memref<1024x256xbf16, #tpu.memory_space<vmem>>, vector<64x256xbf16>
    %cst_203 = arith.constant dense<0.000000e+00> : vector<2x256xf32>
    %215 = tpu.matmul %213, %214, %cst_203 {dimension_numbers = #tpu.dot_dimension_numbers<[1], [0], [0], [1], [0, 0, 1, 1], [], []>} : vector<2x64xbf16>, vector<64x256xbf16>, vector<2x256xf32> -> vector<2x256xf32>
    %216 = arith.addf %209, %215 : vector<2x256xf32>
    %217 = vector.extract_strided_slice %206 {offsets = [1, 0], sizes = [1, 64], strides = [1, 1]} : vector<128x64xf32> to vector<1x64xf32>
    %218 = vector.extract_strided_slice %206 {offsets = [17, 0], sizes = [1, 64], strides = [1, 1]} : vector<128x64xf32> to vector<1x64xf32>
    %219 = tpu.concatenate %217, %218 in 0 : vector<1x64xf32>, vector<1x64xf32> -> vector<2x64xf32>
    %220 = arith.truncf %219 : vector<2x64xf32> to vector<2x64xbf16>
    %c64_204 = arith.constant 64 : index
    %c0_205 = arith.constant 0 : index
    %221 = vector.load %arg11[%c64_204, %c0_205] : memref<1024x256xbf16, #tpu.memory_space<vmem>>, vector<64x256xbf16>
    %cst_206 = arith.constant dense<0.000000e+00> : vector<2x256xf32>
    %222 = tpu.matmul %220, %221, %cst_206 {dimension_numbers = #tpu.dot_dimension_numbers<[1], [0], [0], [1], [0, 0, 1, 1], [], []>} : vector<2x64xbf16>, vector<64x256xbf16>, vector<2x256xf32> -> vector<2x256xf32>
    %223 = arith.addf %216, %222 : vector<2x256xf32>
    %224 = vector.extract_strided_slice %206 {offsets = [2, 0], sizes = [1, 64], strides = [1, 1]} : vector<128x64xf32> to vector<1x64xf32>
    %225 = vector.extract_strided_slice %206 {offsets = [18, 0], sizes = [1, 64], strides = [1, 1]} : vector<128x64xf32> to vector<1x64xf32>
    %226 = tpu.concatenate %224, %225 in 0 : vector<1x64xf32>, vector<1x64xf32> -> vector<2x64xf32>
    %227 = arith.truncf %226 : vector<2x64xf32> to vector<2x64xbf16>
    %c128 = arith.constant 128 : index
    %c0_207 = arith.constant 0 : index
    %228 = vector.load %arg11[%c128, %c0_207] : memref<1024x256xbf16, #tpu.memory_space<vmem>>, vector<64x256xbf16>
    %cst_208 = arith.constant dense<0.000000e+00> : vector<2x256xf32>
    %229 = tpu.matmul %227, %228, %cst_208 {dimension_numbers = #tpu.dot_dimension_numbers<[1], [0], [0], [1], [0, 0, 1, 1], [], []>} : vector<2x64xbf16>, vector<64x256xbf16>, vector<2x256xf32> -> vector<2x256xf32>
    %230 = arith.addf %223, %229 : vector<2x256xf32>
    %231 = vector.extract_strided_slice %206 {offsets = [3, 0], sizes = [1, 64], strides = [1, 1]} : vector<128x64xf32> to vector<1x64xf32>
    %232 = vector.extract_strided_slice %206 {offsets = [19, 0], sizes = [1, 64], strides = [1, 1]} : vector<128x64xf32> to vector<1x64xf32>
    %233 = tpu.concatenate %231, %232 in 0 : vector<1x64xf32>, vector<1x64xf32> -> vector<2x64xf32>
    %234 = arith.truncf %233 : vector<2x64xf32> to vector<2x64xbf16>
    %c192 = arith.constant 192 : index
    %c0_209 = arith.constant 0 : index
    %235 = vector.load %arg11[%c192, %c0_209] : memref<1024x256xbf16, #tpu.memory_space<vmem>>, vector<64x256xbf16>
    %cst_210 = arith.constant dense<0.000000e+00> : vector<2x256xf32>
    %236 = tpu.matmul %234, %235, %cst_210 {dimension_numbers = #tpu.dot_dimension_numbers<[1], [0], [0], [1], [0, 0, 1, 1], [], []>} : vector<2x64xbf16>, vector<64x256xbf16>, vector<2x256xf32> -> vector<2x256xf32>
    %237 = arith.addf %230, %236 : vector<2x256xf32>
    %238 = vector.extract_strided_slice %206 {offsets = [4, 0], sizes = [1, 64], strides = [1, 1]} : vector<128x64xf32> to vector<1x64xf32>
    %239 = vector.extract_strided_slice %206 {offsets = [20, 0], sizes = [1, 64], strides = [1, 1]} : vector<128x64xf32> to vector<1x64xf32>
    %240 = tpu.concatenate %238, %239 in 0 : vector<1x64xf32>, vector<1x64xf32> -> vector<2x64xf32>
    %241 = arith.truncf %240 : vector<2x64xf32> to vector<2x64xbf16>
    %c256 = arith.constant 256 : index
    %c0_211 = arith.constant 0 : index
    %242 = vector.load %arg11[%c256, %c0_211] : memref<1024x256xbf16, #tpu.memory_space<vmem>>, vector<64x256xbf16>
    %cst_212 = arith.constant dense<0.000000e+00> : vector<2x256xf32>
    %243 = tpu.matmul %241, %242, %cst_212 {dimension_numbers = #tpu.dot_dimension_numbers<[1], [0], [0], [1], [0, 0, 1, 1], [], []>} : vector<2x64xbf16>, vector<64x256xbf16>, vector<2x256xf32> -> vector<2x256xf32>
    %244 = arith.addf %237, %243 : vector<2x256xf32>
    %245 = vector.extract_strided_slice %206 {offsets = [5, 0], sizes = [1, 64], strides = [1, 1]} : vector<128x64xf32> to vector<1x64xf32>
    %246 = vector.extract_strided_slice %206 {offsets = [21, 0], sizes = [1, 64], strides = [1, 1]} : vector<128x64xf32> to vector<1x64xf32>
    %247 = tpu.concatenate %245, %246 in 0 : vector<1x64xf32>, vector<1x64xf32> -> vector<2x64xf32>
    %248 = arith.truncf %247 : vector<2x64xf32> to vector<2x64xbf16>
    %c320 = arith.constant 320 : index
    %c0_213 = arith.constant 0 : index
    %249 = vector.load %arg11[%c320, %c0_213] : memref<1024x256xbf16, #tpu.memory_space<vmem>>, vector<64x256xbf16>
    %cst_214 = arith.constant dense<0.000000e+00> : vector<2x256xf32>
    %250 = tpu.matmul %248, %249, %cst_214 {dimension_numbers = #tpu.dot_dimension_numbers<[1], [0], [0], [1], [0, 0, 1, 1], [], []>} : vector<2x64xbf16>, vector<64x256xbf16>, vector<2x256xf32> -> vector<2x256xf32>
    %251 = arith.addf %244, %250 : vector<2x256xf32>
    %252 = vector.extract_strided_slice %206 {offsets = [6, 0], sizes = [1, 64], strides = [1, 1]} : vector<128x64xf32> to vector<1x64xf32>
    %253 = vector.extract_strided_slice %206 {offsets = [22, 0], sizes = [1, 64], strides = [1, 1]} : vector<128x64xf32> to vector<1x64xf32>
    %254 = tpu.concatenate %252, %253 in 0 : vector<1x64xf32>, vector<1x64xf32> -> vector<2x64xf32>
    %255 = arith.truncf %254 : vector<2x64xf32> to vector<2x64xbf16>
    %c384 = arith.constant 384 : index
    %c0_215 = arith.constant 0 : index
    %256 = vector.load %arg11[%c384, %c0_215] : memref<1024x256xbf16, #tpu.memory_space<vmem>>, vector<64x256xbf16>
    %cst_216 = arith.constant dense<0.000000e+00> : vector<2x256xf32>
    %257 = tpu.matmul %255, %256, %cst_216 {dimension_numbers = #tpu.dot_dimension_numbers<[1], [0], [0], [1], [0, 0, 1, 1], [], []>} : vector<2x64xbf16>, vector<64x256xbf16>, vector<2x256xf32> -> vector<2x256xf32>
    %258 = arith.addf %251, %257 : vector<2x256xf32>
    %259 = vector.extract_strided_slice %206 {offsets = [7, 0], sizes = [1, 64], strides = [1, 1]} : vector<128x64xf32> to vector<1x64xf32>
    %260 = vector.extract_strided_slice %206 {offsets = [23, 0], sizes = [1, 64], strides = [1, 1]} : vector<128x64xf32> to vector<1x64xf32>
    %261 = tpu.concatenate %259, %260 in 0 : vector<1x64xf32>, vector<1x64xf32> -> vector<2x64xf32>
    %262 = arith.truncf %261 : vector<2x64xf32> to vector<2x64xbf16>
    %c448 = arith.constant 448 : index
    %c0_217 = arith.constant 0 : index
    %263 = vector.load %arg11[%c448, %c0_217] : memref<1024x256xbf16, #tpu.memory_space<vmem>>, vector<64x256xbf16>
    %cst_218 = arith.constant dense<0.000000e+00> : vector<2x256xf32>
    %264 = tpu.matmul %262, %263, %cst_218 {dimension_numbers = #tpu.dot_dimension_numbers<[1], [0], [0], [1], [0, 0, 1, 1], [], []>} : vector<2x64xbf16>, vector<64x256xbf16>, vector<2x256xf32> -> vector<2x256xf32>
    %265 = arith.addf %258, %264 : vector<2x256xf32>
    %266 = vector.extract_strided_slice %206 {offsets = [8, 0], sizes = [1, 64], strides = [1, 1]} : vector<128x64xf32> to vector<1x64xf32>
    %267 = vector.extract_strided_slice %206 {offsets = [24, 0], sizes = [1, 64], strides = [1, 1]} : vector<128x64xf32> to vector<1x64xf32>
    %268 = tpu.concatenate %266, %267 in 0 : vector<1x64xf32>, vector<1x64xf32> -> vector<2x64xf32>
    %269 = arith.truncf %268 : vector<2x64xf32> to vector<2x64xbf16>
    %c512_219 = arith.constant 512 : index
    %c0_220 = arith.constant 0 : index
    %270 = vector.load %arg11[%c512_219, %c0_220] : memref<1024x256xbf16, #tpu.memory_space<vmem>>, vector<64x256xbf16>
    %cst_221 = arith.constant dense<0.000000e+00> : vector<2x256xf32>
    %271 = tpu.matmul %269, %270, %cst_221 {dimension_numbers = #tpu.dot_dimension_numbers<[1], [0], [0], [1], [0, 0, 1, 1], [], []>} : vector<2x64xbf16>, vector<64x256xbf16>, vector<2x256xf32> -> vector<2x256xf32>
    %272 = arith.addf %265, %271 : vector<2x256xf32>
    %273 = vector.extract_strided_slice %206 {offsets = [9, 0], sizes = [1, 64], strides = [1, 1]} : vector<128x64xf32> to vector<1x64xf32>
    %274 = vector.extract_strided_slice %206 {offsets = [25, 0], sizes = [1, 64], strides = [1, 1]} : vector<128x64xf32> to vector<1x64xf32>
    %275 = tpu.concatenate %273, %274 in 0 : vector<1x64xf32>, vector<1x64xf32> -> vector<2x64xf32>
    %276 = arith.truncf %275 : vector<2x64xf32> to vector<2x64xbf16>
    %c576 = arith.constant 576 : index
    %c0_222 = arith.constant 0 : index
    %277 = vector.load %arg11[%c576, %c0_222] : memref<1024x256xbf16, #tpu.memory_space<vmem>>, vector<64x256xbf16>
    %cst_223 = arith.constant dense<0.000000e+00> : vector<2x256xf32>
    %278 = tpu.matmul %276, %277, %cst_223 {dimension_numbers = #tpu.dot_dimension_numbers<[1], [0], [0], [1], [0, 0, 1, 1], [], []>} : vector<2x64xbf16>, vector<64x256xbf16>, vector<2x256xf32> -> vector<2x256xf32>
    %279 = arith.addf %272, %278 : vector<2x256xf32>
    %280 = vector.extract_strided_slice %206 {offsets = [10, 0], sizes = [1, 64], strides = [1, 1]} : vector<128x64xf32> to vector<1x64xf32>
    %281 = vector.extract_strided_slice %206 {offsets = [26, 0], sizes = [1, 64], strides = [1, 1]} : vector<128x64xf32> to vector<1x64xf32>
    %282 = tpu.concatenate %280, %281 in 0 : vector<1x64xf32>, vector<1x64xf32> -> vector<2x64xf32>
    %283 = arith.truncf %282 : vector<2x64xf32> to vector<2x64xbf16>
    %c640 = arith.constant 640 : index
    %c0_224 = arith.constant 0 : index
    %284 = vector.load %arg11[%c640, %c0_224] : memref<1024x256xbf16, #tpu.memory_space<vmem>>, vector<64x256xbf16>
    %cst_225 = arith.constant dense<0.000000e+00> : vector<2x256xf32>
    %285 = tpu.matmul %283, %284, %cst_225 {dimension_numbers = #tpu.dot_dimension_numbers<[1], [0], [0], [1], [0, 0, 1, 1], [], []>} : vector<2x64xbf16>, vector<64x256xbf16>, vector<2x256xf32> -> vector<2x256xf32>
    %286 = arith.addf %279, %285 : vector<2x256xf32>
    %287 = vector.extract_strided_slice %206 {offsets = [11, 0], sizes = [1, 64], strides = [1, 1]} : vector<128x64xf32> to vector<1x64xf32>
    %288 = vector.extract_strided_slice %206 {offsets = [27, 0], sizes = [1, 64], strides = [1, 1]} : vector<128x64xf32> to vector<1x64xf32>
    %289 = tpu.concatenate %287, %288 in 0 : vector<1x64xf32>, vector<1x64xf32> -> vector<2x64xf32>
    %290 = arith.truncf %289 : vector<2x64xf32> to vector<2x64xbf16>
    %c704 = arith.constant 704 : index
    %c0_226 = arith.constant 0 : index
    %291 = vector.load %arg11[%c704, %c0_226] : memref<1024x256xbf16, #tpu.memory_space<vmem>>, vector<64x256xbf16>
    %cst_227 = arith.constant dense<0.000000e+00> : vector<2x256xf32>
    %292 = tpu.matmul %290, %291, %cst_227 {dimension_numbers = #tpu.dot_dimension_numbers<[1], [0], [0], [1], [0, 0, 1, 1], [], []>} : vector<2x64xbf16>, vector<64x256xbf16>, vector<2x256xf32> -> vector<2x256xf32>
    %293 = arith.addf %286, %292 : vector<2x256xf32>
    %294 = vector.extract_strided_slice %206 {offsets = [12, 0], sizes = [1, 64], strides = [1, 1]} : vector<128x64xf32> to vector<1x64xf32>
    %295 = vector.extract_strided_slice %206 {offsets = [28, 0], sizes = [1, 64], strides = [1, 1]} : vector<128x64xf32> to vector<1x64xf32>
    %296 = tpu.concatenate %294, %295 in 0 : vector<1x64xf32>, vector<1x64xf32> -> vector<2x64xf32>
    %297 = arith.truncf %296 : vector<2x64xf32> to vector<2x64xbf16>
    %c768 = arith.constant 768 : index
    %c0_228 = arith.constant 0 : index
    %298 = vector.load %arg11[%c768, %c0_228] : memref<1024x256xbf16, #tpu.memory_space<vmem>>, vector<64x256xbf16>
    %cst_229 = arith.constant dense<0.000000e+00> : vector<2x256xf32>
    %299 = tpu.matmul %297, %298, %cst_229 {dimension_numbers = #tpu.dot_dimension_numbers<[1], [0], [0], [1], [0, 0, 1, 1], [], []>} : vector<2x64xbf16>, vector<64x256xbf16>, vector<2x256xf32> -> vector<2x256xf32>
    %300 = arith.addf %293, %299 : vector<2x256xf32>
    %301 = vector.extract_strided_slice %206 {offsets = [13, 0], sizes = [1, 64], strides = [1, 1]} : vector<128x64xf32> to vector<1x64xf32>
    %302 = vector.extract_strided_slice %206 {offsets = [29, 0], sizes = [1, 64], strides = [1, 1]} : vector<128x64xf32> to vector<1x64xf32>
    %303 = tpu.concatenate %301, %302 in 0 : vector<1x64xf32>, vector<1x64xf32> -> vector<2x64xf32>
    %304 = arith.truncf %303 : vector<2x64xf32> to vector<2x64xbf16>
    %c832 = arith.constant 832 : index
    %c0_230 = arith.constant 0 : index
    %305 = vector.load %arg11[%c832, %c0_230] : memref<1024x256xbf16, #tpu.memory_space<vmem>>, vector<64x256xbf16>
    %cst_231 = arith.constant dense<0.000000e+00> : vector<2x256xf32>
    %306 = tpu.matmul %304, %305, %cst_231 {dimension_numbers = #tpu.dot_dimension_numbers<[1], [0], [0], [1], [0, 0, 1, 1], [], []>} : vector<2x64xbf16>, vector<64x256xbf16>, vector<2x256xf32> -> vector<2x256xf32>
    %307 = arith.addf %300, %306 : vector<2x256xf32>
    %308 = vector.extract_strided_slice %206 {offsets = [14, 0], sizes = [1, 64], strides = [1, 1]} : vector<128x64xf32> to vector<1x64xf32>
    %309 = vector.extract_strided_slice %206 {offsets = [30, 0], sizes = [1, 64], strides = [1, 1]} : vector<128x64xf32> to vector<1x64xf32>
    %310 = tpu.concatenate %308, %309 in 0 : vector<1x64xf32>, vector<1x64xf32> -> vector<2x64xf32>
    %311 = arith.truncf %310 : vector<2x64xf32> to vector<2x64xbf16>
    %c896 = arith.constant 896 : index
    %c0_232 = arith.constant 0 : index
    %312 = vector.load %arg11[%c896, %c0_232] : memref<1024x256xbf16, #tpu.memory_space<vmem>>, vector<64x256xbf16>
    %cst_233 = arith.constant dense<0.000000e+00> : vector<2x256xf32>
    %313 = tpu.matmul %311, %312, %cst_233 {dimension_numbers = #tpu.dot_dimension_numbers<[1], [0], [0], [1], [0, 0, 1, 1], [], []>} : vector<2x64xbf16>, vector<64x256xbf16>, vector<2x256xf32> -> vector<2x256xf32>
    %314 = arith.addf %307, %313 : vector<2x256xf32>
    %315 = vector.extract_strided_slice %206 {offsets = [15, 0], sizes = [1, 64], strides = [1, 1]} : vector<128x64xf32> to vector<1x64xf32>
    %316 = vector.extract_strided_slice %206 {offsets = [31, 0], sizes = [1, 64], strides = [1, 1]} : vector<128x64xf32> to vector<1x64xf32>
    %317 = tpu.concatenate %315, %316 in 0 : vector<1x64xf32>, vector<1x64xf32> -> vector<2x64xf32>
    %318 = arith.truncf %317 : vector<2x64xf32> to vector<2x64xbf16>
    %c960 = arith.constant 960 : index
    %c0_234 = arith.constant 0 : index
    %319 = vector.load %arg11[%c960, %c0_234] : memref<1024x256xbf16, #tpu.memory_space<vmem>>, vector<64x256xbf16>
    %cst_235 = arith.constant dense<0.000000e+00> : vector<2x256xf32>
    %320 = tpu.matmul %318, %319, %cst_235 {dimension_numbers = #tpu.dot_dimension_numbers<[1], [0], [0], [1], [0, 0, 1, 1], [], []>} : vector<2x64xbf16>, vector<64x256xbf16>, vector<2x256xf32> -> vector<2x256xf32>
    %321 = arith.addf %314, %320 : vector<2x256xf32>
    %cst_236 = arith.constant 0.000000e+00 : f32
    %322 = vector.broadcast %cst_236 : f32 to vector<2x256xf32>
    %323 = arith.maximumf %321, %322 : vector<2x256xf32>
    %c0_237 = arith.constant 0 : index
    %c0_238 = arith.constant 0 : index
    %324 = vector.load %arg8[%c0_237, %c0_238] : memref<2x256xf32, #tpu.memory_space<vmem>>, vector<2x256xf32>
    tpu.vector_store %arg8[%c0_237, %c0_238], %323 {strides = array<i32>} : memref<2x256xf32, #tpu.memory_space<vmem>>, vector<2x256xf32>,
    return
  }
}

</mosaic_0001>

<llo_original>
// kernel: conv_encoder_forward.1
$region0: #{conv_encoder_forward.1}
  #allocation0 [shape = 'u32[]', space=smem, size = 0x4, offset = 0x4, fixed_abs, tag = 'smem constant byte address 0x4 - core index']
  #allocation1 [shape = 'u32[144,128]{1,0:T(1,128)}', space=vmem, size = 0x12000, scoped, tag = 'internal scratch']
  #allocation2 [shape = 'bf16[16,640]{1,0:T(8,128)(2,1)}', space=vmem, size = 0x5000, scoped, tag = 'scratch operand']
  #allocation3 [shape = 'bf16[32,640]{1,0:T(8,128)(2,1)}', space=vmem, size = 0xa000, scoped, tag = 'scratch operand']
  #allocation4 [shape = 'bf16[1024,256]{1,0:T(8,128)(2,1)}', space=vmem, size = 0x80000, scoped, tag = 'scratch operand']
  #allocation5 [shape = 's32[1]{0}', space=sflag, size = 0x4, scoped, tag = 'scratch operand']
  #allocation8 [shape = 's32[]', space=sflag, size = 0x4, offset = 0, fixed_abs, tag = 'sflag constant byte address 0x0 - dummy sync flag']
  #allocation9 [shape = 's32[]', space=sflag, size = 0x4, offset = 0, fixed_abs, tag = 'sflag constant byte address 0x0 - dummy sync flag']
  #allocation10 [shape = 'u32[]', space=smem, size = 0x4, offset = 0x44, fixed_abs, tag = 'smem constant byte address 0x44 - assertion arg 0']
  #allocation11 [shape = 'u32[]', space=smem, size = 0x4, offset = 0x48, fixed_abs, tag = 'smem constant byte address 0x48 - assertion arg 1']
  %s0 = inlined_call_operand.vmem [shape: bf16[8,640], index: 0, kind: input, shape index: {}]
  %s1 = inlined_call_operand.vmem [shape: f32[2,15], index: 1, kind: input, shape index: {}]
  %s2 = inlined_call_operand.vmem [shape: bf16[8,16,64], index: 2, kind: input, shape index: {}]
  %s3 = inlined_call_operand.vmem [shape: bf16[4,32,64], index: 3, kind: input, shape index: {}]
  %s4 = inlined_call_operand.vmem [shape: bf16[3,64,96], index: 4, kind: input, shape index: {}]
  %s5 = inlined_call_operand.vmem [shape: f32[64,3], index: 5, kind: input, shape index: {}]
  %s6 = inlined_call_operand.vmem [shape: f32[15,256], index: 6, kind: input, shape index: {}]
  %s7 = inlined_call_operand.hbm [shape: bf16[1024,256], index: 7, kind: input, shape index: {}]
  %s8 = inlined_call_operand.hbm [shape: f32[2,256], index: 8, kind: output, shape index: {}]
  %s9 = sld [smem:[#allocation0]]
  $region42: #{conv_encoder_forward.1} parent=0
    _
  %s11 = ssub.s32 1, %s9
  %s12 = scalar_select 0, %s11, %s9
  $region1: #{conv_encoder_forward.1} parent=0
    #allocation6 [shape = 'u8[2048]{0}', space=vmem, size = 0x800, scoped, tag = 'output window, operand 0, single buffered']
    #allocation7 [shape = 's32[1]{0}', space=sflag, size = 0x4, scoped, tag = 'scoped memory for conv_encoder_forward.1']
    %13 = vsyncpa [#allocation7], 0
    // Predicated region
    $region2: #{conv_encoder_forward.1} parent=1 // pred_check
      _
    $region3: #{conv_encoder_forward.1} parent=1 // pred_check_branch
      %15 = sbr.rel (0) target = $region5
    $region4: #{conv_encoder_forward.1} parent=1 // pred_region
      _
    $region5: #{conv_encoder_forward.1} parent=1 // pred_fallthru
      _
    // Predicated region
    $region6: #{conv_encoder_forward.1} parent=1 // pred_check
      _
    $region7: #{conv_encoder_forward.1} parent=1 // pred_check_branch
      %17 = sbr.rel (0) target = $region9
    $region8: #{conv_encoder_forward.1} parent=1 // pred_region
      _
    $region9: #{conv_encoder_forward.1} parent=1 // pred_fallthru
      _
    // Predicated region
    $region10: #{conv_encoder_forward.1} parent=1 // pred_check
      _
    $region11: #{conv_encoder_forward.1} parent=1 // pred_check_branch
      %19 = sbr.rel (0) target = $region13
    $region12: #{conv_encoder_forward.1} parent=1 // pred_region
      _
    $region13: #{conv_encoder_forward.1} parent=1 // pred_fallthru
      _
    // Predicated region
    $region14: #{conv_encoder_forward.1} parent=1 // pred_check
      _
    $region15: #{conv_encoder_forward.1} parent=1 // pred_check_branch
      %21 = sbr.rel (0) target = $region17
    $region16: #{conv_encoder_forward.1} parent=1 // pred_region
      _
    $region17: #{conv_encoder_forward.1} parent=1 // pred_fallthru
      _
    // Predicated region
    $region18: #{conv_encoder_forward.1} parent=1 // pred_check
      _
    $region19: #{conv_encoder_forward.1} parent=1 // pred_check_branch
      %23 = sbr.rel (0) target = $region21
    $region20: #{conv_encoder_forward.1} parent=1 // pred_region
      _
    $region21: #{conv_encoder_forward.1} parent=1 // pred_fallthru
      _
    // Predicated region
    $region22: #{conv_encoder_forward.1} parent=1 // pred_check
      _
    $region23: #{conv_encoder_forward.1} parent=1 // pred_check_branch
      %25 = sbr.rel (0) target = $region25
    $region24: #{conv_encoder_forward.1} parent=1 // pred_region
      _
    $region25: #{conv_encoder_forward.1} parent=1 // pred_fallthru
      _
    // Predicated region
    $region26: #{conv_encoder_forward.1} parent=1 // pred_check
      _
    $region27: #{conv_encoder_forward.1} parent=1 // pred_check_branch
      %27 = sbr.rel (0) target = $region29
    $region28: #{conv_encoder_forward.1} parent=1 // pred_region
      _
    $region29: #{conv_encoder_forward.1} parent=1 // pred_fallthru
      _
    // Predicated region
    $region30: #{conv_encoder_forward.1} parent=1 // pred_check
      _
    $region31: #{conv_encoder_forward.1} parent=1 // pred_check_branch
      %30 = sbr.rel target = $region33
    $region32: #{conv_encoder_forward.1} parent=1 // pred_region
      %31 = sst [smem:[#allocation10]] [#allocation9]
      %32 = sst [smem:[#allocation11]] [#allocation8]
    $region33: #{conv_encoder_forward.1} parent=1 // pred_fallthru
      _
    %34 = shalt.err (0)
    %s36 = sshll.u32 [#allocation4], 4
    %s37 = int_to_ptr.vmem [resolvable:$true] %s36
    %39 = dma.hbm_to_vmem [thread:$0]  %s7, 16384, %s37, [#allocation5]
    %40 = vst [vmem:[#allocation2 + $0x10] sm:$0xf] 0
    %41 = vst [vmem:[#allocation2 + $0x24] sm:$0xf] 0
    %42 = vst [vmem:[#allocation3 + $0x10] sm:$0xf] 0
    %43 = vst [vmem:[#allocation3 + $0x24] sm:$0xf] 0
    %44 = vst [vmem:[#allocation3 + $0x38] sm:$0xf] 0
    %45 = vst [vmem:[#allocation3 + $0x4c] sm:$0xf] 0
    %v46 = vld [vmem:[%s5] sm:$0xff]
    %v47 = vld [vmem:[%s5 + $0x8] sm:$0xff]
    %v48 = vld [vmem:[%s0] sm:$0xff]
    %v49 = vld [vmem:[%s0 + $0x8] sm:$0xff]
    %v50 = vld [vmem:[%s0] sm:$0xff]
    %v51 = vld [vmem:[%s0 + $0x8] sm:$0xff]
    %v52 = vld [vmem:[%s0 + $0x10] sm:$0xf]
    %v55 = vunpack.c.l.b16 %v48
    %v56 = vunpack.c.h.b16 %v48
    %v57 = vunpack.c.l.b16 %v49
    %v58 = vunpack.c.h.b16 %v49
    %v59 = vpack.c.b16 %v55, %v55
    %v60 = vpack.c.b16 %v56, %v56
    %v61 = vpack.c.b16 %v57, %v57
    %v62 = vpack.c.b16 %v58, %v58
    %v66 = vunpack.c.l.b16 %v50
    %v67 = vunpack.c.h.b16 %v50
    %v68 = vunpack.c.l.b16 %v51
    %v69 = vunpack.c.h.b16 %v51
    %v70 = vunpack.c.l.b16 %v52
    %v71 = vpack.c.b16 %v66, %v66
    %v72 = vpack.c.b16 %v67, %v67
    %v73 = vpack.c.b16 %v68, %v68
    %v74 = vpack.c.b16 %v69, %v69
    %v75 = vpack.c.b16 %v70, %v70
    %76 = vrot.lane.b32.xlu0 %v71, 127
    %v77 = vpop.permute.xlu0 %76
    %78 = vrot.lane.b32.xlu0 %v72, 127
    %v79 = vpop.permute.xlu0 %78
    %80 = vrot.lane.b32.xlu0 %v73, 127
    %v81 = vpop.permute.xlu0 %80
    %82 = vrot.lane.b32.xlu0 %v74, 127
    %v83 = vpop.permute.xlu0 %82
    %84 = vrot.lane.b32.xlu0 %v75, 127
    %v85 = vpop.permute.xlu0 %84
    %vm86 = vcmask 1039360
    %v87 = vsel %vm86, %v77, %v79
    %v88 = vsel %vm86, %v79, %v81
    %v89 = vsel %vm86, %v81, %v83
    %v90 = vsel %vm86, %v83, %v85
    %91 = vrot.lane.b32.xlu0 %v71, 126
    %v92 = vpop.permute.xlu0 %91
    %93 = vrot.lane.b32.xlu0 %v72, 126
    %v94 = vpop.permute.xlu0 %93
    %95 = vrot.lane.b32.xlu0 %v73, 126
    %v96 = vpop.permute.xlu0 %95
    %97 = vrot.lane.b32.xlu0 %v74, 126
    %v98 = vpop.permute.xlu0 %97
    %99 = vrot.lane.b32.xlu0 %v75, 126
    %v100 = vpop.permute.xlu0 %99
    %vm101 = vcmask 1031168
    %v102 = vsel %vm101, %v92, %v94
    %v103 = vsel %vm101, %v94, %v96
    %v104 = vsel %vm101, %v96, %v98
    %v105 = vsel %vm101, %v98, %v100
    %106 = vrot.lane.b32.xlu0 %v71, 125
    %v107 = vpop.permute.xlu0 %106
    %108 = vrot.lane.b32.xlu0 %v72, 125
    %v109 = vpop.permute.xlu0 %108
    %110 = vrot.lane.b32.xlu0 %v73, 125
    %v111 = vpop.permute.xlu0 %110
    %112 = vrot.lane.b32.xlu0 %v74, 125
    %v113 = vpop.permute.xlu0 %112
    %114 = vrot.lane.b32.xlu0 %v75, 125
    %v115 = vpop.permute.xlu0 %114
    %vm116 = vcmask 1022976
    %v117 = vsel %vm116, %v107, %v109
    %v118 = vsel %vm116, %v109, %v111
    %v119 = vsel %vm116, %v111, %v113
    %v120 = vsel %vm116, %v113, %v115
    %121 = vrot.lane.b32.xlu0 %v71, 124
    %v122 = vpop.permute.xlu0 %121
    %123 = vrot.lane.b32.xlu0 %v72, 124
    %v124 = vpop.permute.xlu0 %123
    %125 = vrot.lane.b32.xlu0 %v73, 124
    %v126 = vpop.permute.xlu0 %125
    %127 = vrot.lane.b32.xlu0 %v74, 124
    %v128 = vpop.permute.xlu0 %127
    %129 = vrot.lane.b32.xlu0 %v75, 124
    %v130 = vpop.permute.xlu0 %129
    %vm131 = vcmask 1014784
    %v132 = vsel %vm131, %v122, %v124
    %v133 = vsel %vm131, %v124, %v126
    %v134 = vsel %vm131, %v126, %v128
    %v135 = vsel %vm131, %v128, %v130
    %136 = vrot.lane.b32.xlu0 %v71, 123
    %v137 = vpop.permute.xlu0 %136
    %138 = vrot.lane.b32.xlu0 %v72, 123
    %v139 = vpop.permute.xlu0 %138
    %140 = vrot.lane.b32.xlu0 %v73, 123
    %v141 = vpop.permute.xlu0 %140
    %142 = vrot.lane.b32.xlu0 %v74, 123
    %v143 = vpop.permute.xlu0 %142
    %144 = vrot.lane.b32.xlu0 %v75, 123
    %v145 = vpop.permute.xlu0 %144
    %vm146 = vcmask 1006592
    %v147 = vsel %vm146, %v137, %v139
    %v148 = vsel %vm146, %v139, %v141
    %v149 = vsel %vm146, %v141, %v143
    %v150 = vsel %vm146, %v143, %v145
    %151 = vrot.lane.b32.xlu0 %v71, 122
    %v152 = vpop.permute.xlu0 %151
    %153 = vrot.lane.b32.xlu0 %v72, 122
    %v154 = vpop.permute.xlu0 %153
    %155 = vrot.lane.b32.xlu0 %v73, 122
    %v156 = vpop.permute.xlu0 %155
    %157 = vrot.lane.b32.xlu0 %v74, 122
    %v158 = vpop.permute.xlu0 %157
    %159 = vrot.lane.b32.xlu0 %v75, 122
    %v160 = vpop.permute.xlu0 %159
    %vm161 = vcmask 998400
    %v162 = vsel %vm161, %v152, %v154
    %v163 = vsel %vm161, %v154, %v156
    %v164 = vsel %vm161, %v156, %v158
    %v165 = vsel %vm161, %v158, %v160
    %166 = vrot.lane.b32.xlu0 %v71, 121
    %v167 = vpop.permute.xlu0 %166
    %168 = vrot.lane.b32.xlu0 %v72, 121
    %v169 = vpop.permute.xlu0 %168
    %170 = vrot.lane.b32.xlu0 %v73, 121
    %v171 = vpop.permute.xlu0 %170
    %172 = vrot.lane.b32.xlu0 %v74, 121
    %v173 = vpop.permute.xlu0 %172
    %174 = vrot.lane.b32.xlu0 %v75, 121
    %v175 = vpop.permute.xlu0 %174
    %vm176 = vcmask 990208
    %v177 = vsel %vm176, %v167, %v169
    %v178 = vsel %vm176, %v169, %v171
    %v179 = vsel %vm176, %v171, %v173
    %v180 = vsel %vm176, %v173, %v175
    %vm181 = vcmask 1043456
    %v184 = vsel %vm181, %v59, %v87
    %v188 = vsel %vm181, %v60, %v88
    %v192 = vsel %vm181, %v61, %v89
    %v196 = vsel %vm181, %v62, %v90
    %v200 = vsel %vm181, %v102, %v117
    %v204 = vsel %vm181, %v103, %v118
    %v208 = vsel %vm181, %v104, %v119
    %v212 = vsel %vm181, %v105, %v120
    %v216 = vsel %vm181, %v132, %v147
    %v220 = vsel %vm181, %v133, %v148
    %v224 = vsel %vm181, %v134, %v149
    %v228 = vsel %vm181, %v135, %v150
    %v232 = vsel %vm181, %v162, %v177
    %v236 = vsel %vm181, %v163, %v178
    %v240 = vsel %vm181, %v164, %v179
    %v244 = vsel %vm181, %v165, %v180
    %v246 = vld [vmem:[%s2] sm:$0xf]
    %v247 = vld [vmem:[%s2 + $0x4] sm:$0xf]
    %v249 = vsel %vm181, %v71, %v87
    %v251 = vsel %vm181, %v72, %v88
    %v253 = vsel %vm181, %v73, %v89
    %v255 = vsel %vm181, %v74, %v90
    %v258 = vsel %vm181, %v75, %v85
    %v261 = vsel %vm181, %v100, %v115
    %v264 = vsel %vm181, %v130, %v145
    %v267 = vsel %vm181, %v160, %v175
    %s268 = scalar_lea.vmem %s2, 8
    %v269 = vld [vmem:[%s268] sm:$0xf]
    %v270 = vld [vmem:[%s268 + $0x4] sm:$0xf]
    %v273 = vunpack.c.l.b16 %v269
    %v274 = vunpack.c.l.b16 %v270
    %v275 = vpack.c.b16 %v274, %v273
    %296 = vrot.lane.b32.xlu0 %v249, 112
    %v297 = vpop.permute.xlu0 %296
    %298 = vrot.lane.b32.xlu0 %v251, 112
    %v299 = vpop.permute.xlu0 %298
    %300 = vrot.lane.b32.xlu0 %v253, 112
    %v301 = vpop.permute.xlu0 %300
    %302 = vrot.lane.b32.xlu0 %v255, 112
    %v303 = vpop.permute.xlu0 %302
    %304 = vrot.lane.b32.xlu0 %v258, 112
    %v305 = vpop.permute.xlu0 %304
    %306 = vrot.lane.b32.xlu0 %v200, 112
    %v307 = vpop.permute.xlu0 %306
    %308 = vrot.lane.b32.xlu0 %v204, 112
    %v309 = vpop.permute.xlu0 %308
    %310 = vrot.lane.b32.xlu0 %v208, 112
    %v311 = vpop.permute.xlu0 %310
    %312 = vrot.lane.b32.xlu0 %v212, 112
    %v313 = vpop.permute.xlu0 %312
    %314 = vrot.lane.b32.xlu0 %v261, 112
    %v315 = vpop.permute.xlu0 %314
    %316 = vrot.lane.b32.xlu0 %v216, 112
    %v317 = vpop.permute.xlu0 %316
    %318 = vrot.lane.b32.xlu0 %v220, 112
    %v319 = vpop.permute.xlu0 %318
    %320 = vrot.lane.b32.xlu0 %v224, 112
    %v321 = vpop.permute.xlu0 %320
    %322 = vrot.lane.b32.xlu0 %v228, 112
    %v323 = vpop.permute.xlu0 %322
    %324 = vrot.lane.b32.xlu0 %v264, 112
    %v325 = vpop.permute.xlu0 %324
    %326 = vrot.lane.b32.xlu0 %v232, 112
    %v327 = vpop.permute.xlu0 %326
    %328 = vrot.lane.b32.xlu0 %v236, 112
    %v329 = vpop.permute.xlu0 %328
    %330 = vrot.lane.b32.xlu0 %v240, 112
    %v331 = vpop.permute.xlu0 %330
    %332 = vrot.lane.b32.xlu0 %v244, 112
    %v333 = vpop.permute.xlu0 %332
    %334 = vrot.lane.b32.xlu0 %v267, 112
    %v335 = vpop.permute.xlu0 %334
    %vm336 = vcmask 916480
    %v337 = vsel %vm336, %v297, %v299
    %v338 = vsel %vm336, %v299, %v301
    %v339 = vsel %vm336, %v301, %v303
    %v340 = vsel %vm336, %v303, %v305
    %v341 = vsel %vm336, %v307, %v309
    %v342 = vsel %vm336, %v309, %v311
    %v343 = vsel %vm336, %v311, %v313
    %v344 = vsel %vm336, %v313, %v315
    %v345 = vsel %vm336, %v317, %v319
    %v346 = vsel %vm336, %v319, %v321
    %v347 = vsel %vm336, %v321, %v323
    %v348 = vsel %vm336, %v323, %v325
    %v349 = vsel %vm336, %v327, %v329
    %v350 = vsel %vm336, %v329, %v331
    %v351 = vsel %vm336, %v331, %v333
    %v352 = vsel %vm336, %v333, %v335
    %vm369 = vcmask 523264
    %v371 = vsel %vm369, %v275, 0
    %373 = vmatprep.subr.bf16.mxu0 0
    %374 = vmatpush1.bf16.msra.mxu0 0
    %375 = vmatprep.subr.bf16.mxu0 0
    %376 = vmatpush1.bf16.msra.mxu0 0
    %377 = vmatprep.subr.bf16.mxu0 0
    %378 = vmatpush1.bf16.msra.mxu0 0
    %379 = vmatprep.subr.bf16.mxu0 0
    %380 = vmatpush1.bf16.msra.mxu0 0
    %381 = vmatprep.subr.bf16.mxu0 %v350
    %382 = vmatpush1.bf16.msra.mxu0 %v349
    %383 = vmatprep.subr.bf16.mxu0 %v346
    %384 = vmatpush1.bf16.msra.mxu0 %v345
    %385 = vmatprep.subr.bf16.mxu0 %v342
    %386 = vmatpush1.bf16.msra.mxu0 %v341
    %387 = vmatprep.subr.bf16.mxu0 %v338
    %388 = vmatpush1.bf16.msra.mxu0 %v337
    %389 = vmatprep.subr.bf16.mxu0 0
    %390 = vmatpush2.bf16.msra.mxu0 0
    %391 = vmatprep.subr.bf16.mxu0 0
    %392 = vmatpush2.bf16.msra.mxu0 0
    %393 = vmatprep.subr.bf16.mxu0 0
    %394 = vmatpush2.bf16.msra.mxu0 0
    %395 = vmatprep.subr.bf16.mxu0 0
    %396 = vmatpush2.bf16.msra.mxu0 0
    %397 = vmatprep.subr.bf16.mxu0 0
    %398 = vmatpush2.bf16.msra.mxu0 0
    %399 = vmatprep.subr.bf16.mxu0 0
    %400 = vmatpush2.bf16.msra.mxu0 0
    %401 = vmatprep.subr.bf16.mxu0 0
    %402 = vmatpush2.bf16.msra.mxu0 0
    %403 = vmatprep.subr.bf16.mxu0 0
    %404 = vmatpush2.bf16.msra.mxu0 0
    %405 = vmatprep.mubr.bf16.mxu0 0
    %406 = vmatmul.mubr.bf16.gmra.mxu0 %v371
    %v407 = vpop.f32.mrf.mxu0
    %v408 = vadd.f32 0.0, %v407
    %v409 = vpop.f32.mrf.mxu0
    %v410 = vadd.f32 0.0, %v409
    %v411 = vpop.f32.mrf.mxu0
    %v412 = vadd.f32 0.0, %v411
    %v413 = vpop.f32.mrf.mxu0
    %v414 = vadd.f32 0.0, %v413
    %415 = vdwg.mxu0
    %416 = vmatprep.subr.bf16.mxu0 0
    %417 = vmatpush1.bf16.msra.mxu0 0
    %418 = vmatprep.subr.bf16.mxu0 0
    %419 = vmatpush1.bf16.msra.mxu0 0
    %420 = vmatprep.subr.bf16.mxu0 0
    %421 = vmatpush1.bf16.msra.mxu0 0
    %422 = vmatprep.subr.bf16.mxu0 0
    %423 = vmatpush1.bf16.msra.mxu0 0
    %424 = vmatprep.subr.bf16.mxu0 %v352
    %425 = vmatpush1.bf16.msra.mxu0 %v351
    %426 = vmatprep.subr.bf16.mxu0 %v348
    %427 = vmatpush1.bf16.msra.mxu0 %v347
    %428 = vmatprep.subr.bf16.mxu0 %v344
    %429 = vmatpush1.bf16.msra.mxu0 %v343
    %430 = vmatprep.subr.bf16.mxu0 %v340
    %431 = vmatpush1.bf16.msra.mxu0 %v339
    %432 = vmatprep.subr.bf16.mxu0 0
    %433 = vmatpush2.bf16.msra.mxu0 0
    %434 = vmatprep.subr.bf16.mxu0 0
    %435 = vmatpush2.bf16.msra.mxu0 0
    %436 = vmatprep.subr.bf16.mxu0 0
    %437 = vmatpush2.bf16.msra.mxu0 0
    %438 = vmatprep.subr.bf16.mxu0 0
    %439 = vmatpush2.bf16.msra.mxu0 0
    %440 = vmatprep.subr.bf16.mxu0 0
    %441 = vmatpush2.bf16.msra.mxu0 0
    %442 = vmatprep.subr.bf16.mxu0 0
    %443 = vmatpush2.bf16.msra.mxu0 0
    %444 = vmatprep.subr.bf16.mxu0 0
    %445 = vmatpush2.bf16.msra.mxu0 0
    %446 = vmatprep.subr.bf16.mxu0 0
    %447 = vmatpush2.bf16.msra.mxu0 0
    %448 = vmatprep.mubr.bf16.mxu0 0
    %449 = vmatmul.mubr.bf16.gmra.mxu0 %v371
    %v450 = vpop.f32.mrf.mxu0
    %v451 = vadd.f32 0.0, %v450
    %v452 = vpop.f32.mrf.mxu0
    %v453 = vadd.f32 0.0, %v452
    %v454 = vpop.f32.mrf.mxu0
    %v455 = vadd.f32 0.0, %v454
    %v456 = vpop.f32.mrf.mxu0
    %v457 = vadd.f32 0.0, %v456
    %458 = vdwg.mxu0
    %v461 = vunpack.c.l.b16 %v246
    %v462 = vunpack.c.l.b16 %v247
    %v463 = vpack.c.b16 %v462, %v461
    %v465 = vsel %vm369, %v463, 0
    %467 = vmatprep.subr.bf16.mxu0 0
    %468 = vmatpush1.bf16.msra.mxu0 0
    %469 = vmatprep.subr.bf16.mxu0 0
    %470 = vmatpush1.bf16.msra.mxu0 0
    %471 = vmatprep.subr.bf16.mxu0 0
    %472 = vmatpush1.bf16.msra.mxu0 0
    %473 = vmatprep.subr.bf16.mxu0 0
    %474 = vmatpush1.bf16.msra.mxu0 0
    %475 = vmatprep.subr.bf16.mxu0 %v236
    %476 = vmatpush1.bf16.msra.mxu0 %v232
    %477 = vmatprep.subr.bf16.mxu0 %v220
    %478 = vmatpush1.bf16.msra.mxu0 %v216
    %479 = vmatprep.subr.bf16.mxu0 %v204
    %480 = vmatpush1.bf16.msra.mxu0 %v200
    %481 = vmatprep.subr.bf16.mxu0 %v188
    %482 = vmatpush1.bf16.msra.mxu0 %v184
    %483 = vmatprep.subr.bf16.mxu0 0
    %484 = vmatpush2.bf16.msra.mxu0 0
    %485 = vmatprep.subr.bf16.mxu0 0
    %486 = vmatpush2.bf16.msra.mxu0 0
    %487 = vmatprep.subr.bf16.mxu0 0
    %488 = vmatpush2.bf16.msra.mxu0 0
    %489 = vmatprep.subr.bf16.mxu0 0
    %490 = vmatpush2.bf16.msra.mxu0 0
    %491 = vmatprep.subr.bf16.mxu0 0
    %492 = vmatpush2.bf16.msra.mxu0 0
    %493 = vmatprep.subr.bf16.mxu0 0
    %494 = vmatpush2.bf16.msra.mxu0 0
    %495 = vmatprep.subr.bf16.mxu0 0
    %496 = vmatpush2.bf16.msra.mxu0 0
    %497 = vmatprep.subr.bf16.mxu0 0
    %498 = vmatpush2.bf16.msra.mxu0 0
    %499 = vmatprep.mubr.bf16.mxu0 0
    %500 = vmatmul.mubr.bf16.gmra.mxu0 %v465
    %v501 = vpop.f32.mrf.mxu0
    %v502 = vadd.f32 %v408, %v501
    %v503 = vpop.f32.mrf.mxu0
    %v504 = vadd.f32 %v410, %v503
    %v505 = vpop.f32.mrf.mxu0
    %v506 = vadd.f32 %v412, %v505
    %v507 = vpop.f32.mrf.mxu0
    %v508 = vadd.f32 %v414, %v507
    %509 = vdwg.mxu0
    %510 = vmatprep.subr.bf16.mxu0 0
    %511 = vmatpush1.bf16.msra.mxu0 0
    %512 = vmatprep.subr.bf16.mxu0 0
    %513 = vmatpush1.bf16.msra.mxu0 0
    %514 = vmatprep.subr.bf16.mxu0 0
    %515 = vmatpush1.bf16.msra.mxu0 0
    %516 = vmatprep.subr.bf16.mxu0 0
    %517 = vmatpush1.bf16.msra.mxu0 0
    %518 = vmatprep.subr.bf16.mxu0 %v244
    %519 = vmatpush1.bf16.msra.mxu0 %v240
    %520 = vmatprep.subr.bf16.mxu0 %v228
    %521 = vmatpush1.bf16.msra.mxu0 %v224
    %522 = vmatprep.subr.bf16.mxu0 %v212
    %523 = vmatpush1.bf16.msra.mxu0 %v208
    %524 = vmatprep.subr.bf16.mxu0 %v196
    %525 = vmatpush1.bf16.msra.mxu0 %v192
    %526 = vmatprep.subr.bf16.mxu0 0
    %527 = vmatpush2.bf16.msra.mxu0 0
    %528 = vmatprep.subr.bf16.mxu0 0
    %529 = vmatpush2.bf16.msra.mxu0 0
    %530 = vmatprep.subr.bf16.mxu0 0
    %531 = vmatpush2.bf16.msra.mxu0 0
    %532 = vmatprep.subr.bf16.mxu0 0
    %533 = vmatpush2.bf16.msra.mxu0 0
    %534 = vmatprep.subr.bf16.mxu0 0
    %535 = vmatpush2.bf16.msra.mxu0 0
    %536 = vmatprep.subr.bf16.mxu0 0
    %537 = vmatpush2.bf16.msra.mxu0 0
    %538 = vmatprep.subr.bf16.mxu0 0
    %539 = vmatpush2.bf16.msra.mxu0 0
    %540 = vmatprep.subr.bf16.mxu0 0
    %541 = vmatpush2.bf16.msra.mxu0 0
    %542 = vmatprep.mubr.bf16.mxu0 0
    %543 = vmatmul.mubr.bf16.gmra.mxu0 %v465
    %v544 = vpop.f32.mrf.mxu0
    %v545 = vadd.f32 %v451, %v544
    %v546 = vpop.f32.mrf.mxu0
    %v547 = vadd.f32 %v453, %v546
    %v548 = vpop.f32.mrf.mxu0
    %v549 = vadd.f32 %v455, %v548
    %v550 = vpop.f32.mrf.mxu0
    %v551 = vadd.f32 %v457, %v550
    %552 = vdwg.mxu0
    %s553 = scalar_lea.vmem %s2, 16
    %v554 = vld [vmem:[%s553] sm:$0xf]
    %v555 = vld [vmem:[%s553 + $0x4] sm:$0xf]
    %v558 = vunpack.c.l.b16 %v554
    %v559 = vunpack.c.l.b16 %v555
    %v560 = vpack.c.b16 %v559, %v558
    %561 = vrot.lane.b32.xlu0 %v249, 96
    %v562 = vpop.permute.xlu0 %561
    %563 = vrot.lane.b32.xlu0 %v251, 96
    %v564 = vpop.permute.xlu0 %563
    %565 = vrot.lane.b32.xlu0 %v253, 96
    %v566 = vpop.permute.xlu0 %565
    %567 = vrot.lane.b32.xlu0 %v255, 96
    %v568 = vpop.permute.xlu0 %567
    %569 = vrot.lane.b32.xlu0 %v258, 96
    %v570 = vpop.permute.xlu0 %569
    %571 = vrot.lane.b32.xlu0 %v200, 96
    %v572 = vpop.permute.xlu0 %571
    %573 = vrot.lane.b32.xlu0 %v204, 96
    %v574 = vpop.permute.xlu0 %573
    %575 = vrot.lane.b32.xlu0 %v208, 96
    %v576 = vpop.permute.xlu0 %575
    %577 = vrot.lane.b32.xlu0 %v212, 96
    %v578 = vpop.permute.xlu0 %577
    %579 = vrot.lane.b32.xlu0 %v261, 96
    %v580 = vpop.permute.xlu0 %579
    %581 = vrot.lane.b32.xlu0 %v216, 96
    %v582 = vpop.permute.xlu0 %581
    %583 = vrot.lane.b32.xlu0 %v220, 96
    %v584 = vpop.permute.xlu0 %583
    %585 = vrot.lane.b32.xlu0 %v224, 96
    %v586 = vpop.permute.xlu0 %585
    %587 = vrot.lane.b32.xlu0 %v228, 96
    %v588 = vpop.permute.xlu0 %587
    %589 = vrot.lane.b32.xlu0 %v264, 96
    %v590 = vpop.permute.xlu0 %589
    %591 = vrot.lane.b32.xlu0 %v232, 96
    %v592 = vpop.permute.xlu0 %591
    %593 = vrot.lane.b32.xlu0 %v236, 96
    %v594 = vpop.permute.xlu0 %593
    %595 = vrot.lane.b32.xlu0 %v240, 96
    %v596 = vpop.permute.xlu0 %595
    %597 = vrot.lane.b32.xlu0 %v244, 96
    %v598 = vpop.permute.xlu0 %597
    %599 = vrot.lane.b32.xlu0 %v267, 96
    %v600 = vpop.permute.xlu0 %599
    %vm601 = vcmask 785408
    %v602 = vsel %vm601, %v562, %v564
    %v603 = vsel %vm601, %v564, %v566
    %v604 = vsel %vm601, %v566, %v568
    %v605 = vsel %vm601, %v568, %v570
    %v606 = vsel %vm601, %v572, %v574
    %v607 = vsel %vm601, %v574, %v576
    %v608 = vsel %vm601, %v576, %v578
    %v609 = vsel %vm601, %v578, %v580
    %v610 = vsel %vm601, %v582, %v584
    %v611 = vsel %vm601, %v584, %v586
    %v612 = vsel %vm601, %v586, %v588
    %v613 = vsel %vm601, %v588, %v590
    %v614 = vsel %vm601, %v592, %v594
    %v615 = vsel %vm601, %v594, %v596
    %v616 = vsel %vm601, %v596, %v598
    %v617 = vsel %vm601, %v598, %v600
    %v635 = vsel %vm369, %v560, 0
    %637 = vmatprep.subr.bf16.mxu0 0
    %638 = vmatpush1.bf16.msra.mxu0 0
    %639 = vmatprep.subr.bf16.mxu0 0
    %640 = vmatpush1.bf16.msra.mxu0 0
    %641 = vmatprep.subr.bf16.mxu0 0
    %642 = vmatpush1.bf16.msra.mxu0 0
    %643 = vmatprep.subr.bf16.mxu0 0
    %644 = vmatpush1.bf16.msra.mxu0 0
    %645 = vmatprep.subr.bf16.mxu0 %v615
    %646 = vmatpush1.bf16.msra.mxu0 %v614
    %647 = vmatprep.subr.bf16.mxu0 %v611
    %648 = vmatpush1.bf16.msra.mxu0 %v610
    %649 = vmatprep.subr.bf16.mxu0 %v607
    %650 = vmatpush1.bf16.msra.mxu0 %v606
    %651 = vmatprep.subr.bf16.mxu0 %v603
    %652 = vmatpush1.bf16.msra.mxu0 %v602
    %653 = vmatprep.subr.bf16.mxu0 0
    %654 = vmatpush2.bf16.msra.mxu0 0
    %655 = vmatprep.subr.bf16.mxu0 0
    %656 = vmatpush2.bf16.msra.mxu0 0
    %657 = vmatprep.subr.bf16.mxu0 0
    %658 = vmatpush2.bf16.msra.mxu0 0
    %659 = vmatprep.subr.bf16.mxu0 0
    %660 = vmatpush2.bf16.msra.mxu0 0
    %661 = vmatprep.subr.bf16.mxu0 0
    %662 = vmatpush2.bf16.msra.mxu0 0
    %663 = vmatprep.subr.bf16.mxu0 0
    %664 = vmatpush2.bf16.msra.mxu0 0
    %665 = vmatprep.subr.bf16.mxu0 0
    %666 = vmatpush2.bf16.msra.mxu0 0
    %667 = vmatprep.subr.bf16.mxu0 0
    %668 = vmatpush2.bf16.msra.mxu0 0
    %669 = vmatprep.mubr.bf16.mxu0 0
    %670 = vmatmul.mubr.bf16.gmra.mxu0 %v635
    %v671 = vpop.f32.mrf.mxu0
    %v672 = vadd.f32 0.0, %v671
    %v673 = vpop.f32.mrf.mxu0
    %v674 = vadd.f32 0.0, %v673
    %v675 = vpop.f32.mrf.mxu0
    %v676 = vadd.f32 0.0, %v675
    %v677 = vpop.f32.mrf.mxu0
    %v678 = vadd.f32 0.0, %v677
    %679 = vdwg.mxu0
    %680 = vmatprep.subr.bf16.mxu0 0
    %681 = vmatpush1.bf16.msra.mxu0 0
    %682 = vmatprep.subr.bf16.mxu0 0
    %683 = vmatpush1.bf16.msra.mxu0 0
    %684 = vmatprep.subr.bf16.mxu0 0
    %685 = vmatpush1.bf16.msra.mxu0 0
    %686 = vmatprep.subr.bf16.mxu0 0
    %687 = vmatpush1.bf16.msra.mxu0 0
    %688 = vmatprep.subr.bf16.mxu0 %v617
    %689 = vmatpush1.bf16.msra.mxu0 %v616
    %690 = vmatprep.subr.bf16.mxu0 %v613
    %691 = vmatpush1.bf16.msra.mxu0 %v612
    %692 = vmatprep.subr.bf16.mxu0 %v609
    %693 = vmatpush1.bf16.msra.mxu0 %v608
    %694 = vmatprep.subr.bf16.mxu0 %v605
    %695 = vmatpush1.bf16.msra.mxu0 %v604
    %696 = vmatprep.subr.bf16.mxu0 0
    %697 = vmatpush2.bf16.msra.mxu0 0
    %698 = vmatprep.subr.bf16.mxu0 0
    %699 = vmatpush2.bf16.msra.mxu0 0
    %700 = vmatprep.subr.bf16.mxu0 0
    %701 = vmatpush2.bf16.msra.mxu0 0
    %702 = vmatprep.subr.bf16.mxu0 0
    %703 = vmatpush2.bf16.msra.mxu0 0
    %704 = vmatprep.subr.bf16.mxu0 0
    %705 = vmatpush2.bf16.msra.mxu0 0
    %706 = vmatprep.subr.bf16.mxu0 0
    %707 = vmatpush2.bf16.msra.mxu0 0
    %708 = vmatprep.subr.bf16.mxu0 0
    %709 = vmatpush2.bf16.msra.mxu0 0
    %710 = vmatprep.subr.bf16.mxu0 0
    %711 = vmatpush2.bf16.msra.mxu0 0
    %712 = vmatprep.mubr.bf16.mxu0 0
    %713 = vmatmul.mubr.bf16.gmra.mxu0 %v635
    %v714 = vpop.f32.mrf.mxu0
    %v715 = vadd.f32 0.0, %v714
    %v716 = vpop.f32.mrf.mxu0
    %v717 = vadd.f32 0.0, %v716
    %v718 = vpop.f32.mrf.mxu0
    %v719 = vadd.f32 0.0, %v718
    %v720 = vpop.f32.mrf.mxu0
    %v721 = vadd.f32 0.0, %v720
    %722 = vdwg.mxu0
    %v723 = vadd.f32 %v502, %v672
    %v724 = vadd.f32 %v504, %v674
    %v725 = vadd.f32 %v545, %v715
    %v726 = vadd.f32 %v547, %v717
    %v727 = vadd.f32 %v506, %v676
    %v728 = vadd.f32 %v508, %v678
    %v729 = vadd.f32 %v549, %v719
    %v730 = vadd.f32 %v551, %v721
    %s731 = scalar_lea.vmem %s2, 24
    %v732 = vld [vmem:[%s731] sm:$0xf]
    %v733 = vld [vmem:[%s731 + $0x4] sm:$0xf]
    %v736 = vunpack.c.l.b16 %v732
    %v737 = vunpack.c.l.b16 %v733
    %v738 = vpack.c.b16 %v737, %v736
    %739 = vrot.lane.b32.xlu0 %v249, 80
    %v740 = vpop.permute.xlu0 %739
    %741 = vrot.lane.b32.xlu0 %v251, 80
    %v742 = vpop.permute.xlu0 %741
    %743 = vrot.lane.b32.xlu0 %v253, 80
    %v744 = vpop.permute.xlu0 %743
    %745 = vrot.lane.b32.xlu0 %v255, 80
    %v746 = vpop.permute.xlu0 %745
    %747 = vrot.lane.b32.xlu0 %v258, 80
    %v748 = vpop.permute.xlu0 %747
    %749 = vrot.lane.b32.xlu0 %v200, 80
    %v750 = vpop.permute.xlu0 %749
    %751 = vrot.lane.b32.xlu0 %v204, 80
    %v752 = vpop.permute.xlu0 %751
    %753 = vrot.lane.b32.xlu0 %v208, 80
    %v754 = vpop.permute.xlu0 %753
    %755 = vrot.lane.b32.xlu0 %v212, 80
    %v756 = vpop.permute.xlu0 %755
    %757 = vrot.lane.b32.xlu0 %v261, 80
    %v758 = vpop.permute.xlu0 %757
    %759 = vrot.lane.b32.xlu0 %v216, 80
    %v760 = vpop.permute.xlu0 %759
    %761 = vrot.lane.b32.xlu0 %v220, 80
    %v762 = vpop.permute.xlu0 %761
    %763 = vrot.lane.b32.xlu0 %v224, 80
    %v764 = vpop.permute.xlu0 %763
    %765 = vrot.lane.b32.xlu0 %v228, 80
    %v766 = vpop.permute.xlu0 %765
    %767 = vrot.lane.b32.xlu0 %v264, 80
    %v768 = vpop.permute.xlu0 %767
    %769 = vrot.lane.b32.xlu0 %v232, 80
    %v770 = vpop.permute.xlu0 %769
    %771 = vrot.lane.b32.xlu0 %v236, 80
    %v772 = vpop.permute.xlu0 %771
    %773 = vrot.lane.b32.xlu0 %v240, 80
    %v774 = vpop.permute.xlu0 %773
    %775 = vrot.lane.b32.xlu0 %v244, 80
    %v776 = vpop.permute.xlu0 %775
    %777 = vrot.lane.b32.xlu0 %v267, 80
    %v778 = vpop.permute.xlu0 %777
    %vm779 = vcmask 654336
    %v780 = vsel %vm779, %v740, %v742
    %v781 = vsel %vm779, %v742, %v744
    %v782 = vsel %vm779, %v744, %v746
    %v783 = vsel %vm779, %v746, %v748
    %v784 = vsel %vm779, %v750, %v752
    %v785 = vsel %vm779, %v752, %v754
    %v786 = vsel %vm779, %v754, %v756
    %v787 = vsel %vm779, %v756, %v758
    %v788 = vsel %vm779, %v760, %v762
    %v789 = vsel %vm779, %v762, %v764
    %v790 = vsel %vm779, %v764, %v766
    %v791 = vsel %vm779, %v766, %v768
    %v792 = vsel %vm779, %v770, %v772
    %v793 = vsel %vm779, %v772, %v774
    %v794 = vsel %vm779, %v774, %v776
    %v795 = vsel %vm779, %v776, %v778
    %v813 = vsel %vm369, %v738, 0
    %815 = vmatprep.subr.bf16.mxu0 0
    %816 = vmatpush1.bf16.msra.mxu0 0
    %817 = vmatprep.subr.bf16.mxu0 0
    %818 = vmatpush1.bf16.msra.mxu0 0
    %819 = vmatprep.subr.bf16.mxu0 0
    %820 = vmatpush1.bf16.msra.mxu0 0
    %821 = vmatprep.subr.bf16.mxu0 0
    %822 = vmatpush1.bf16.msra.mxu0 0
    %823 = vmatprep.subr.bf16.mxu0 %v793
    %824 = vmatpush1.bf16.msra.mxu0 %v792
    %825 = vmatprep.subr.bf16.mxu0 %v789
    %826 = vmatpush1.bf16.msra.mxu0 %v788
    %827 = vmatprep.subr.bf16.mxu0 %v785
    %828 = vmatpush1.bf16.msra.mxu0 %v784
    %829 = vmatprep.subr.bf16.mxu0 %v781
    %830 = vmatpush1.bf16.msra.mxu0 %v780
    %831 = vmatprep.subr.bf16.mxu0 0
    %832 = vmatpush2.bf16.msra.mxu0 0
    %833 = vmatprep.subr.bf16.mxu0 0
    %834 = vmatpush2.bf16.msra.mxu0 0
    %835 = vmatprep.subr.bf16.mxu0 0
    %836 = vmatpush2.bf16.msra.mxu0 0
    %837 = vmatprep.subr.bf16.mxu0 0
    %838 = vmatpush2.bf16.msra.mxu0 0
    %839 = vmatprep.subr.bf16.mxu0 0
    %840 = vmatpush2.bf16.msra.mxu0 0
    %841 = vmatprep.subr.bf16.mxu0 0
    %842 = vmatpush2.bf16.msra.mxu0 0
    %843 = vmatprep.subr.bf16.mxu0 0
    %844 = vmatpush2.bf16.msra.mxu0 0
    %845 = vmatprep.subr.bf16.mxu0 0
    %846 = vmatpush2.bf16.msra.mxu0 0
    %847 = vmatprep.mubr.bf16.mxu0 0
    %848 = vmatmul.mubr.bf16.gmra.mxu0 %v813
    %v849 = vpop.f32.mrf.mxu0
    %v850 = vadd.f32 0.0, %v849
    %v851 = vpop.f32.mrf.mxu0
    %v852 = vadd.f32 0.0, %v851
    %v853 = vpop.f32.mrf.mxu0
    %v854 = vadd.f32 0.0, %v853
    %v855 = vpop.f32.mrf.mxu0
    %v856 = vadd.f32 0.0, %v855
    %857 = vdwg.mxu0
    %858 = vmatprep.subr.bf16.mxu0 0
    %859 = vmatpush1.bf16.msra.mxu0 0
    %860 = vmatprep.subr.bf16.mxu0 0
    %861 = vmatpush1.bf16.msra.mxu0 0
    %862 = vmatprep.subr.bf16.mxu0 0
    %863 = vmatpush1.bf16.msra.mxu0 0
    %864 = vmatprep.subr.bf16.mxu0 0
    %865 = vmatpush1.bf16.msra.mxu0 0
    %866 = vmatprep.subr.bf16.mxu0 %v795
    %867 = vmatpush1.bf16.msra.mxu0 %v794
    %868 = vmatprep.subr.bf16.mxu0 %v791
    %869 = vmatpush1.bf16.msra.mxu0 %v790
    %870 = vmatprep.subr.bf16.mxu0 %v787
    %871 = vmatpush1.bf16.msra.mxu0 %v786
    %872 = vmatprep.subr.bf16.mxu0 %v783
    %873 = vmatpush1.bf16.msra.mxu0 %v782
    %874 = vmatprep.subr.bf16.mxu0 0
    %875 = vmatpush2.bf16.msra.mxu0 0
    %876 = vmatprep.subr.bf16.mxu0 0
    %877 = vmatpush2.bf16.msra.mxu0 0
    %878 = vmatprep.subr.bf16.mxu0 0
    %879 = vmatpush2.bf16.msra.mxu0 0
    %880 = vmatprep.subr.bf16.mxu0 0
    %881 = vmatpush2.bf16.msra.mxu0 0
    %882 = vmatprep.subr.bf16.mxu0 0
    %883 = vmatpush2.bf16.msra.mxu0 0
    %884 = vmatprep.subr.bf16.mxu0 0
    %885 = vmatpush2.bf16.msra.mxu0 0
    %886 = vmatprep.subr.bf16.mxu0 0
    %887 = vmatpush2.bf16.msra.mxu0 0
    %888 = vmatprep.subr.bf16.mxu0 0
    %889 = vmatpush2.bf16.msra.mxu0 0
    %890 = vmatprep.mubr.bf16.mxu0 0
    %891 = vmatmul.mubr.bf16.gmra.mxu0 %v813
    %v892 = vpop.f32.mrf.mxu0
    %v893 = vadd.f32 0.0, %v892
    %v894 = vpop.f32.mrf.mxu0
    %v895 = vadd.f32 0.0, %v894
    %v896 = vpop.f32.mrf.mxu0
    %v897 = vadd.f32 0.0, %v896
    %v898 = vpop.f32.mrf.mxu0
    %v899 = vadd.f32 0.0, %v898
    %900 = vdwg.mxu0
    %v901 = vadd.f32 %v723, %v850
    %v902 = vadd.f32 %v724, %v852
    %v903 = vadd.f32 %v725, %v893
    %v904 = vadd.f32 %v726, %v895
    %v905 = vadd.f32 %v727, %v854
    %v906 = vadd.f32 %v728, %v856
    %v907 = vadd.f32 %v729, %v897
    %v908 = vadd.f32 %v730, %v899
    %s909 = scalar_lea.vmem %s2, 32
    %v910 = vld [vmem:[%s909] sm:$0xf]
    %v911 = vld [vmem:[%s909 + $0x4] sm:$0xf]
    %v914 = vunpack.c.l.b16 %v910
    %v915 = vunpack.c.l.b16 %v911
    %v916 = vpack.c.b16 %v915, %v914
    %917 = vrot.lane.b32.xlu0 %v249, 64
    %v918 = vpop.permute.xlu0 %917
    %919 = vrot.lane.b32.xlu0 %v251, 64
    %v920 = vpop.permute.xlu0 %919
    %921 = vrot.lane.b32.xlu0 %v253, 64
    %v922 = vpop.permute.xlu0 %921
    %923 = vrot.lane.b32.xlu0 %v255, 64
    %v924 = vpop.permute.xlu0 %923
    %925 = vrot.lane.b32.xlu0 %v258, 64
    %v926 = vpop.permute.xlu0 %925
    %927 = vrot.lane.b32.xlu0 %v200, 64
    %v928 = vpop.permute.xlu0 %927
    %929 = vrot.lane.b32.xlu0 %v204, 64
    %v930 = vpop.permute.xlu0 %929
    %931 = vrot.lane.b32.xlu0 %v208, 64
    %v932 = vpop.permute.xlu0 %931
    %933 = vrot.lane.b32.xlu0 %v212, 64
    %v934 = vpop.permute.xlu0 %933
    %935 = vrot.lane.b32.xlu0 %v261, 64
    %v936 = vpop.permute.xlu0 %935
    %937 = vrot.lane.b32.xlu0 %v216, 64
    %v938 = vpop.permute.xlu0 %937
    %939 = vrot.lane.b32.xlu0 %v220, 64
    %v940 = vpop.permute.xlu0 %939
    %941 = vrot.lane.b32.xlu0 %v224, 64
    %v942 = vpop.permute.xlu0 %941
    %943 = vrot.lane.b32.xlu0 %v228, 64
    %v944 = vpop.permute.xlu0 %943
    %945 = vrot.lane.b32.xlu0 %v264, 64
    %v946 = vpop.permute.xlu0 %945
    %947 = vrot.lane.b32.xlu0 %v232, 64
    %v948 = vpop.permute.xlu0 %947
    %949 = vrot.lane.b32.xlu0 %v236, 64
    %v950 = vpop.permute.xlu0 %949
    %951 = vrot.lane.b32.xlu0 %v240, 64
    %v952 = vpop.permute.xlu0 %951
    %953 = vrot.lane.b32.xlu0 %v244, 64
    %v954 = vpop.permute.xlu0 %953
    %955 = vrot.lane.b32.xlu0 %v267, 64
    %v956 = vpop.permute.xlu0 %955
    %vm957 = vcmask 523264
    %v958 = vsel %vm957, %v918, %v920
    %v959 = vsel %vm957, %v920, %v922
    %v960 = vsel %vm957, %v922, %v924
    %v961 = vsel %vm957, %v924, %v926
    %v962 = vsel %vm957, %v928, %v930
    %v963 = vsel %vm957, %v930, %v932
    %v964 = vsel %vm957, %v932, %v934
    %v965 = vsel %vm957, %v934, %v936
    %v966 = vsel %vm957, %v938, %v940
    %v967 = vsel %vm957, %v940, %v942
    %v968 = vsel %vm957, %v942, %v944
    %v969 = vsel %vm957, %v944, %v946
    %v970 = vsel %vm957, %v948, %v950
    %v971 = vsel %vm957, %v950, %v952
    %v972 = vsel %vm957, %v952, %v954
    %v973 = vsel %vm957, %v954, %v956
    %v991 = vsel %vm369, %v916, 0
    %993 = vmatprep.subr.bf16.mxu0 0
    %994 = vmatpush1.bf16.msra.mxu0 0
    %995 = vmatprep.subr.bf16.mxu0 0
    %996 = vmatpush1.bf16.msra.mxu0 0
    %997 = vmatprep.subr.bf16.mxu0 0
    %998 = vmatpush1.bf16.msra.mxu0 0
    %999 = vmatprep.subr.bf16.mxu0 0
    %1000 = vmatpush1.bf16.msra.mxu0 0
    %1001 = vmatprep.subr.bf16.mxu0 %v971
    %1002 = vmatpush1.bf16.msra.mxu0 %v970
    %1003 = vmatprep.subr.bf16.mxu0 %v967
    %1004 = vmatpush1.bf16.msra.mxu0 %v966
    %1005 = vmatprep.subr.bf16.mxu0 %v963
    %1006 = vmatpush1.bf16.msra.mxu0 %v962
    %1007 = vmatprep.subr.bf16.mxu0 %v959
    %1008 = vmatpush1.bf16.msra.mxu0 %v958
    %1009 = vmatprep.subr.bf16.mxu0 0
    %1010 = vmatpush2.bf16.msra.mxu0 0
    %1011 = vmatprep.subr.bf16.mxu0 0
    %1012 = vmatpush2.bf16.msra.mxu0 0
    %1013 = vmatprep.subr.bf16.mxu0 0
    %1014 = vmatpush2.bf16.msra.mxu0 0
    %1015 = vmatprep.subr.bf16.mxu0 0
    %1016 = vmatpush2.bf16.msra.mxu0 0
    %1017 = vmatprep.subr.bf16.mxu0 0
    %1018 = vmatpush2.bf16.msra.mxu0 0
    %1019 = vmatprep.subr.bf16.mxu0 0
    %1020 = vmatpush2.bf16.msra.mxu0 0
    %1021 = vmatprep.subr.bf16.mxu0 0
    %1022 = vmatpush2.bf16.msra.mxu0 0
    %1023 = vmatprep.subr.bf16.mxu0 0
    %1024 = vmatpush2.bf16.msra.mxu0 0
    %1025 = vmatprep.mubr.bf16.mxu0 0
    %1026 = vmatmul.mubr.bf16.gmra.mxu0 %v991
    %v1027 = vpop.f32.mrf.mxu0
    %v1028 = vadd.f32 0.0, %v1027
    %v1029 = vpop.f32.mrf.mxu0
    %v1030 = vadd.f32 0.0, %v1029
    %v1031 = vpop.f32.mrf.mxu0
    %v1032 = vadd.f32 0.0, %v1031
    %v1033 = vpop.f32.mrf.mxu0
    %v1034 = vadd.f32 0.0, %v1033
    %1035 = vdwg.mxu0
    %1036 = vmatprep.subr.bf16.mxu0 0
    %1037 = vmatpush1.bf16.msra.mxu0 0
    %1038 = vmatprep.subr.bf16.mxu0 0
    %1039 = vmatpush1.bf16.msra.mxu0 0
    %1040 = vmatprep.subr.bf16.mxu0 0
    %1041 = vmatpush1.bf16.msra.mxu0 0
    %1042 = vmatprep.subr.bf16.mxu0 0
    %1043 = vmatpush1.bf16.msra.mxu0 0
    %1044 = vmatprep.subr.bf16.mxu0 %v973
    %1045 = vmatpush1.bf16.msra.mxu0 %v972
    %1046 = vmatprep.subr.bf16.mxu0 %v969
    %1047 = vmatpush1.bf16.msra.mxu0 %v968
    %1048 = vmatprep.subr.bf16.mxu0 %v965
    %1049 = vmatpush1.bf16.msra.mxu0 %v964
    %1050 = vmatprep.subr.bf16.mxu0 %v961
    %1051 = vmatpush1.bf16.msra.mxu0 %v960
    %1052 = vmatprep.subr.bf16.mxu0 0
    %1053 = vmatpush2.bf16.msra.mxu0 0
    %1054 = vmatprep.subr.bf16.mxu0 0
    %1055 = vmatpush2.bf16.msra.mxu0 0
    %1056 = vmatprep.subr.bf16.mxu0 0
    %1057 = vmatpush2.bf16.msra.mxu0 0
    %1058 = vmatprep.subr.bf16.mxu0 0
    %1059 = vmatpush2.bf16.msra.mxu0 0
    %1060 = vmatprep.subr.bf16.mxu0 0
    %1061 = vmatpush2.bf16.msra.mxu0 0
    %1062 = vmatprep.subr.bf16.mxu0 0
    %1063 = vmatpush2.bf16.msra.mxu0 0
    %1064 = vmatprep.subr.bf16.mxu0 0
    %1065 = vmatpush2.bf16.msra.mxu0 0
    %1066 = vmatprep.subr.bf16.mxu0 0
    %1067 = vmatpush2.bf16.msra.mxu0 0
    %1068 = vmatprep.mubr.bf16.mxu0 0
    %1069 = vmatmul.mubr.bf16.gmra.mxu0 %v991
    %v1070 = vpop.f32.mrf.mxu0
    %v1071 = vadd.f32 0.0, %v1070
    %v1072 = vpop.f32.mrf.mxu0
    %v1073 = vadd.f32 0.0, %v1072
    %v1074 = vpop.f32.mrf.mxu0
    %v1075 = vadd.f32 0.0, %v1074
    %v1076 = vpop.f32.mrf.mxu0
    %v1077 = vadd.f32 0.0, %v1076
    %1078 = vdwg.mxu0
    %v1079 = vadd.f32 %v901, %v1028
    %v1080 = vadd.f32 %v902, %v1030
    %v1081 = vadd.f32 %v903, %v1071
    %v1082 = vadd.f32 %v904, %v1073
    %v1083 = vadd.f32 %v905, %v1032
    %v1084 = vadd.f32 %v906, %v1034
    %v1085 = vadd.f32 %v907, %v1075
    %v1086 = vadd.f32 %v908, %v1077
    %s1087 = scalar_lea.vmem %s2, 40
    %v1088 = vld [vmem:[%s1087] sm:$0xf]
    %v1089 = vld [vmem:[%s1087 + $0x4] sm:$0xf]
    %v1092 = vunpack.c.l.b16 %v1088
    %v1093 = vunpack.c.l.b16 %v1089
    %v1094 = vpack.c.b16 %v1093, %v1092
    %1095 = vrot.lane.b32.xlu0 %v249, 48
    %v1096 = vpop.permute.xlu0 %1095
    %1097 = vrot.lane.b32.xlu0 %v251, 48
    %v1098 = vpop.permute.xlu0 %1097
    %1099 = vrot.lane.b32.xlu0 %v253, 48
    %v1100 = vpop.permute.xlu0 %1099
    %1101 = vrot.lane.b32.xlu0 %v255, 48
    %v1102 = vpop.permute.xlu0 %1101
    %1103 = vrot.lane.b32.xlu0 %v258, 48
    %v1104 = vpop.permute.xlu0 %1103
    %1105 = vrot.lane.b32.xlu0 %v200, 48
    %v1106 = vpop.permute.xlu0 %1105
    %1107 = vrot.lane.b32.xlu0 %v204, 48
    %v1108 = vpop.permute.xlu0 %1107
    %1109 = vrot.lane.b32.xlu0 %v208, 48
    %v1110 = vpop.permute.xlu0 %1109
    %1111 = vrot.lane.b32.xlu0 %v212, 48
    %v1112 = vpop.permute.xlu0 %1111
    %1113 = vrot.lane.b32.xlu0 %v261, 48
    %v1114 = vpop.permute.xlu0 %1113
    %1115 = vrot.lane.b32.xlu0 %v216, 48
    %v1116 = vpop.permute.xlu0 %1115
    %1117 = vrot.lane.b32.xlu0 %v220, 48
    %v1118 = vpop.permute.xlu0 %1117
    %1119 = vrot.lane.b32.xlu0 %v224, 48
    %v1120 = vpop.permute.xlu0 %1119
    %1121 = vrot.lane.b32.xlu0 %v228, 48
    %v1122 = vpop.permute.xlu0 %1121
    %1123 = vrot.lane.b32.xlu0 %v264, 48
    %v1124 = vpop.permute.xlu0 %1123
    %1125 = vrot.lane.b32.xlu0 %v232, 48
    %v1126 = vpop.permute.xlu0 %1125
    %1127 = vrot.lane.b32.xlu0 %v236, 48
    %v1128 = vpop.permute.xlu0 %1127
    %1129 = vrot.lane.b32.xlu0 %v240, 48
    %v1130 = vpop.permute.xlu0 %1129
    %1131 = vrot.lane.b32.xlu0 %v244, 48
    %v1132 = vpop.permute.xlu0 %1131
    %1133 = vrot.lane.b32.xlu0 %v267, 48
    %v1134 = vpop.permute.xlu0 %1133
    %vm1135 = vcmask 392192
    %v1136 = vsel %vm1135, %v1096, %v1098
    %v1137 = vsel %vm1135, %v1098, %v1100
    %v1138 = vsel %vm1135, %v1100, %v1102
    %v1139 = vsel %vm1135, %v1102, %v1104
    %v1140 = vsel %vm1135, %v1106, %v1108
    %v1141 = vsel %vm1135, %v1108, %v1110
    %v1142 = vsel %vm1135, %v1110, %v1112
    %v1143 = vsel %vm1135, %v1112, %v1114
    %v1144 = vsel %vm1135, %v1116, %v1118
    %v1145 = vsel %vm1135, %v1118, %v1120
    %v1146 = vsel %vm1135, %v1120, %v1122
    %v1147 = vsel %vm1135, %v1122, %v1124
    %v1148 = vsel %vm1135, %v1126, %v1128
    %v1149 = vsel %vm1135, %v1128, %v1130
    %v1150 = vsel %vm1135, %v1130, %v1132
    %v1151 = vsel %vm1135, %v1132, %v1134
    %v1169 = vsel %vm369, %v1094, 0
    %1171 = vmatprep.subr.bf16.mxu0 0
    %1172 = vmatpush1.bf16.msra.mxu0 0
    %1173 = vmatprep.subr.bf16.mxu0 0
    %1174 = vmatpush1.bf16.msra.mxu0 0
    %1175 = vmatprep.subr.bf16.mxu0 0
    %1176 = vmatpush1.bf16.msra.mxu0 0
    %1177 = vmatprep.subr.bf16.mxu0 0
    %1178 = vmatpush1.bf16.msra.mxu0 0
    %1179 = vmatprep.subr.bf16.mxu0 %v1149
    %1180 = vmatpush1.bf16.msra.mxu0 %v1148
    %1181 = vmatprep.subr.bf16.mxu0 %v1145
    %1182 = vmatpush1.bf16.msra.mxu0 %v1144
    %1183 = vmatprep.subr.bf16.mxu0 %v1141
    %1184 = vmatpush1.bf16.msra.mxu0 %v1140
    %1185 = vmatprep.subr.bf16.mxu0 %v1137
    %1186 = vmatpush1.bf16.msra.mxu0 %v1136
    %1187 = vmatprep.subr.bf16.mxu0 0
    %1188 = vmatpush2.bf16.msra.mxu0 0
    %1189 = vmatprep.subr.bf16.mxu0 0
    %1190 = vmatpush2.bf16.msra.mxu0 0
    %1191 = vmatprep.subr.bf16.mxu0 0
    %1192 = vmatpush2.bf16.msra.mxu0 0
    %1193 = vmatprep.subr.bf16.mxu0 0
    %1194 = vmatpush2.bf16.msra.mxu0 0
    %1195 = vmatprep.subr.bf16.mxu0 0
    %1196 = vmatpush2.bf16.msra.mxu0 0
    %1197 = vmatprep.subr.bf16.mxu0 0
    %1198 = vmatpush2.bf16.msra.mxu0 0
    %1199 = vmatprep.subr.bf16.mxu0 0
    %1200 = vmatpush2.bf16.msra.mxu0 0
    %1201 = vmatprep.subr.bf16.mxu0 0
    %1202 = vmatpush2.bf16.msra.mxu0 0
    %1203 = vmatprep.mubr.bf16.mxu0 0
    %1204 = vmatmul.mubr.bf16.gmra.mxu0 %v1169
    %v1205 = vpop.f32.mrf.mxu0
    %v1206 = vadd.f32 0.0, %v1205
    %v1207 = vpop.f32.mrf.mxu0
    %v1208 = vadd.f32 0.0, %v1207
    %v1209 = vpop.f32.mrf.mxu0
    %v1210 = vadd.f32 0.0, %v1209
    %v1211 = vpop.f32.mrf.mxu0
    %v1212 = vadd.f32 0.0, %v1211
    %1213 = vdwg.mxu0
    %1214 = vmatprep.subr.bf16.mxu0 0
    %1215 = vmatpush1.bf16.msra.mxu0 0
    %1216 = vmatprep.subr.bf16.mxu0 0
    %1217 = vmatpush1.bf16.msra.mxu0 0
    %1218 = vmatprep.subr.bf16.mxu0 0
    %1219 = vmatpush1.bf16.msra.mxu0 0
    %1220 = vmatprep.subr.bf16.mxu0 0
    %1221 = vmatpush1.bf16.msra.mxu0 0
    %1222 = vmatprep.subr.bf16.mxu0 %v1151
    %1223 = vmatpush1.bf16.msra.mxu0 %v1150
    %1224 = vmatprep.subr.bf16.mxu0 %v1147
    %1225 = vmatpush1.bf16.msra.mxu0 %v1146
    %1226 = vmatprep.subr.bf16.mxu0 %v1143
    %1227 = vmatpush1.bf16.msra.mxu0 %v1142
    %1228 = vmatprep.subr.bf16.mxu0 %v1139
    %1229 = vmatpush1.bf16.msra.mxu0 %v1138
    %1230 = vmatprep.subr.bf16.mxu0 0
    %1231 = vmatpush2.bf16.msra.mxu0 0
    %1232 = vmatprep.subr.bf16.mxu0 0
    %1233 = vmatpush2.bf16.msra.mxu0 0
    %1234 = vmatprep.subr.bf16.mxu0 0
    %1235 = vmatpush2.bf16.msra.mxu0 0
    %1236 = vmatprep.subr.bf16.mxu0 0
    %1237 = vmatpush2.bf16.msra.mxu0 0
    %1238 = vmatprep.subr.bf16.mxu0 0
    %1239 = vmatpush2.bf16.msra.mxu0 0
    %1240 = vmatprep.subr.bf16.mxu0 0
    %1241 = vmatpush2.bf16.msra.mxu0 0
    %1242 = vmatprep.subr.bf16.mxu0 0
    %1243 = vmatpush2.bf16.msra.mxu0 0
    %1244 = vmatprep.subr.bf16.mxu0 0
    %1245 = vmatpush2.bf16.msra.mxu0 0
    %1246 = vmatprep.mubr.bf16.mxu0 0
    %1247 = vmatmul.mubr.bf16.gmra.mxu0 %v1169
    %v1248 = vpop.f32.mrf.mxu0
    %v1249 = vadd.f32 0.0, %v1248
    %v1250 = vpop.f32.mrf.mxu0
    %v1251 = vadd.f32 0.0, %v1250
    %v1252 = vpop.f32.mrf.mxu0
    %v1253 = vadd.f32 0.0, %v1252
    %v1254 = vpop.f32.mrf.mxu0
    %v1255 = vadd.f32 0.0, %v1254
    %1256 = vdwg.mxu0
    %v1257 = vadd.f32 %v1079, %v1206
    %v1258 = vadd.f32 %v1080, %v1208
    %v1259 = vadd.f32 %v1081, %v1249
    %v1260 = vadd.f32 %v1082, %v1251
    %v1261 = vadd.f32 %v1083, %v1210
    %v1262 = vadd.f32 %v1084, %v1212
    %v1263 = vadd.f32 %v1085, %v1253
    %v1264 = vadd.f32 %v1086, %v1255
    %s1265 = scalar_lea.vmem %s2, 48
    %v1266 = vld [vmem:[%s1265] sm:$0xf]
    %v1267 = vld [vmem:[%s1265 + $0x4] sm:$0xf]
    %v1270 = vunpack.c.l.b16 %v1266
    %v1271 = vunpack.c.l.b16 %v1267
    %v1272 = vpack.c.b16 %v1271, %v1270
    %1273 = vrot.lane.b32.xlu0 %v249, 32
    %v1274 = vpop.permute.xlu0 %1273
    %1275 = vrot.lane.b32.xlu0 %v251, 32
    %v1276 = vpop.permute.xlu0 %1275
    %1277 = vrot.lane.b32.xlu0 %v253, 32
    %v1278 = vpop.permute.xlu0 %1277
    %1279 = vrot.lane.b32.xlu0 %v255, 32
    %v1280 = vpop.permute.xlu0 %1279
    %1281 = vrot.lane.b32.xlu0 %v258, 32
    %v1282 = vpop.permute.xlu0 %1281
    %1283 = vrot.lane.b32.xlu0 %v200, 32
    %v1284 = vpop.permute.xlu0 %1283
    %1285 = vrot.lane.b32.xlu0 %v204, 32
    %v1286 = vpop.permute.xlu0 %1285
    %1287 = vrot.lane.b32.xlu0 %v208, 32
    %v1288 = vpop.permute.xlu0 %1287
    %1289 = vrot.lane.b32.xlu0 %v212, 32
    %v1290 = vpop.permute.xlu0 %1289
    %1291 = vrot.lane.b32.xlu0 %v261, 32
    %v1292 = vpop.permute.xlu0 %1291
    %1293 = vrot.lane.b32.xlu0 %v216, 32
    %v1294 = vpop.permute.xlu0 %1293
    %1295 = vrot.lane.b32.xlu0 %v220, 32
    %v1296 = vpop.permute.xlu0 %1295
    %1297 = vrot.lane.b32.xlu0 %v224, 32
    %v1298 = vpop.permute.xlu0 %1297
    %1299 = vrot.lane.b32.xlu0 %v228, 32
    %v1300 = vpop.permute.xlu0 %1299
    %1301 = vrot.lane.b32.xlu0 %v264, 32
    %v1302 = vpop.permute.xlu0 %1301
    %1303 = vrot.lane.b32.xlu0 %v232, 32
    %v1304 = vpop.permute.xlu0 %1303
    %1305 = vrot.lane.b32.xlu0 %v236, 32
    %v1306 = vpop.permute.xlu0 %1305
    %1307 = vrot.lane.b32.xlu0 %v240, 32
    %v1308 = vpop.permute.xlu0 %1307
    %1309 = vrot.lane.b32.xlu0 %v244, 32
    %v1310 = vpop.permute.xlu0 %1309
    %1311 = vrot.lane.b32.xlu0 %v267, 32
    %v1312 = vpop.permute.xlu0 %1311
    %vm1313 = vcmask 261120
    %v1314 = vsel %vm1313, %v1274, %v1276
    %v1315 = vsel %vm1313, %v1276, %v1278
    %v1316 = vsel %vm1313, %v1278, %v1280
    %v1317 = vsel %vm1313, %v1280, %v1282
    %v1318 = vsel %vm1313, %v1284, %v1286
    %v1319 = vsel %vm1313, %v1286, %v1288
    %v1320 = vsel %vm1313, %v1288, %v1290
    %v1321 = vsel %vm1313, %v1290, %v1292
    %v1322 = vsel %vm1313, %v1294, %v1296
    %v1323 = vsel %vm1313, %v1296, %v1298
    %v1324 = vsel %vm1313, %v1298, %v1300
    %v1325 = vsel %vm1313, %v1300, %v1302
    %v1326 = vsel %vm1313, %v1304, %v1306
    %v1327 = vsel %vm1313, %v1306, %v1308
    %v1328 = vsel %vm1313, %v1308, %v1310
    %v1329 = vsel %vm1313, %v1310, %v1312
    %v1347 = vsel %vm369, %v1272, 0
    %1349 = vmatprep.subr.bf16.mxu0 0
    %1350 = vmatpush1.bf16.msra.mxu0 0
    %1351 = vmatprep.subr.bf16.mxu0 0
    %1352 = vmatpush1.bf16.msra.mxu0 0
    %1353 = vmatprep.subr.bf16.mxu0 0
    %1354 = vmatpush1.bf16.msra.mxu0 0
    %1355 = vmatprep.subr.bf16.mxu0 0
    %1356 = vmatpush1.bf16.msra.mxu0 0
    %1357 = vmatprep.subr.bf16.mxu0 %v1327
    %1358 = vmatpush1.bf16.msra.mxu0 %v1326
    %1359 = vmatprep.subr.bf16.mxu0 %v1323
    %1360 = vmatpush1.bf16.msra.mxu0 %v1322
    %1361 = vmatprep.subr.bf16.mxu0 %v1319
    %1362 = vmatpush1.bf16.msra.mxu0 %v1318
    %1363 = vmatprep.subr.bf16.mxu0 %v1315
    %1364 = vmatpush1.bf16.msra.mxu0 %v1314
    %1365 = vmatprep.subr.bf16.mxu0 0
    %1366 = vmatpush2.bf16.msra.mxu0 0
    %1367 = vmatprep.subr.bf16.mxu0 0
    %1368 = vmatpush2.bf16.msra.mxu0 0
    %1369 = vmatprep.subr.bf16.mxu0 0
    %1370 = vmatpush2.bf16.msra.mxu0 0
    %1371 = vmatprep.subr.bf16.mxu0 0
    %1372 = vmatpush2.bf16.msra.mxu0 0
    %1373 = vmatprep.subr.bf16.mxu0 0
    %1374 = vmatpush2.bf16.msra.mxu0 0
    %1375 = vmatprep.subr.bf16.mxu0 0
    %1376 = vmatpush2.bf16.msra.mxu0 0
    %1377 = vmatprep.subr.bf16.mxu0 0
    %1378 = vmatpush2.bf16.msra.mxu0 0
    %1379 = vmatprep.subr.bf16.mxu0 0
    %1380 = vmatpush2.bf16.msra.mxu0 0
    %1381 = vmatprep.mubr.bf16.mxu0 0
    %1382 = vmatmul.mubr.bf16.gmra.mxu0 %v1347
    %v1383 = vpop.f32.mrf.mxu0
    %v1384 = vadd.f32 0.0, %v1383
    %v1385 = vpop.f32.mrf.mxu0
    %v1386 = vadd.f32 0.0, %v1385
    %v1387 = vpop.f32.mrf.mxu0
    %v1388 = vadd.f32 0.0, %v1387
    %v1389 = vpop.f32.mrf.mxu0
    %v1390 = vadd.f32 0.0, %v1389
    %1391 = vdwg.mxu0
    %1392 = vmatprep.subr.bf16.mxu0 0
    %1393 = vmatpush1.bf16.msra.mxu0 0
    %1394 = vmatprep.subr.bf16.mxu0 0
    %1395 = vmatpush1.bf16.msra.mxu0 0
    %1396 = vmatprep.subr.bf16.mxu0 0
    %1397 = vmatpush1.bf16.msra.mxu0 0
    %1398 = vmatprep.subr.bf16.mxu0 0
    %1399 = vmatpush1.bf16.msra.mxu0 0
    %1400 = vmatprep.subr.bf16.mxu0 %v1329
    %1401 = vmatpush1.bf16.msra.mxu0 %v1328
    %1402 = vmatprep.subr.bf16.mxu0 %v1325
    %1403 = vmatpush1.bf16.msra.mxu0 %v1324
    %1404 = vmatprep.subr.bf16.mxu0 %v1321
    %1405 = vmatpush1.bf16.msra.mxu0 %v1320
    %1406 = vmatprep.subr.bf16.mxu0 %v1317
    %1407 = vmatpush1.bf16.msra.mxu0 %v1316
    %1408 = vmatprep.subr.bf16.mxu0 0
    %1409 = vmatpush2.bf16.msra.mxu0 0
    %1410 = vmatprep.subr.bf16.mxu0 0
    %1411 = vmatpush2.bf16.msra.mxu0 0
    %1412 = vmatprep.subr.bf16.mxu0 0
    %1413 = vmatpush2.bf16.msra.mxu0 0
    %1414 = vmatprep.subr.bf16.mxu0 0
    %1415 = vmatpush2.bf16.msra.mxu0 0
    %1416 = vmatprep.subr.bf16.mxu0 0
    %1417 = vmatpush2.bf16.msra.mxu0 0
    %1418 = vmatprep.subr.bf16.mxu0 0
    %1419 = vmatpush2.bf16.msra.mxu0 0
    %1420 = vmatprep.subr.bf16.mxu0 0
    %1421 = vmatpush2.bf16.msra.mxu0 0
    %1422 = vmatprep.subr.bf16.mxu0 0
    %1423 = vmatpush2.bf16.msra.mxu0 0
    %1424 = vmatprep.mubr.bf16.mxu0 0
    %1425 = vmatmul.mubr.bf16.gmra.mxu0 %v1347
    %v1426 = vpop.f32.mrf.mxu0
    %v1427 = vadd.f32 0.0, %v1426
    %v1428 = vpop.f32.mrf.mxu0
    %v1429 = vadd.f32 0.0, %v1428
    %v1430 = vpop.f32.mrf.mxu0
    %v1431 = vadd.f32 0.0, %v1430
    %v1432 = vpop.f32.mrf.mxu0
    %v1433 = vadd.f32 0.0, %v1432
    %1434 = vdwg.mxu0
    %v1435 = vadd.f32 %v1257, %v1384
    %v1436 = vadd.f32 %v1258, %v1386
    %v1437 = vadd.f32 %v1259, %v1427
    %v1438 = vadd.f32 %v1260, %v1429
    %v1439 = vadd.f32 %v1261, %v1388
    %v1440 = vadd.f32 %v1262, %v1390
    %v1441 = vadd.f32 %v1263, %v1431
    %v1442 = vadd.f32 %v1264, %v1433
    %s1443 = scalar_lea.vmem %s2, 56
    %v1444 = vld [vmem:[%s1443] sm:$0xf]
    %v1445 = vld [vmem:[%s1443 + $0x4] sm:$0xf]
    %v1448 = vunpack.c.l.b16 %v1444
    %v1449 = vunpack.c.l.b16 %v1445
    %v1450 = vpack.c.b16 %v1449, %v1448
    %1451 = vrot.lane.b32.xlu0 %v249, 16
    %v1452 = vpop.permute.xlu0 %1451
    %1453 = vrot.lane.b32.xlu0 %v251, 16
    %v1454 = vpop.permute.xlu0 %1453
    %1455 = vrot.lane.b32.xlu0 %v253, 16
    %v1456 = vpop.permute.xlu0 %1455
    %1457 = vrot.lane.b32.xlu0 %v255, 16
    %v1458 = vpop.permute.xlu0 %1457
    %1459 = vrot.lane.b32.xlu0 %v258, 16
    %v1460 = vpop.permute.xlu0 %1459
    %1461 = vrot.lane.b32.xlu0 %v200, 16
    %v1462 = vpop.permute.xlu0 %1461
    %1463 = vrot.lane.b32.xlu0 %v204, 16
    %v1464 = vpop.permute.xlu0 %1463
    %1465 = vrot.lane.b32.xlu0 %v208, 16
    %v1466 = vpop.permute.xlu0 %1465
    %1467 = vrot.lane.b32.xlu0 %v212, 16
    %v1468 = vpop.permute.xlu0 %1467
    %1469 = vrot.lane.b32.xlu0 %v261, 16
    %v1470 = vpop.permute.xlu0 %1469
    %1471 = vrot.lane.b32.xlu0 %v216, 16
    %v1472 = vpop.permute.xlu0 %1471
    %1473 = vrot.lane.b32.xlu0 %v220, 16
    %v1474 = vpop.permute.xlu0 %1473
    %1475 = vrot.lane.b32.xlu0 %v224, 16
    %v1476 = vpop.permute.xlu0 %1475
    %1477 = vrot.lane.b32.xlu0 %v228, 16
    %v1478 = vpop.permute.xlu0 %1477
    %1479 = vrot.lane.b32.xlu0 %v264, 16
    %v1480 = vpop.permute.xlu0 %1479
    %1481 = vrot.lane.b32.xlu0 %v232, 16
    %v1482 = vpop.permute.xlu0 %1481
    %1483 = vrot.lane.b32.xlu0 %v236, 16
    %v1484 = vpop.permute.xlu0 %1483
    %1485 = vrot.lane.b32.xlu0 %v240, 16
    %v1486 = vpop.permute.xlu0 %1485
    %1487 = vrot.lane.b32.xlu0 %v244, 16
    %v1488 = vpop.permute.xlu0 %1487
    %1489 = vrot.lane.b32.xlu0 %v267, 16
    %v1490 = vpop.permute.xlu0 %1489
    %vm1491 = vcmask 130048
    %v1492 = vsel %vm1491, %v1452, %v1454
    %v1493 = vsel %vm1491, %v1454, %v1456
    %v1494 = vsel %vm1491, %v1456, %v1458
    %v1495 = vsel %vm1491, %v1458, %v1460
    %v1496 = vsel %vm1491, %v1462, %v1464
    %v1497 = vsel %vm1491, %v1464, %v1466
    %v1498 = vsel %vm1491, %v1466, %v1468
    %v1499 = vsel %vm1491, %v1468, %v1470
    %v1500 = vsel %vm1491, %v1472, %v1474
    %v1501 = vsel %vm1491, %v1474, %v1476
    %v1502 = vsel %vm1491, %v1476, %v1478
    %v1503 = vsel %vm1491, %v1478, %v1480
    %v1504 = vsel %vm1491, %v1482, %v1484
    %v1505 = vsel %vm1491, %v1484, %v1486
    %v1506 = vsel %vm1491, %v1486, %v1488
    %v1507 = vsel %vm1491, %v1488, %v1490
    %v1525 = vsel %vm369, %v1450, 0
    %1527 = vmatprep.subr.bf16.mxu0 0
    %1528 = vmatpush1.bf16.msra.mxu0 0
    %1529 = vmatprep.subr.bf16.mxu0 0
    %1530 = vmatpush1.bf16.msra.mxu0 0
    %1531 = vmatprep.subr.bf16.mxu0 0
    %1532 = vmatpush1.bf16.msra.mxu0 0
    %1533 = vmatprep.subr.bf16.mxu0 0
    %1534 = vmatpush1.bf16.msra.mxu0 0
    %1535 = vmatprep.subr.bf16.mxu0 %v1505
    %1536 = vmatpush1.bf16.msra.mxu0 %v1504
    %1537 = vmatprep.subr.bf16.mxu0 %v1501
    %1538 = vmatpush1.bf16.msra.mxu0 %v1500
    %1539 = vmatprep.subr.bf16.mxu0 %v1497
    %1540 = vmatpush1.bf16.msra.mxu0 %v1496
    %1541 = vmatprep.subr.bf16.mxu0 %v1493
    %1542 = vmatpush1.bf16.msra.mxu0 %v1492
    %1543 = vmatprep.subr.bf16.mxu0 0
    %1544 = vmatpush2.bf16.msra.mxu0 0
    %1545 = vmatprep.subr.bf16.mxu0 0
    %1546 = vmatpush2.bf16.msra.mxu0 0
    %1547 = vmatprep.subr.bf16.mxu0 0
    %1548 = vmatpush2.bf16.msra.mxu0 0
    %1549 = vmatprep.subr.bf16.mxu0 0
    %1550 = vmatpush2.bf16.msra.mxu0 0
    %1551 = vmatprep.subr.bf16.mxu0 0
    %1552 = vmatpush2.bf16.msra.mxu0 0
    %1553 = vmatprep.subr.bf16.mxu0 0
    %1554 = vmatpush2.bf16.msra.mxu0 0
    %1555 = vmatprep.subr.bf16.mxu0 0
    %1556 = vmatpush2.bf16.msra.mxu0 0
    %1557 = vmatprep.subr.bf16.mxu0 0
    %1558 = vmatpush2.bf16.msra.mxu0 0
    %1559 = vmatprep.mubr.bf16.mxu0 0
    %1560 = vmatmul.mubr.bf16.gmra.mxu0 %v1525
    %v1561 = vpop.f32.mrf.mxu0
    %v1562 = vadd.f32 0.0, %v1561
    %v1563 = vpop.f32.mrf.mxu0
    %v1564 = vadd.f32 0.0, %v1563
    %v1565 = vpop.f32.mrf.mxu0
    %v1566 = vadd.f32 0.0, %v1565
    %v1567 = vpop.f32.mrf.mxu0
    %v1568 = vadd.f32 0.0, %v1567
    %1569 = vdwg.mxu0
    %1570 = vmatprep.subr.bf16.mxu0 0
    %1571 = vmatpush1.bf16.msra.mxu0 0
    %1572 = vmatprep.subr.bf16.mxu0 0
    %1573 = vmatpush1.bf16.msra.mxu0 0
    %1574 = vmatprep.subr.bf16.mxu0 0
    %1575 = vmatpush1.bf16.msra.mxu0 0
    %1576 = vmatprep.subr.bf16.mxu0 0
    %1577 = vmatpush1.bf16.msra.mxu0 0
    %1578 = vmatprep.subr.bf16.mxu0 %v1507
    %1579 = vmatpush1.bf16.msra.mxu0 %v1506
    %1580 = vmatprep.subr.bf16.mxu0 %v1503
    %1581 = vmatpush1.bf16.msra.mxu0 %v1502
    %1582 = vmatprep.subr.bf16.mxu0 %v1499
    %1583 = vmatpush1.bf16.msra.mxu0 %v1498
    %1584 = vmatprep.subr.bf16.mxu0 %v1495
    %1585 = vmatpush1.bf16.msra.mxu0 %v1494
    %1586 = vmatprep.subr.bf16.mxu0 0
    %1587 = vmatpush2.bf16.msra.mxu0 0
    %1588 = vmatprep.subr.bf16.mxu0 0
    %1589 = vmatpush2.bf16.msra.mxu0 0
    %1590 = vmatprep.subr.bf16.mxu0 0
    %1591 = vmatpush2.bf16.msra.mxu0 0
    %1592 = vmatprep.subr.bf16.mxu0 0
    %1593 = vmatpush2.bf16.msra.mxu0 0
    %1594 = vmatprep.subr.bf16.mxu0 0
    %1595 = vmatpush2.bf16.msra.mxu0 0
    %1596 = vmatprep.subr.bf16.mxu0 0
    %1597 = vmatpush2.bf16.msra.mxu0 0
    %1598 = vmatprep.subr.bf16.mxu0 0
    %1599 = vmatpush2.bf16.msra.mxu0 0
    %1600 = vmatprep.subr.bf16.mxu0 0
    %1601 = vmatpush2.bf16.msra.mxu0 0
    %1602 = vmatprep.mubr.bf16.mxu0 0
    %1603 = vmatmul.mubr.bf16.gmra.mxu0 %v1525
    %v1604 = vpop.f32.mrf.mxu0
    %v1605 = vadd.f32 0.0, %v1604
    %v1606 = vpop.f32.mrf.mxu0
    %v1607 = vadd.f32 0.0, %v1606
    %v1608 = vpop.f32.mrf.mxu0
    %v1609 = vadd.f32 0.0, %v1608
    %v1610 = vpop.f32.mrf.mxu0
    %v1611 = vadd.f32 0.0, %v1610
    %1612 = vdwg.mxu0
    %v1613 = vadd.f32 %v1435, %v1562
    %v1614 = vadd.f32 %v1436, %v1564
    %v1615 = vadd.f32 %v1437, %v1605
    %v1616 = vadd.f32 %v1438, %v1607
    %v1617 = vadd.f32 %v1439, %v1566
    %v1618 = vadd.f32 %v1440, %v1568
    %v1619 = vadd.f32 %v1441, %v1609
    %v1620 = vadd.f32 %v1442, %v1611
    %1622 = vset.pattern.permute.xlu0 0
    %1623 = vperm.xlu0 %1622, %v46
    %v1624 = vpop.permute.xlu0 %1623
    %1627 = vset.pattern.permute.xlu0 0
    %1628 = vperm.xlu0 %1627, %v47
    %v1629 = vpop.permute.xlu0 %1628
    %v1631 = vadd.f32 %v1613, %v1624
    %v1632 = vadd.f32 %v1614, %v1624
    %v1633 = vadd.f32 %v1615, %v1624
    %v1634 = vadd.f32 %v1616, %v1624
    %v1635 = vadd.f32 %v1617, %v1629
    %v1636 = vadd.f32 %v1618, %v1629
    %v1637 = vadd.f32 %v1619, %v1629
    %v1638 = vadd.f32 %v1620, %v1629
    %vm1639 = vcmp.gt.f32.partialorder %v1631, 0.0
    %vm1640 = vcmp.gt.f32.partialorder %v1632, 0.0
    %vm1641 = vcmp.gt.f32.partialorder %v1633, 0.0
    %vm1642 = vcmp.gt.f32.partialorder %v1634, 0.0
    %vm1643 = vcmp.gt.f32.partialorder %v1635, 0.0
    %vm1644 = vcmp.gt.f32.partialorder %v1636, 0.0
    %vm1645 = vcmp.gt.f32.partialorder %v1637, 0.0
    %vm1646 = vcmp.gt.f32.partialorder %v1638, 0.0
    %v1647 = vmin.f32 %v1631, 0.0
    %v1648 = vmin.f32 %v1632, 0.0
    %v1649 = vmin.f32 %v1633, 0.0
    %v1650 = vmin.f32 %v1634, 0.0
    %v1651 = vmin.f32 %v1635, 0.0
    %v1652 = vmin.f32 %v1636, 0.0
    %v1653 = vmin.f32 %v1637, 0.0
    %v1654 = vmin.f32 %v1638, 0.0
    %v1655 = vmul.f32 %v1647, 1.442695
    %v1656 = vpow.pop %v1655
    %v1657 = vmul.f32 %v1648, 1.442695
    %v1658 = vpow.pop %v1657
    %v1659 = vmul.f32 %v1649, 1.442695
    %v1660 = vpow.pop %v1659
    %v1661 = vmul.f32 %v1650, 1.442695
    %v1662 = vpow.pop %v1661
    %v1663 = vmul.f32 %v1651, 1.442695
    %v1664 = vpow.pop %v1663
    %v1665 = vmul.f32 %v1652, 1.442695
    %v1666 = vpow.pop %v1665
    %v1667 = vmul.f32 %v1653, 1.442695
    %v1668 = vpow.pop %v1667
    %v1669 = vmul.f32 %v1654, 1.442695
    %v1670 = vpow.pop %v1669
    %v1671 = vsub.f32 %v1656, 1.0
    %v1672 = vsub.f32 %v1658, 1.0
    %v1673 = vsub.f32 %v1660, 1.0
    %v1674 = vsub.f32 %v1662, 1.0
    %v1675 = vsub.f32 %v1664, 1.0
    %v1676 = vsub.f32 %v1666, 1.0
    %v1677 = vsub.f32 %v1668, 1.0
    %v1678 = vsub.f32 %v1670, 1.0
    %v1679 = vsel %vm1639, %v1631, %v1671
    %v1680 = vsel %vm1640, %v1632, %v1672
    %v1681 = vsel %vm1641, %v1633, %v1673
    %v1682 = vsel %vm1642, %v1634, %v1674
    %v1683 = vsel %vm1643, %v1635, %v1675
    %v1684 = vsel %vm1644, %v1636, %v1676
    %v1685 = vsel %vm1645, %v1637, %v1677
    %v1686 = vsel %vm1646, %v1638, %v1678
    %v1687 = vpack.c.bf16 %v1683, %v1679
    %v1688 = vpack.c.bf16 %v1684, %v1680
    %v1689 = vpack.c.bf16 %v1685, %v1681
    %v1690 = vpack.c.bf16 %v1686, %v1682
    %v1695 = vunpack.c.l.b16 %v1687
    %v1696 = vunpack.c.l.b16 %v1688
    %v1697 = vunpack.c.l.b16 %v1689
    %v1698 = vunpack.c.l.b16 %v1690
    %v1699 = vunpack.c.h.b16 %v1687
    %v1700 = vunpack.c.h.b16 %v1688
    %v1701 = vunpack.c.h.b16 %v1689
    %v1702 = vunpack.c.h.b16 %v1690
    %v1703 = vpack.c.b16 %v1696, %v1695
    %v1704 = vpack.c.b16 %v1698, %v1697
    %v1705 = vpack.c.b16 %v1700, %v1699
    %v1706 = vpack.c.b16 %v1702, %v1701
    %1711 = vst [vmem:[#allocation2] sm:$0xff] %v1703
    %1712 = vst [vmem:[#allocation2 + $0x8] sm:$0xff] %v1704
    %1713 = vst [vmem:[#allocation2 + $0x14] sm:$0xff] %v1705
    %1714 = vst [vmem:[#allocation2 + $0x1c] sm:$0xff] %v1706
    %v1715 = vld [vmem:[%s5] sm:$0xff]
    %v1716 = vld [vmem:[%s5 + $0x8] sm:$0xff]
    %v1717 = vld [vmem:[%s5 + $0x10] sm:$0xff]
    %v1718 = vld [vmem:[%s5 + $0x18] sm:$0xff]
    %v1719 = vld [vmem:[#allocation2] sm:$0xff]
    %v1720 = vld [vmem:[#allocation2 + $0x8] sm:$0xff]
    %v1721 = vld [vmem:[#allocation2 + $0x14] sm:$0xff]
    %v1722 = vld [vmem:[#allocation2 + $0x1c] sm:$0xff]
    %v1723 = vld [vmem:[#allocation2] sm:$0xff]
    %v1724 = vld [vmem:[#allocation2 + $0x8] sm:$0xff]
    %v1725 = vld [vmem:[#allocation2 + $0x10] sm:$0xf]
    %v1726 = vld [vmem:[#allocation2 + $0x14] sm:$0xff]
    %v1727 = vld [vmem:[#allocation2 + $0x1c] sm:$0xff]
    %v1728 = vld [vmem:[#allocation2 + $0x24] sm:$0xf]
    %v1733 = vunpack.c.l.b16 %v1719
    %v1734 = vunpack.c.h.b16 %v1719
    %v1735 = vunpack.c.l.b16 %v1720
    %v1736 = vunpack.c.h.b16 %v1720
    %v1737 = vunpack.c.l.b16 %v1721
    %v1738 = vunpack.c.h.b16 %v1721
    %v1739 = vunpack.c.l.b16 %v1722
    %v1740 = vunpack.c.h.b16 %v1722
    %v1741 = vpack.c.b16 %v1737, %v1733
    %v1742 = vpack.c.b16 %v1738, %v1734
    %v1743 = vpack.c.b16 %v1739, %v1735
    %v1744 = vpack.c.b16 %v1740, %v1736
    %v1755 = vunpack.c.l.b16 %v1723
    %v1756 = vunpack.c.h.b16 %v1723
    %v1757 = vunpack.c.l.b16 %v1724
    %v1758 = vunpack.c.h.b16 %v1724
    %v1759 = vunpack.c.l.b16 %v1725
    %v1760 = vunpack.c.l.b16 %v1726
    %v1761 = vunpack.c.h.b16 %v1726
    %v1762 = vunpack.c.l.b16 %v1727
    %v1763 = vunpack.c.h.b16 %v1727
    %v1764 = vunpack.c.l.b16 %v1728
    %v1765 = vpack.c.b16 %v1760, %v1755
    %v1766 = vpack.c.b16 %v1761, %v1756
    %v1767 = vpack.c.b16 %v1762, %v1757
    %v1768 = vpack.c.b16 %v1763, %v1758
    %v1769 = vpack.c.b16 %v1764, %v1759
    %1770 = vrot.lane.b32.xlu0 %v1765, 127
    %v1771 = vpop.permute.xlu0 %1770
    %1772 = vrot.lane.b32.xlu0 %v1766, 127
    %v1773 = vpop.permute.xlu0 %1772
    %1774 = vrot.lane.b32.xlu0 %v1767, 127
    %v1775 = vpop.permute.xlu0 %1774
    %1776 = vrot.lane.b32.xlu0 %v1768, 127
    %v1777 = vpop.permute.xlu0 %1776
    %1778 = vrot.lane.b32.xlu0 %v1769, 127
    %v1779 = vpop.permute.xlu0 %1778
    %v1780 = vsel %vm86, %v1771, %v1773
    %v1781 = vsel %vm86, %v1773, %v1775
    %v1782 = vsel %vm86, %v1775, %v1777
    %v1783 = vsel %vm86, %v1777, %v1779
    %1788 = vrot.lane.b32.xlu0 %v1765, 126
    %v1789 = vpop.permute.xlu0 %1788
    %1790 = vrot.lane.b32.xlu0 %v1766, 126
    %v1791 = vpop.permute.xlu0 %1790
    %1792 = vrot.lane.b32.xlu0 %v1767, 126
    %v1793 = vpop.permute.xlu0 %1792
    %1794 = vrot.lane.b32.xlu0 %v1768, 126
    %v1795 = vpop.permute.xlu0 %1794
    %1796 = vrot.lane.b32.xlu0 %v1769, 126
    %v1797 = vpop.permute.xlu0 %1796
    %v1798 = vsel %vm101, %v1789, %v1791
    %v1799 = vsel %vm101, %v1791, %v1793
    %v1800 = vsel %vm101, %v1793, %v1795
    %v1801 = vsel %vm101, %v1795, %v1797
    %1806 = vrot.lane.b32.xlu0 %v1765, 125
    %v1807 = vpop.permute.xlu0 %1806
    %1808 = vrot.lane.b32.xlu0 %v1766, 125
    %v1809 = vpop.permute.xlu0 %1808
    %1810 = vrot.lane.b32.xlu0 %v1767, 125
    %v1811 = vpop.permute.xlu0 %1810
    %1812 = vrot.lane.b32.xlu0 %v1768, 125
    %v1813 = vpop.permute.xlu0 %1812
    %1814 = vrot.lane.b32.xlu0 %v1769, 125
    %v1815 = vpop.permute.xlu0 %1814
    %v1816 = vsel %vm116, %v1807, %v1809
    %v1817 = vsel %vm116, %v1809, %v1811
    %v1818 = vsel %vm116, %v1811, %v1813
    %v1819 = vsel %vm116, %v1813, %v1815
    %v1824 = vld [vmem:[%s3] sm:$0xf]
    %v1825 = vld [vmem:[%s3 + $0x4] sm:$0xf]
    %v1826 = vld [vmem:[%s3 + $0x8] sm:$0xf]
    %v1827 = vld [vmem:[%s3 + $0xc] sm:$0xf]
    %s1828 = scalar_lea.vmem %s3, 16
    %v1829 = vld [vmem:[%s1828] sm:$0xf]
    %v1830 = vld [vmem:[%s1828 + $0x4] sm:$0xf]
    %v1831 = vld [vmem:[%s1828 + $0x8] sm:$0xf]
    %v1832 = vld [vmem:[%s1828 + $0xc] sm:$0xf]
    %v1837 = vunpack.c.l.b16 %v1829
    %v1838 = vunpack.c.l.b16 %v1830
    %v1839 = vunpack.c.l.b16 %v1831
    %v1840 = vunpack.c.l.b16 %v1832
    %v1841 = vpack.c.b16 %v1838, %v1837
    %v1842 = vpack.c.b16 %v1840, %v1839
    %1843 = vrot.lane.b32.xlu0 %v1765, 112
    %v1844 = vpop.permute.xlu0 %1843
    %1845 = vrot.lane.b32.xlu0 %v1766, 112
    %v1846 = vpop.permute.xlu0 %1845
    %1847 = vrot.lane.b32.xlu0 %v1767, 112
    %v1848 = vpop.permute.xlu0 %1847
    %1849 = vrot.lane.b32.xlu0 %v1768, 112
    %v1850 = vpop.permute.xlu0 %1849
    %1851 = vrot.lane.b32.xlu0 %v1769, 112
    %v1852 = vpop.permute.xlu0 %1851
    %1853 = vrot.lane.b32.xlu0 %v1780, 112
    %v1854 = vpop.permute.xlu0 %1853
    %1855 = vrot.lane.b32.xlu0 %v1781, 112
    %v1856 = vpop.permute.xlu0 %1855
    %1857 = vrot.lane.b32.xlu0 %v1782, 112
    %v1858 = vpop.permute.xlu0 %1857
    %1859 = vrot.lane.b32.xlu0 %v1783, 112
    %v1860 = vpop.permute.xlu0 %1859
    %1861 = vrot.lane.b32.xlu0 %v1779, 112
    %v1862 = vpop.permute.xlu0 %1861
    %1863 = vrot.lane.b32.xlu0 %v1798, 112
    %v1864 = vpop.permute.xlu0 %1863
    %1865 = vrot.lane.b32.xlu0 %v1799, 112
    %v1866 = vpop.permute.xlu0 %1865
    %1867 = vrot.lane.b32.xlu0 %v1800, 112
    %v1868 = vpop.permute.xlu0 %1867
    %1869 = vrot.lane.b32.xlu0 %v1801, 112
    %v1870 = vpop.permute.xlu0 %1869
    %1871 = vrot.lane.b32.xlu0 %v1797, 112
    %v1872 = vpop.permute.xlu0 %1871
    %1873 = vrot.lane.b32.xlu0 %v1816, 112
    %v1874 = vpop.permute.xlu0 %1873
    %1875 = vrot.lane.b32.xlu0 %v1817, 112
    %v1876 = vpop.permute.xlu0 %1875
    %1877 = vrot.lane.b32.xlu0 %v1818, 112
    %v1878 = vpop.permute.xlu0 %1877
    %1879 = vrot.lane.b32.xlu0 %v1819, 112
    %v1880 = vpop.permute.xlu0 %1879
    %1881 = vrot.lane.b32.xlu0 %v1815, 112
    %v1882 = vpop.permute.xlu0 %1881
    %v1883 = vsel %vm336, %v1844, %v1846
    %v1884 = vsel %vm336, %v1846, %v1848
    %v1885 = vsel %vm336, %v1848, %v1850
    %v1886 = vsel %vm336, %v1850, %v1852
    %v1887 = vsel %vm336, %v1854, %v1856
    %v1888 = vsel %vm336, %v1856, %v1858
    %v1889 = vsel %vm336, %v1858, %v1860
    %v1890 = vsel %vm336, %v1860, %v1862
    %v1891 = vsel %vm336, %v1864, %v1866
    %v1892 = vsel %vm336, %v1866, %v1868
    %v1893 = vsel %vm336, %v1868, %v1870
    %v1894 = vsel %vm336, %v1870, %v1872
    %v1895 = vsel %vm336, %v1874, %v1876
    %v1896 = vsel %vm336, %v1876, %v1878
    %v1897 = vsel %vm336, %v1878, %v1880
    %v1898 = vsel %vm336, %v1880, %v1882
    %v1916 = vsel %vm369, %v1841, 0
    %v1919 = vsel %vm369, %v1842, 0
    %1921 = vmatprep.subr.bf16.mxu0 0
    %1922 = vmatpush1.bf16.msra.mxu0 0
    %1923 = vmatprep.subr.bf16.mxu0 0
    %1924 = vmatpush1.bf16.msra.mxu0 0
    %1925 = vmatprep.subr.bf16.mxu0 0
    %1926 = vmatpush1.bf16.msra.mxu0 0
    %1927 = vmatprep.subr.bf16.mxu0 0
    %1928 = vmatpush1.bf16.msra.mxu0 0
    %1929 = vmatprep.subr.bf16.mxu0 %v1896
    %1930 = vmatpush1.bf16.msra.mxu0 %v1895
    %1931 = vmatprep.subr.bf16.mxu0 %v1892
    %1932 = vmatpush1.bf16.msra.mxu0 %v1891
    %1933 = vmatprep.subr.bf16.mxu0 %v1888
    %1934 = vmatpush1.bf16.msra.mxu0 %v1887
    %1935 = vmatprep.subr.bf16.mxu0 %v1884
    %1936 = vmatpush1.bf16.msra.mxu0 %v1883
    %1937 = vmatprep.subr.bf16.mxu0 0
    %1938 = vmatpush2.bf16.msra.mxu0 0
    %1939 = vmatprep.subr.bf16.mxu0 0
    %1940 = vmatpush2.bf16.msra.mxu0 0
    %1941 = vmatprep.subr.bf16.mxu0 0
    %1942 = vmatpush2.bf16.msra.mxu0 0
    %1943 = vmatprep.subr.bf16.mxu0 0
    %1944 = vmatpush2.bf16.msra.mxu0 0
    %1945 = vmatprep.subr.bf16.mxu0 0
    %1946 = vmatpush2.bf16.msra.mxu0 0
    %1947 = vmatprep.subr.bf16.mxu0 0
    %1948 = vmatpush2.bf16.msra.mxu0 0
    %1949 = vmatprep.subr.bf16.mxu0 0
    %1950 = vmatpush2.bf16.msra.mxu0 0
    %1951 = vmatprep.subr.bf16.mxu0 0
    %1952 = vmatpush2.bf16.msra.mxu0 0
    %1953 = vmatprep.mubr.bf16.mxu0 0
    %1954 = vmatmul.mubr.bf16.gmra.mxu0 %v1916
    %v1955 = vpop.f32.mrf.mxu0
    %v1956 = vadd.f32 0.0, %v1955
    %v1957 = vpop.f32.mrf.mxu0
    %v1958 = vadd.f32 0.0, %v1957
    %v1959 = vpop.f32.mrf.mxu0
    %v1960 = vadd.f32 0.0, %v1959
    %v1961 = vpop.f32.mrf.mxu0
    %v1962 = vadd.f32 0.0, %v1961
    %1963 = vmatprep.mubr.bf16.mxu0 0
    %1964 = vmatmul.mubr.bf16.gmra.mxu0 %v1919
    %v1965 = vpop.f32.mrf.mxu0
    %v1966 = vadd.f32 0.0, %v1965
    %v1967 = vpop.f32.mrf.mxu0
    %v1968 = vadd.f32 0.0, %v1967
    %v1969 = vpop.f32.mrf.mxu0
    %v1970 = vadd.f32 0.0, %v1969
    %v1971 = vpop.f32.mrf.mxu0
    %v1972 = vadd.f32 0.0, %v1971
    %1973 = vdwg.mxu0
    %1974 = vmatprep.subr.bf16.mxu0 0
    %1975 = vmatpush1.bf16.msra.mxu0 0
    %1976 = vmatprep.subr.bf16.mxu0 0
    %1977 = vmatpush1.bf16.msra.mxu0 0
    %1978 = vmatprep.subr.bf16.mxu0 0
    %1979 = vmatpush1.bf16.msra.mxu0 0
    %1980 = vmatprep.subr.bf16.mxu0 0
    %1981 = vmatpush1.bf16.msra.mxu0 0
    %1982 = vmatprep.subr.bf16.mxu0 %v1898
    %1983 = vmatpush1.bf16.msra.mxu0 %v1897
    %1984 = vmatprep.subr.bf16.mxu0 %v1894
    %1985 = vmatpush1.bf16.msra.mxu0 %v1893
    %1986 = vmatprep.subr.bf16.mxu0 %v1890
    %1987 = vmatpush1.bf16.msra.mxu0 %v1889
    %1988 = vmatprep.subr.bf16.mxu0 %v1886
    %1989 = vmatpush1.bf16.msra.mxu0 %v1885
    %1990 = vmatprep.subr.bf16.mxu0 0
    %1991 = vmatpush2.bf16.msra.mxu0 0
    %1992 = vmatprep.subr.bf16.mxu0 0
    %1993 = vmatpush2.bf16.msra.mxu0 0
    %1994 = vmatprep.subr.bf16.mxu0 0
    %1995 = vmatpush2.bf16.msra.mxu0 0
    %1996 = vmatprep.subr.bf16.mxu0 0
    %1997 = vmatpush2.bf16.msra.mxu0 0
    %1998 = vmatprep.subr.bf16.mxu0 0
    %1999 = vmatpush2.bf16.msra.mxu0 0
    %2000 = vmatprep.subr.bf16.mxu0 0
    %2001 = vmatpush2.bf16.msra.mxu0 0
    %2002 = vmatprep.subr.bf16.mxu0 0
    %2003 = vmatpush2.bf16.msra.mxu0 0
    %2004 = vmatprep.subr.bf16.mxu0 0
    %2005 = vmatpush2.bf16.msra.mxu0 0
    %2006 = vmatprep.mubr.bf16.mxu0 0
    %2007 = vmatmul.mubr.bf16.gmra.mxu0 %v1916
    %v2008 = vpop.f32.mrf.mxu0
    %v2009 = vadd.f32 0.0, %v2008
    %v2010 = vpop.f32.mrf.mxu0
    %v2011 = vadd.f32 0.0, %v2010
    %v2012 = vpop.f32.mrf.mxu0
    %v2013 = vadd.f32 0.0, %v2012
    %v2014 = vpop.f32.mrf.mxu0
    %v2015 = vadd.f32 0.0, %v2014
    %2016 = vmatprep.mubr.bf16.mxu0 0
    %2017 = vmatmul.mubr.bf16.gmra.mxu0 %v1919
    %v2018 = vpop.f32.mrf.mxu0
    %v2019 = vadd.f32 0.0, %v2018
    %v2020 = vpop.f32.mrf.mxu0
    %v2021 = vadd.f32 0.0, %v2020
    %v2022 = vpop.f32.mrf.mxu0
    %v2023 = vadd.f32 0.0, %v2022
    %v2024 = vpop.f32.mrf.mxu0
    %v2025 = vadd.f32 0.0, %v2024
    %2026 = vdwg.mxu0
    %v2031 = vunpack.c.l.b16 %v1824
    %v2032 = vunpack.c.l.b16 %v1825
    %v2033 = vunpack.c.l.b16 %v1826
    %v2034 = vunpack.c.l.b16 %v1827
    %v2035 = vpack.c.b16 %v2032, %v2031
    %v2036 = vpack.c.b16 %v2034, %v2033
    %v2038 = vsel %vm369, %v2035, 0
    %v2041 = vsel %vm369, %v2036, 0
    %2043 = vmatprep.subr.bf16.mxu0 0
    %2044 = vmatpush1.bf16.msra.mxu0 0
    %2045 = vmatprep.subr.bf16.mxu0 0
    %2046 = vmatpush1.bf16.msra.mxu0 0
    %2047 = vmatprep.subr.bf16.mxu0 0
    %2048 = vmatpush1.bf16.msra.mxu0 0
    %2049 = vmatprep.subr.bf16.mxu0 0
    %2050 = vmatpush1.bf16.msra.mxu0 0
    %2051 = vmatprep.subr.bf16.mxu0 %v1817
    %2052 = vmatpush1.bf16.msra.mxu0 %v1816
    %2053 = vmatprep.subr.bf16.mxu0 %v1799
    %2054 = vmatpush1.bf16.msra.mxu0 %v1798
    %2055 = vmatprep.subr.bf16.mxu0 %v1781
    %2056 = vmatpush1.bf16.msra.mxu0 %v1780
    %2057 = vmatprep.subr.bf16.mxu0 %v1742
    %2058 = vmatpush1.bf16.msra.mxu0 %v1741
    %2059 = vmatprep.subr.bf16.mxu0 0
    %2060 = vmatpush2.bf16.msra.mxu0 0
    %2061 = vmatprep.subr.bf16.mxu0 0
    %2062 = vmatpush2.bf16.msra.mxu0 0
    %2063 = vmatprep.subr.bf16.mxu0 0
    %2064 = vmatpush2.bf16.msra.mxu0 0
    %2065 = vmatprep.subr.bf16.mxu0 0
    %2066 = vmatpush2.bf16.msra.mxu0 0
    %2067 = vmatprep.subr.bf16.mxu0 0
    %2068 = vmatpush2.bf16.msra.mxu0 0
    %2069 = vmatprep.subr.bf16.mxu0 0
    %2070 = vmatpush2.bf16.msra.mxu0 0
    %2071 = vmatprep.subr.bf16.mxu0 0
    %2072 = vmatpush2.bf16.msra.mxu0 0
    %2073 = vmatprep.subr.bf16.mxu0 0
    %2074 = vmatpush2.bf16.msra.mxu0 0
    %2075 = vmatprep.mubr.bf16.mxu0 0
    %2076 = vmatmul.mubr.bf16.gmra.mxu0 %v2038
    %v2077 = vpop.f32.mrf.mxu0
    %v2078 = vadd.f32 %v1956, %v2077
    %v2079 = vpop.f32.mrf.mxu0
    %v2080 = vadd.f32 %v1958, %v2079
    %v2081 = vpop.f32.mrf.mxu0
    %v2082 = vadd.f32 %v1960, %v2081
    %v2083 = vpop.f32.mrf.mxu0
    %v2084 = vadd.f32 %v1962, %v2083
    %2085 = vmatprep.mubr.bf16.mxu0 0
    %2086 = vmatmul.mubr.bf16.gmra.mxu0 %v2041
    %v2087 = vpop.f32.mrf.mxu0
    %v2088 = vadd.f32 %v1966, %v2087
    %v2089 = vpop.f32.mrf.mxu0
    %v2090 = vadd.f32 %v1968, %v2089
    %v2091 = vpop.f32.mrf.mxu0
    %v2092 = vadd.f32 %v1970, %v2091
    %v2093 = vpop.f32.mrf.mxu0
    %v2094 = vadd.f32 %v1972, %v2093
    %2095 = vdwg.mxu0
    %2096 = vmatprep.subr.bf16.mxu0 0
    %2097 = vmatpush1.bf16.msra.mxu0 0
    %2098 = vmatprep.subr.bf16.mxu0 0
    %2099 = vmatpush1.bf16.msra.mxu0 0
    %2100 = vmatprep.subr.bf16.mxu0 0
    %2101 = vmatpush1.bf16.msra.mxu0 0
    %2102 = vmatprep.subr.bf16.mxu0 0
    %2103 = vmatpush1.bf16.msra.mxu0 0
    %2104 = vmatprep.subr.bf16.mxu0 %v1819
    %2105 = vmatpush1.bf16.msra.mxu0 %v1818
    %2106 = vmatprep.subr.bf16.mxu0 %v1801
    %2107 = vmatpush1.bf16.msra.mxu0 %v1800
    %2108 = vmatprep.subr.bf16.mxu0 %v1783
    %2109 = vmatpush1.bf16.msra.mxu0 %v1782
    %2110 = vmatprep.subr.bf16.mxu0 %v1744
    %2111 = vmatpush1.bf16.msra.mxu0 %v1743
    %2112 = vmatprep.subr.bf16.mxu0 0
    %2113 = vmatpush2.bf16.msra.mxu0 0
    %2114 = vmatprep.subr.bf16.mxu0 0
    %2115 = vmatpush2.bf16.msra.mxu0 0
    %2116 = vmatprep.subr.bf16.mxu0 0
    %2117 = vmatpush2.bf16.msra.mxu0 0
    %2118 = vmatprep.subr.bf16.mxu0 0
    %2119 = vmatpush2.bf16.msra.mxu0 0
    %2120 = vmatprep.subr.bf16.mxu0 0
    %2121 = vmatpush2.bf16.msra.mxu0 0
    %2122 = vmatprep.subr.bf16.mxu0 0
    %2123 = vmatpush2.bf16.msra.mxu0 0
    %2124 = vmatprep.subr.bf16.mxu0 0
    %2125 = vmatpush2.bf16.msra.mxu0 0
    %2126 = vmatprep.subr.bf16.mxu0 0
    %2127 = vmatpush2.bf16.msra.mxu0 0
    %2128 = vmatprep.mubr.bf16.mxu0 0
    %2129 = vmatmul.mubr.bf16.gmra.mxu0 %v2038
    %v2130 = vpop.f32.mrf.mxu0
    %v2131 = vadd.f32 %v2009, %v2130
    %v2132 = vpop.f32.mrf.mxu0
    %v2133 = vadd.f32 %v2011, %v2132
    %v2134 = vpop.f32.mrf.mxu0
    %v2135 = vadd.f32 %v2013, %v2134
    %v2136 = vpop.f32.mrf.mxu0
    %v2137 = vadd.f32 %v2015, %v2136
    %2138 = vmatprep.mubr.bf16.mxu0 0
    %2139 = vmatmul.mubr.bf16.gmra.mxu0 %v2041
    %v2140 = vpop.f32.mrf.mxu0
    %v2141 = vadd.f32 %v2019, %v2140
    %v2142 = vpop.f32.mrf.mxu0
    %v2143 = vadd.f32 %v2021, %v2142
    %v2144 = vpop.f32.mrf.mxu0
    %v2145 = vadd.f32 %v2023, %v2144
    %v2146 = vpop.f32.mrf.mxu0
    %v2147 = vadd.f32 %v2025, %v2146
    %2148 = vdwg.mxu0
    %s2149 = scalar_lea.vmem %s3, 32
    %v2150 = vld [vmem:[%s2149] sm:$0xf]
    %v2151 = vld [vmem:[%s2149 + $0x4] sm:$0xf]
    %v2152 = vld [vmem:[%s2149 + $0x8] sm:$0xf]
    %v2153 = vld [vmem:[%s2149 + $0xc] sm:$0xf]
    %v2158 = vunpack.c.l.b16 %v2150
    %v2159 = vunpack.c.l.b16 %v2151
    %v2160 = vunpack.c.l.b16 %v2152
    %v2161 = vunpack.c.l.b16 %v2153
    %v2162 = vpack.c.b16 %v2159, %v2158
    %v2163 = vpack.c.b16 %v2161, %v2160
    %2164 = vrot.lane.b32.xlu0 %v1765, 96
    %v2165 = vpop.permute.xlu0 %2164
    %2166 = vrot.lane.b32.xlu0 %v1766, 96
    %v2167 = vpop.permute.xlu0 %2166
    %2168 = vrot.lane.b32.xlu0 %v1767, 96
    %v2169 = vpop.permute.xlu0 %2168
    %2170 = vrot.lane.b32.xlu0 %v1768, 96
    %v2171 = vpop.permute.xlu0 %2170
    %2172 = vrot.lane.b32.xlu0 %v1769, 96
    %v2173 = vpop.permute.xlu0 %2172
    %2174 = vrot.lane.b32.xlu0 %v1780, 96
    %v2175 = vpop.permute.xlu0 %2174
    %2176 = vrot.lane.b32.xlu0 %v1781, 96
    %v2177 = vpop.permute.xlu0 %2176
    %2178 = vrot.lane.b32.xlu0 %v1782, 96
    %v2179 = vpop.permute.xlu0 %2178
    %2180 = vrot.lane.b32.xlu0 %v1783, 96
    %v2181 = vpop.permute.xlu0 %2180
    %2182 = vrot.lane.b32.xlu0 %v1779, 96
    %v2183 = vpop.permute.xlu0 %2182
    %2184 = vrot.lane.b32.xlu0 %v1798, 96
    %v2185 = vpop.permute.xlu0 %2184
    %2186 = vrot.lane.b32.xlu0 %v1799, 96
    %v2187 = vpop.permute.xlu0 %2186
    %2188 = vrot.lane.b32.xlu0 %v1800, 96
    %v2189 = vpop.permute.xlu0 %2188
    %2190 = vrot.lane.b32.xlu0 %v1801, 96
    %v2191 = vpop.permute.xlu0 %2190
    %2192 = vrot.lane.b32.xlu0 %v1797, 96
    %v2193 = vpop.permute.xlu0 %2192
    %2194 = vrot.lane.b32.xlu0 %v1816, 96
    %v2195 = vpop.permute.xlu0 %2194
    %2196 = vrot.lane.b32.xlu0 %v1817, 96
    %v2197 = vpop.permute.xlu0 %2196
    %2198 = vrot.lane.b32.xlu0 %v1818, 96
    %v2199 = vpop.permute.xlu0 %2198
    %2200 = vrot.lane.b32.xlu0 %v1819, 96
    %v2201 = vpop.permute.xlu0 %2200
    %2202 = vrot.lane.b32.xlu0 %v1815, 96
    %v2203 = vpop.permute.xlu0 %2202
    %v2204 = vsel %vm601, %v2165, %v2167
    %v2205 = vsel %vm601, %v2167, %v2169
    %v2206 = vsel %vm601, %v2169, %v2171
    %v2207 = vsel %vm601, %v2171, %v2173
    %v2208 = vsel %vm601, %v2175, %v2177
    %v2209 = vsel %vm601, %v2177, %v2179
    %v2210 = vsel %vm601, %v2179, %v2181
    %v2211 = vsel %vm601, %v2181, %v2183
    %v2212 = vsel %vm601, %v2185, %v2187
    %v2213 = vsel %vm601, %v2187, %v2189
    %v2214 = vsel %vm601, %v2189, %v2191
    %v2215 = vsel %vm601, %v2191, %v2193
    %v2216 = vsel %vm601, %v2195, %v2197
    %v2217 = vsel %vm601, %v2197, %v2199
    %v2218 = vsel %vm601, %v2199, %v2201
    %v2219 = vsel %vm601, %v2201, %v2203
    %v2237 = vsel %vm369, %v2162, 0
    %v2240 = vsel %vm369, %v2163, 0
    %2242 = vmatprep.subr.bf16.mxu0 0
    %2243 = vmatpush1.bf16.msra.mxu0 0
    %2244 = vmatprep.subr.bf16.mxu0 0
    %2245 = vmatpush1.bf16.msra.mxu0 0
    %2246 = vmatprep.subr.bf16.mxu0 0
    %2247 = vmatpush1.bf16.msra.mxu0 0
    %2248 = vmatprep.subr.bf16.mxu0 0
    %2249 = vmatpush1.bf16.msra.mxu0 0
    %2250 = vmatprep.subr.bf16.mxu0 %v2217
    %2251 = vmatpush1.bf16.msra.mxu0 %v2216
    %2252 = vmatprep.subr.bf16.mxu0 %v2213
    %2253 = vmatpush1.bf16.msra.mxu0 %v2212
    %2254 = vmatprep.subr.bf16.mxu0 %v2209
    %2255 = vmatpush1.bf16.msra.mxu0 %v2208
    %2256 = vmatprep.subr.bf16.mxu0 %v2205
    %2257 = vmatpush1.bf16.msra.mxu0 %v2204
    %2258 = vmatprep.subr.bf16.mxu0 0
    %2259 = vmatpush2.bf16.msra.mxu0 0
    %2260 = vmatprep.subr.bf16.mxu0 0
    %2261 = vmatpush2.bf16.msra.mxu0 0
    %2262 = vmatprep.subr.bf16.mxu0 0
    %2263 = vmatpush2.bf16.msra.mxu0 0
    %2264 = vmatprep.subr.bf16.mxu0 0
    %2265 = vmatpush2.bf16.msra.mxu0 0
    %2266 = vmatprep.subr.bf16.mxu0 0
    %2267 = vmatpush2.bf16.msra.mxu0 0
    %2268 = vmatprep.subr.bf16.mxu0 0
    %2269 = vmatpush2.bf16.msra.mxu0 0
    %2270 = vmatprep.subr.bf16.mxu0 0
    %2271 = vmatpush2.bf16.msra.mxu0 0
    %2272 = vmatprep.subr.bf16.mxu0 0
    %2273 = vmatpush2.bf16.msra.mxu0 0
    %2274 = vmatprep.mubr.bf16.mxu0 0
    %2275 = vmatmul.mubr.bf16.gmra.mxu0 %v2237
    %v2276 = vpop.f32.mrf.mxu0
    %v2277 = vadd.f32 0.0, %v2276
    %v2278 = vpop.f32.mrf.mxu0
    %v2279 = vadd.f32 0.0, %v2278
    %v2280 = vpop.f32.mrf.mxu0
    %v2281 = vadd.f32 0.0, %v2280
    %v2282 = vpop.f32.mrf.mxu0
    %v2283 = vadd.f32 0.0, %v2282
    %2284 = vmatprep.mubr.bf16.mxu0 0
    %2285 = vmatmul.mubr.bf16.gmra.mxu0 %v2240
    %v2286 = vpop.f32.mrf.mxu0
    %v2287 = vadd.f32 0.0, %v2286
    %v2288 = vpop.f32.mrf.mxu0
    %v2289 = vadd.f32 0.0, %v2288
    %v2290 = vpop.f32.mrf.mxu0
    %v2291 = vadd.f32 0.0, %v2290
    %v2292 = vpop.f32.mrf.mxu0
    %v2293 = vadd.f32 0.0, %v2292
    %2294 = vdwg.mxu0
    %2295 = vmatprep.subr.bf16.mxu0 0
    %2296 = vmatpush1.bf16.msra.mxu0 0
    %2297 = vmatprep.subr.bf16.mxu0 0
    %2298 = vmatpush1.bf16.msra.mxu0 0
    %2299 = vmatprep.subr.bf16.mxu0 0
    %2300 = vmatpush1.bf16.msra.mxu0 0
    %2301 = vmatprep.subr.bf16.mxu0 0
    %2302 = vmatpush1.bf16.msra.mxu0 0
    %2303 = vmatprep.subr.bf16.mxu0 %v2219
    %2304 = vmatpush1.bf16.msra.mxu0 %v2218
    %2305 = vmatprep.subr.bf16.mxu0 %v2215
    %2306 = vmatpush1.bf16.msra.mxu0 %v2214
    %2307 = vmatprep.subr.bf16.mxu0 %v2211
    %2308 = vmatpush1.bf16.msra.mxu0 %v2210
    %2309 = vmatprep.subr.bf16.mxu0 %v2207
    %2310 = vmatpush1.bf16.msra.mxu0 %v2206
    %2311 = vmatprep.subr.bf16.mxu0 0
    %2312 = vmatpush2.bf16.msra.mxu0 0
    %2313 = vmatprep.subr.bf16.mxu0 0
    %2314 = vmatpush2.bf16.msra.mxu0 0
    %2315 = vmatprep.subr.bf16.mxu0 0
    %2316 = vmatpush2.bf16.msra.mxu0 0
    %2317 = vmatprep.subr.bf16.mxu0 0
    %2318 = vmatpush2.bf16.msra.mxu0 0
    %2319 = vmatprep.subr.bf16.mxu0 0
    %2320 = vmatpush2.bf16.msra.mxu0 0
    %2321 = vmatprep.subr.bf16.mxu0 0
    %2322 = vmatpush2.bf16.msra.mxu0 0
    %2323 = vmatprep.subr.bf16.mxu0 0
    %2324 = vmatpush2.bf16.msra.mxu0 0
    %2325 = vmatprep.subr.bf16.mxu0 0
    %2326 = vmatpush2.bf16.msra.mxu0 0
    %2327 = vmatprep.mubr.bf16.mxu0 0
    %2328 = vmatmul.mubr.bf16.gmra.mxu0 %v2237
    %v2329 = vpop.f32.mrf.mxu0
    %v2330 = vadd.f32 0.0, %v2329
    %v2331 = vpop.f32.mrf.mxu0
    %v2332 = vadd.f32 0.0, %v2331
    %v2333 = vpop.f32.mrf.mxu0
    %v2334 = vadd.f32 0.0, %v2333
    %v2335 = vpop.f32.mrf.mxu0
    %v2336 = vadd.f32 0.0, %v2335
    %2337 = vmatprep.mubr.bf16.mxu0 0
    %2338 = vmatmul.mubr.bf16.gmra.mxu0 %v2240
    %v2339 = vpop.f32.mrf.mxu0
    %v2340 = vadd.f32 0.0, %v2339
    %v2341 = vpop.f32.mrf.mxu0
    %v2342 = vadd.f32 0.0, %v2341
    %v2343 = vpop.f32.mrf.mxu0
    %v2344 = vadd.f32 0.0, %v2343
    %v2345 = vpop.f32.mrf.mxu0
    %v2346 = vadd.f32 0.0, %v2345
    %2347 = vdwg.mxu0
    %v2348 = vadd.f32 %v2078, %v2277
    %v2349 = vadd.f32 %v2080, %v2279
    %v2350 = vadd.f32 %v2131, %v2330
    %v2351 = vadd.f32 %v2133, %v2332
    %v2352 = vadd.f32 %v2082, %v2281
    %v2353 = vadd.f32 %v2084, %v2283
    %v2354 = vadd.f32 %v2135, %v2334
    %v2355 = vadd.f32 %v2137, %v2336
    %v2356 = vadd.f32 %v2088, %v2287
    %v2357 = vadd.f32 %v2090, %v2289
    %v2358 = vadd.f32 %v2141, %v2340
    %v2359 = vadd.f32 %v2143, %v2342
    %v2360 = vadd.f32 %v2092, %v2291
    %v2361 = vadd.f32 %v2094, %v2293
    %v2362 = vadd.f32 %v2145, %v2344
    %v2363 = vadd.f32 %v2147, %v2346
    %s2364 = scalar_lea.vmem %s3, 48
    %v2365 = vld [vmem:[%s2364] sm:$0xf]
    %v2366 = vld [vmem:[%s2364 + $0x4] sm:$0xf]
    %v2367 = vld [vmem:[%s2364 + $0x8] sm:$0xf]
    %v2368 = vld [vmem:[%s2364 + $0xc] sm:$0xf]
    %v2373 = vunpack.c.l.b16 %v2365
    %v2374 = vunpack.c.l.b16 %v2366
    %v2375 = vunpack.c.l.b16 %v2367
    %v2376 = vunpack.c.l.b16 %v2368
    %v2377 = vpack.c.b16 %v2374, %v2373
    %v2378 = vpack.c.b16 %v2376, %v2375
    %2379 = vrot.lane.b32.xlu0 %v1765, 80
    %v2380 = vpop.permute.xlu0 %2379
    %2381 = vrot.lane.b32.xlu0 %v1766, 80
    %v2382 = vpop.permute.xlu0 %2381
    %2383 = vrot.lane.b32.xlu0 %v1767, 80
    %v2384 = vpop.permute.xlu0 %2383
    %2385 = vrot.lane.b32.xlu0 %v1768, 80
    %v2386 = vpop.permute.xlu0 %2385
    %2387 = vrot.lane.b32.xlu0 %v1769, 80
    %v2388 = vpop.permute.xlu0 %2387
    %2389 = vrot.lane.b32.xlu0 %v1780, 80
    %v2390 = vpop.permute.xlu0 %2389
    %2391 = vrot.lane.b32.xlu0 %v1781, 80
    %v2392 = vpop.permute.xlu0 %2391
    %2393 = vrot.lane.b32.xlu0 %v1782, 80
    %v2394 = vpop.permute.xlu0 %2393
    %2395 = vrot.lane.b32.xlu0 %v1783, 80
    %v2396 = vpop.permute.xlu0 %2395
    %2397 = vrot.lane.b32.xlu0 %v1779, 80
    %v2398 = vpop.permute.xlu0 %2397
    %2399 = vrot.lane.b32.xlu0 %v1798, 80
    %v2400 = vpop.permute.xlu0 %2399
    %2401 = vrot.lane.b32.xlu0 %v1799, 80
    %v2402 = vpop.permute.xlu0 %2401
    %2403 = vrot.lane.b32.xlu0 %v1800, 80
    %v2404 = vpop.permute.xlu0 %2403
    %2405 = vrot.lane.b32.xlu0 %v1801, 80
    %v2406 = vpop.permute.xlu0 %2405
    %2407 = vrot.lane.b32.xlu0 %v1797, 80
    %v2408 = vpop.permute.xlu0 %2407
    %2409 = vrot.lane.b32.xlu0 %v1816, 80
    %v2410 = vpop.permute.xlu0 %2409
    %2411 = vrot.lane.b32.xlu0 %v1817, 80
    %v2412 = vpop.permute.xlu0 %2411
    %2413 = vrot.lane.b32.xlu0 %v1818, 80
    %v2414 = vpop.permute.xlu0 %2413
    %2415 = vrot.lane.b32.xlu0 %v1819, 80
    %v2416 = vpop.permute.xlu0 %2415
    %2417 = vrot.lane.b32.xlu0 %v1815, 80
    %v2418 = vpop.permute.xlu0 %2417
    %v2419 = vsel %vm779, %v2380, %v2382
    %v2420 = vsel %vm779, %v2382, %v2384
    %v2421 = vsel %vm779, %v2384, %v2386
    %v2422 = vsel %vm779, %v2386, %v2388
    %v2423 = vsel %vm779, %v2390, %v2392
    %v2424 = vsel %vm779, %v2392, %v2394
    %v2425 = vsel %vm779, %v2394, %v2396
    %v2426 = vsel %vm779, %v2396, %v2398
    %v2427 = vsel %vm779, %v2400, %v2402
    %v2428 = vsel %vm779, %v2402, %v2404
    %v2429 = vsel %vm779, %v2404, %v2406
    %v2430 = vsel %vm779, %v2406, %v2408
    %v2431 = vsel %vm779, %v2410, %v2412
    %v2432 = vsel %vm779, %v2412, %v2414
    %v2433 = vsel %vm779, %v2414, %v2416
    %v2434 = vsel %vm779, %v2416, %v2418
    %v2452 = vsel %vm369, %v2377, 0
    %v2455 = vsel %vm369, %v2378, 0
    %2457 = vmatprep.subr.bf16.mxu0 0
    %2458 = vmatpush1.bf16.msra.mxu0 0
    %2459 = vmatprep.subr.bf16.mxu0 0
    %2460 = vmatpush1.bf16.msra.mxu0 0
    %2461 = vmatprep.subr.bf16.mxu0 0
    %2462 = vmatpush1.bf16.msra.mxu0 0
    %2463 = vmatprep.subr.bf16.mxu0 0
    %2464 = vmatpush1.bf16.msra.mxu0 0
    %2465 = vmatprep.subr.bf16.mxu0 %v2432
    %2466 = vmatpush1.bf16.msra.mxu0 %v2431
    %2467 = vmatprep.subr.bf16.mxu0 %v2428
    %2468 = vmatpush1.bf16.msra.mxu0 %v2427
    %2469 = vmatprep.subr.bf16.mxu0 %v2424
    %2470 = vmatpush1.bf16.msra.mxu0 %v2423
    %2471 = vmatprep.subr.bf16.mxu0 %v2420
    %2472 = vmatpush1.bf16.msra.mxu0 %v2419
    %2473 = vmatprep.subr.bf16.mxu0 0
    %2474 = vmatpush2.bf16.msra.mxu0 0
    %2475 = vmatprep.subr.bf16.mxu0 0
    %2476 = vmatpush2.bf16.msra.mxu0 0
    %2477 = vmatprep.subr.bf16.mxu0 0
    %2478 = vmatpush2.bf16.msra.mxu0 0
    %2479 = vmatprep.subr.bf16.mxu0 0
    %2480 = vmatpush2.bf16.msra.mxu0 0
    %2481 = vmatprep.subr.bf16.mxu0 0
    %2482 = vmatpush2.bf16.msra.mxu0 0
    %2483 = vmatprep.subr.bf16.mxu0 0
    %2484 = vmatpush2.bf16.msra.mxu0 0
    %2485 = vmatprep.subr.bf16.mxu0 0
    %2486 = vmatpush2.bf16.msra.mxu0 0
    %2487 = vmatprep.subr.bf16.mxu0 0
    %2488 = vmatpush2.bf16.msra.mxu0 0
    %2489 = vmatprep.mubr.bf16.mxu0 0
    %2490 = vmatmul.mubr.bf16.gmra.mxu0 %v2452
    %v2491 = vpop.f32.mrf.mxu0
    %v2492 = vadd.f32 0.0, %v2491
    %v2493 = vpop.f32.mrf.mxu0
    %v2494 = vadd.f32 0.0, %v2493
    %v2495 = vpop.f32.mrf.mxu0
    %v2496 = vadd.f32 0.0, %v2495
    %v2497 = vpop.f32.mrf.mxu0
    %v2498 = vadd.f32 0.0, %v2497
    %2499 = vmatprep.mubr.bf16.mxu0 0
    %2500 = vmatmul.mubr.bf16.gmra.mxu0 %v2455
    %v2501 = vpop.f32.mrf.mxu0
    %v2502 = vadd.f32 0.0, %v2501
    %v2503 = vpop.f32.mrf.mxu0
    %v2504 = vadd.f32 0.0, %v2503
    %v2505 = vpop.f32.mrf.mxu0
    %v2506 = vadd.f32 0.0, %v2505
    %v2507 = vpop.f32.mrf.mxu0
    %v2508 = vadd.f32 0.0, %v2507
    %2509 = vdwg.mxu0
    %2510 = vmatprep.subr.bf16.mxu0 0
    %2511 = vmatpush1.bf16.msra.mxu0 0
    %2512 = vmatprep.subr.bf16.mxu0 0
    %2513 = vmatpush1.bf16.msra.mxu0 0
    %2514 = vmatprep.subr.bf16.mxu0 0
    %2515 = vmatpush1.bf16.msra.mxu0 0
    %2516 = vmatprep.subr.bf16.mxu0 0
    %2517 = vmatpush1.bf16.msra.mxu0 0
    %2518 = vmatprep.subr.bf16.mxu0 %v2434
    %2519 = vmatpush1.bf16.msra.mxu0 %v2433
    %2520 = vmatprep.subr.bf16.mxu0 %v2430
    %2521 = vmatpush1.bf16.msra.mxu0 %v2429
    %2522 = vmatprep.subr.bf16.mxu0 %v2426
    %2523 = vmatpush1.bf16.msra.mxu0 %v2425
    %2524 = vmatprep.subr.bf16.mxu0 %v2422
    %2525 = vmatpush1.bf16.msra.mxu0 %v2421
    %2526 = vmatprep.subr.bf16.mxu0 0
    %2527 = vmatpush2.bf16.msra.mxu0 0
    %2528 = vmatprep.subr.bf16.mxu0 0
    %2529 = vmatpush2.bf16.msra.mxu0 0
    %2530 = vmatprep.subr.bf16.mxu0 0
    %2531 = vmatpush2.bf16.msra.mxu0 0
    %2532 = vmatprep.subr.bf16.mxu0 0
    %2533 = vmatpush2.bf16.msra.mxu0 0
    %2534 = vmatprep.subr.bf16.mxu0 0
    %2535 = vmatpush2.bf16.msra.mxu0 0
    %2536 = vmatprep.subr.bf16.mxu0 0
    %2537 = vmatpush2.bf16.msra.mxu0 0
    %2538 = vmatprep.subr.bf16.mxu0 0
    %2539 = vmatpush2.bf16.msra.mxu0 0
    %2540 = vmatprep.subr.bf16.mxu0 0
    %2541 = vmatpush2.bf16.msra.mxu0 0
    %2542 = vmatprep.mubr.bf16.mxu0 0
    %2543 = vmatmul.mubr.bf16.gmra.mxu0 %v2452
    %v2544 = vpop.f32.mrf.mxu0
    %v2545 = vadd.f32 0.0, %v2544
    %v2546 = vpop.f32.mrf.mxu0
    %v2547 = vadd.f32 0.0, %v2546
    %v2548 = vpop.f32.mrf.mxu0
    %v2549 = vadd.f32 0.0, %v2548
    %v2550 = vpop.f32.mrf.mxu0
    %v2551 = vadd.f32 0.0, %v2550
    %2552 = vmatprep.mubr.bf16.mxu0 0
    %2553 = vmatmul.mubr.bf16.gmra.mxu0 %v2455
    %v2554 = vpop.f32.mrf.mxu0
    %v2555 = vadd.f32 0.0, %v2554
    %v2556 = vpop.f32.mrf.mxu0
    %v2557 = vadd.f32 0.0, %v2556
    %v2558 = vpop.f32.mrf.mxu0
    %v2559 = vadd.f32 0.0, %v2558
    %v2560 = vpop.f32.mrf.mxu0
    %v2561 = vadd.f32 0.0, %v2560
    %2562 = vdwg.mxu0
    %v2563 = vadd.f32 %v2348, %v2492
    %v2564 = vadd.f32 %v2349, %v2494
    %v2565 = vadd.f32 %v2350, %v2545
    %v2566 = vadd.f32 %v2351, %v2547
    %v2567 = vadd.f32 %v2352, %v2496
    %v2568 = vadd.f32 %v2353, %v2498
    %v2569 = vadd.f32 %v2354, %v2549
    %v2570 = vadd.f32 %v2355, %v2551
    %v2571 = vadd.f32 %v2356, %v2502
    %v2572 = vadd.f32 %v2357, %v2504
    %v2573 = vadd.f32 %v2358, %v2555
    %v2574 = vadd.f32 %v2359, %v2557
    %v2575 = vadd.f32 %v2360, %v2506
    %v2576 = vadd.f32 %v2361, %v2508
    %v2577 = vadd.f32 %v2362, %v2559
    %v2578 = vadd.f32 %v2363, %v2561
    %2580 = vset.pattern.permute.xlu0 1
    %2581 = vperm.xlu0 %2580, %v1715
    %v2582 = vpop.permute.xlu0 %2581
    %2585 = vset.pattern.permute.xlu0 1
    %2586 = vperm.xlu0 %2585, %v1716
    %v2587 = vpop.permute.xlu0 %2586
    %2590 = vset.pattern.permute.xlu0 1
    %2591 = vperm.xlu0 %2590, %v1717
    %v2592 = vpop.permute.xlu0 %2591
    %2595 = vset.pattern.permute.xlu0 1
    %2596 = vperm.xlu0 %2595, %v1718
    %v2597 = vpop.permute.xlu0 %2596
    %v2599 = vadd.f32 %v2563, %v2582
    %v2600 = vadd.f32 %v2564, %v2582
    %v2601 = vadd.f32 %v2565, %v2582
    %v2602 = vadd.f32 %v2566, %v2582
    %v2603 = vadd.f32 %v2567, %v2587
    %v2604 = vadd.f32 %v2568, %v2587
    %v2605 = vadd.f32 %v2569, %v2587
    %v2606 = vadd.f32 %v2570, %v2587
    %v2607 = vadd.f32 %v2571, %v2592
    %v2608 = vadd.f32 %v2572, %v2592
    %v2609 = vadd.f32 %v2573, %v2592
    %v2610 = vadd.f32 %v2574, %v2592
    %v2611 = vadd.f32 %v2575, %v2597
    %v2612 = vadd.f32 %v2576, %v2597
    %v2613 = vadd.f32 %v2577, %v2597
    %v2614 = vadd.f32 %v2578, %v2597
    %vm2615 = vcmp.gt.f32.partialorder %v2599, 0.0
    %vm2616 = vcmp.gt.f32.partialorder %v2600, 0.0
    %vm2617 = vcmp.gt.f32.partialorder %v2601, 0.0
    %vm2618 = vcmp.gt.f32.partialorder %v2602, 0.0
    %vm2619 = vcmp.gt.f32.partialorder %v2603, 0.0
    %vm2620 = vcmp.gt.f32.partialorder %v2604, 0.0
    %vm2621 = vcmp.gt.f32.partialorder %v2605, 0.0
    %vm2622 = vcmp.gt.f32.partialorder %v2606, 0.0
    %vm2623 = vcmp.gt.f32.partialorder %v2607, 0.0
    %vm2624 = vcmp.gt.f32.partialorder %v2608, 0.0
    %vm2625 = vcmp.gt.f32.partialorder %v2609, 0.0
    %vm2626 = vcmp.gt.f32.partialorder %v2610, 0.0
    %vm2627 = vcmp.gt.f32.partialorder %v2611, 0.0
    %vm2628 = vcmp.gt.f32.partialorder %v2612, 0.0
    %vm2629 = vcmp.gt.f32.partialorder %v2613, 0.0
    %vm2630 = vcmp.gt.f32.partialorder %v2614, 0.0
    %v2631 = vmin.f32 %v2599, 0.0
    %v2632 = vmin.f32 %v2600, 0.0
    %v2633 = vmin.f32 %v2601, 0.0
    %v2634 = vmin.f32 %v2602, 0.0
    %v2635 = vmin.f32 %v2603, 0.0
    %v2636 = vmin.f32 %v2604, 0.0
    %v2637 = vmin.f32 %v2605, 0.0
    %v2638 = vmin.f32 %v2606, 0.0
    %v2639 = vmin.f32 %v2607, 0.0
    %v2640 = vmin.f32 %v2608, 0.0
    %v2641 = vmin.f32 %v2609, 0.0
    %v2642 = vmin.f32 %v2610, 0.0
    %v2643 = vmin.f32 %v2611, 0.0
    %v2644 = vmin.f32 %v2612, 0.0
    %v2645 = vmin.f32 %v2613, 0.0
    %v2646 = vmin.f32 %v2614, 0.0
    %v2647 = vmul.f32 %v2631, 1.442695
    %v2648 = vpow.pop %v2647
    %v2649 = vmul.f32 %v2632, 1.442695
    %v2650 = vpow.pop %v2649
    %v2651 = vmul.f32 %v2633, 1.442695
    %v2652 = vpow.pop %v2651
    %v2653 = vmul.f32 %v2634, 1.442695
    %v2654 = vpow.pop %v2653
    %v2655 = vmul.f32 %v2635, 1.442695
    %v2656 = vpow.pop %v2655
    %v2657 = vmul.f32 %v2636, 1.442695
    %v2658 = vpow.pop %v2657
    %v2659 = vmul.f32 %v2637, 1.442695
    %v2660 = vpow.pop %v2659
    %v2661 = vmul.f32 %v2638, 1.442695
    %v2662 = vpow.pop %v2661
    %v2663 = vmul.f32 %v2639, 1.442695
    %v2664 = vpow.pop %v2663
    %v2665 = vmul.f32 %v2640, 1.442695
    %v2666 = vpow.pop %v2665
    %v2667 = vmul.f32 %v2641, 1.442695
    %v2668 = vpow.pop %v2667
    %v2669 = vmul.f32 %v2642, 1.442695
    %v2670 = vpow.pop %v2669
    %v2671 = vmul.f32 %v2643, 1.442695
    %v2672 = vpow.pop %v2671
    %v2673 = vmul.f32 %v2644, 1.442695
    %v2674 = vpow.pop %v2673
    %v2675 = vmul.f32 %v2645, 1.442695
    %v2676 = vpow.pop %v2675
    %v2677 = vmul.f32 %v2646, 1.442695
    %v2678 = vpow.pop %v2677
    %v2679 = vsub.f32 %v2648, 1.0
    %v2680 = vsub.f32 %v2650, 1.0
    %v2681 = vsub.f32 %v2652, 1.0
    %v2682 = vsub.f32 %v2654, 1.0
    %v2683 = vsub.f32 %v2656, 1.0
    %v2684 = vsub.f32 %v2658, 1.0
    %v2685 = vsub.f32 %v2660, 1.0
    %v2686 = vsub.f32 %v2662, 1.0
    %v2687 = vsub.f32 %v2664, 1.0
    %v2688 = vsub.f32 %v2666, 1.0
    %v2689 = vsub.f32 %v2668, 1.0
    %v2690 = vsub.f32 %v2670, 1.0
    %v2691 = vsub.f32 %v2672, 1.0
    %v2692 = vsub.f32 %v2674, 1.0
    %v2693 = vsub.f32 %v2676, 1.0
    %v2694 = vsub.f32 %v2678, 1.0
    %v2695 = vsel %vm2615, %v2599, %v2679
    %v2696 = vsel %vm2616, %v2600, %v2680
    %v2697 = vsel %vm2617, %v2601, %v2681
    %v2698 = vsel %vm2618, %v2602, %v2682
    %v2699 = vsel %vm2619, %v2603, %v2683
    %v2700 = vsel %vm2620, %v2604, %v2684
    %v2701 = vsel %vm2621, %v2605, %v2685
    %v2702 = vsel %vm2622, %v2606, %v2686
    %v2703 = vsel %vm2623, %v2607, %v2687
    %v2704 = vsel %vm2624, %v2608, %v2688
    %v2705 = vsel %vm2625, %v2609, %v2689
    %v2706 = vsel %vm2626, %v2610, %v2690
    %v2707 = vsel %vm2627, %v2611, %v2691
    %v2708 = vsel %vm2628, %v2612, %v2692
    %v2709 = vsel %vm2629, %v2613, %v2693
    %v2710 = vsel %vm2630, %v2614, %v2694
    %v2711 = vpack.c.bf16 %v2699, %v2695
    %v2712 = vpack.c.bf16 %v2700, %v2696
    %v2713 = vpack.c.bf16 %v2701, %v2697
    %v2714 = vpack.c.bf16 %v2702, %v2698
    %v2715 = vpack.c.bf16 %v2707, %v2703
    %v2716 = vpack.c.bf16 %v2708, %v2704
    %v2717 = vpack.c.bf16 %v2709, %v2705
    %v2718 = vpack.c.bf16 %v2710, %v2706
    %v2727 = vunpack.c.l.b16 %v2711
    %v2728 = vunpack.c.l.b16 %v2712
    %v2729 = vunpack.c.l.b16 %v2713
    %v2730 = vunpack.c.l.b16 %v2714
    %v2731 = vunpack.c.h.b16 %v2711
    %v2732 = vunpack.c.h.b16 %v2712
    %v2733 = vunpack.c.h.b16 %v2713
    %v2734 = vunpack.c.h.b16 %v2714
    %v2735 = vunpack.c.l.b16 %v2715
    %v2736 = vunpack.c.l.b16 %v2716
    %v2737 = vunpack.c.l.b16 %v2717
    %v2738 = vunpack.c.l.b16 %v2718
    %v2739 = vunpack.c.h.b16 %v2715
    %v2740 = vunpack.c.h.b16 %v2716
    %v2741 = vunpack.c.h.b16 %v2717
    %v2742 = vunpack.c.h.b16 %v2718
    %v2743 = vpack.c.b16 %v2728, %v2727
    %v2744 = vpack.c.b16 %v2730, %v2729
    %v2745 = vpack.c.b16 %v2732, %v2731
    %v2746 = vpack.c.b16 %v2734, %v2733
    %v2747 = vpack.c.b16 %v2736, %v2735
    %v2748 = vpack.c.b16 %v2738, %v2737
    %v2749 = vpack.c.b16 %v2740, %v2739
    %v2750 = vpack.c.b16 %v2742, %v2741
    %2759 = vst [vmem:[#allocation3] sm:$0xff] %v2743
    %2760 = vst [vmem:[#allocation3 + $0x8] sm:$0xff] %v2744
    %2761 = vst [vmem:[#allocation3 + $0x14] sm:$0xff] %v2745
    %2762 = vst [vmem:[#allocation3 + $0x1c] sm:$0xff] %v2746
    %2763 = vst [vmem:[#allocation3 + $0x28] sm:$0xff] %v2747
    %2764 = vst [vmem:[#allocation3 + $0x30] sm:$0xff] %v2748
    %2765 = vst [vmem:[#allocation3 + $0x3c] sm:$0xff] %v2749
    %2766 = vst [vmem:[#allocation3 + $0x44] sm:$0xff] %v2750
    %v2767 = vld [vmem:[%s5] sm:$0xff]
    %v2768 = vld [vmem:[%s5 + $0x8] sm:$0xff]
    %v2769 = vld [vmem:[%s5 + $0x10] sm:$0xff]
    %v2770 = vld [vmem:[%s5 + $0x18] sm:$0xff]
    %v2771 = vld [vmem:[%s5 + $0x20] sm:$0xff]
    %v2772 = vld [vmem:[%s5 + $0x28] sm:$0xff]
    %v2773 = vld [vmem:[%s5 + $0x30] sm:$0xff]
    %v2774 = vld [vmem:[%s5 + $0x38] sm:$0xff]
    %v2775 = vld [vmem:[#allocation3] sm:$0xff]
    %v2776 = vld [vmem:[#allocation3 + $0x8] sm:$0xff]
    %v2777 = vld [vmem:[#allocation3 + $0x14] sm:$0xff]
    %v2778 = vld [vmem:[#allocation3 + $0x1c] sm:$0xff]
    %v2779 = vld [vmem:[#allocation3 + $0x28] sm:$0xff]
    %v2780 = vld [vmem:[#allocation3 + $0x30] sm:$0xff]
    %v2781 = vld [vmem:[#allocation3 + $0x3c] sm:$0xff]
    %v2782 = vld [vmem:[#allocation3 + $0x44] sm:$0xff]
    %v2783 = vld [vmem:[#allocation3] sm:$0xff]
    %v2784 = vld [vmem:[#allocation3 + $0x8] sm:$0xff]
    %v2785 = vld [vmem:[#allocation3 + $0x10] sm:$0xf]
    %v2786 = vld [vmem:[#allocation3 + $0x14] sm:$0xff]
    %v2787 = vld [vmem:[#allocation3 + $0x1c] sm:$0xff]
    %v2788 = vld [vmem:[#allocation3 + $0x24] sm:$0xf]
    %v2789 = vld [vmem:[#allocation3 + $0x28] sm:$0xff]
    %v2790 = vld [vmem:[#allocation3 + $0x30] sm:$0xff]
    %v2791 = vld [vmem:[#allocation3 + $0x38] sm:$0xf]
    %v2792 = vld [vmem:[#allocation3 + $0x3c] sm:$0xff]
    %v2793 = vld [vmem:[#allocation3 + $0x44] sm:$0xff]
    %v2794 = vld [vmem:[#allocation3 + $0x4c] sm:$0xf]
    %v2803 = vunpack.c.l.b16 %v2775
    %v2804 = vunpack.c.h.b16 %v2775
    %v2805 = vunpack.c.l.b16 %v2776
    %v2806 = vunpack.c.h.b16 %v2776
    %v2807 = vunpack.c.l.b16 %v2777
    %v2808 = vunpack.c.h.b16 %v2777
    %v2809 = vunpack.c.l.b16 %v2778
    %v2810 = vunpack.c.h.b16 %v2778
    %v2811 = vunpack.c.l.b16 %v2779
    %v2812 = vunpack.c.h.b16 %v2779
    %v2813 = vunpack.c.l.b16 %v2780
    %v2814 = vunpack.c.h.b16 %v2780
    %v2815 = vunpack.c.l.b16 %v2781
    %v2816 = vunpack.c.h.b16 %v2781
    %v2817 = vunpack.c.l.b16 %v2782
    %v2818 = vunpack.c.h.b16 %v2782
    %v2819 = vpack.c.b16 %v2807, %v2803
    %v2820 = vpack.c.b16 %v2808, %v2804
    %v2821 = vpack.c.b16 %v2809, %v2805
    %v2822 = vpack.c.b16 %v2810, %v2806
    %v2823 = vpack.c.b16 %v2815, %v2811
    %v2824 = vpack.c.b16 %v2816, %v2812
    %v2825 = vpack.c.b16 %v2817, %v2813
    %v2826 = vpack.c.b16 %v2818, %v2814
    %v2847 = vunpack.c.l.b16 %v2783
    %v2848 = vunpack.c.h.b16 %v2783
    %v2849 = vunpack.c.l.b16 %v2784
    %v2850 = vunpack.c.h.b16 %v2784
    %v2851 = vunpack.c.l.b16 %v2785
    %v2852 = vunpack.c.l.b16 %v2786
    %v2853 = vunpack.c.h.b16 %v2786
    %v2854 = vunpack.c.l.b16 %v2787
    %v2855 = vunpack.c.h.b16 %v2787
    %v2856 = vunpack.c.l.b16 %v2788
    %v2857 = vunpack.c.l.b16 %v2789
    %v2858 = vunpack.c.h.b16 %v2789
    %v2859 = vunpack.c.l.b16 %v2790
    %v2860 = vunpack.c.h.b16 %v2790
    %v2861 = vunpack.c.l.b16 %v2791
    %v2862 = vunpack.c.l.b16 %v2792
    %v2863 = vunpack.c.h.b16 %v2792
    %v2864 = vunpack.c.l.b16 %v2793
    %v2865 = vunpack.c.h.b16 %v2793
    %v2866 = vunpack.c.l.b16 %v2794
    %v2867 = vpack.c.b16 %v2852, %v2847
    %v2868 = vpack.c.b16 %v2853, %v2848
    %v2869 = vpack.c.b16 %v2854, %v2849
    %v2870 = vpack.c.b16 %v2855, %v2850
    %v2871 = vpack.c.b16 %v2856, %v2851
    %v2872 = vpack.c.b16 %v2862, %v2857
    %v2873 = vpack.c.b16 %v2863, %v2858
    %v2874 = vpack.c.b16 %v2864, %v2859
    %v2875 = vpack.c.b16 %v2865, %v2860
    %v2876 = vpack.c.b16 %v2866, %v2861
    %2877 = vrot.lane.b32.xlu0 %v2867, 127
    %v2878 = vpop.permute.xlu0 %2877
    %2879 = vrot.lane.b32.xlu0 %v2868, 127
    %v2880 = vpop.permute.xlu0 %2879
    %2881 = vrot.lane.b32.xlu0 %v2869, 127
    %v2882 = vpop.permute.xlu0 %2881
    %2883 = vrot.lane.b32.xlu0 %v2870, 127
    %v2884 = vpop.permute.xlu0 %2883
    %2885 = vrot.lane.b32.xlu0 %v2871, 127
    %v2886 = vpop.permute.xlu0 %2885
    %2887 = vrot.lane.b32.xlu0 %v2872, 127
    %v2888 = vpop.permute.xlu0 %2887
    %2889 = vrot.lane.b32.xlu0 %v2873, 127
    %v2890 = vpop.permute.xlu0 %2889
    %2891 = vrot.lane.b32.xlu0 %v2874, 127
    %v2892 = vpop.permute.xlu0 %2891
    %2893 = vrot.lane.b32.xlu0 %v2875, 127
    %v2894 = vpop.permute.xlu0 %2893
    %2895 = vrot.lane.b32.xlu0 %v2876, 127
    %v2896 = vpop.permute.xlu0 %2895
    %v2897 = vsel %vm86, %v2878, %v2880
    %v2898 = vsel %vm86, %v2880, %v2882
    %v2899 = vsel %vm86, %v2882, %v2884
    %v2900 = vsel %vm86, %v2884, %v2886
    %v2901 = vsel %vm86, %v2888, %v2890
    %v2902 = vsel %vm86, %v2890, %v2892
    %v2903 = vsel %vm86, %v2892, %v2894
    %v2904 = vsel %vm86, %v2894, %v2896
    %2913 = vrot.lane.b32.xlu0 %v2867, 126
    %v2914 = vpop.permute.xlu0 %2913
    %2915 = vrot.lane.b32.xlu0 %v2868, 126
    %v2916 = vpop.permute.xlu0 %2915
    %2917 = vrot.lane.b32.xlu0 %v2869, 126
    %v2918 = vpop.permute.xlu0 %2917
    %2919 = vrot.lane.b32.xlu0 %v2870, 126
    %v2920 = vpop.permute.xlu0 %2919
    %2921 = vrot.lane.b32.xlu0 %v2871, 126
    %v2922 = vpop.permute.xlu0 %2921
    %2923 = vrot.lane.b32.xlu0 %v2872, 126
    %v2924 = vpop.permute.xlu0 %2923
    %2925 = vrot.lane.b32.xlu0 %v2873, 126
    %v2926 = vpop.permute.xlu0 %2925
    %2927 = vrot.lane.b32.xlu0 %v2874, 126
    %v2928 = vpop.permute.xlu0 %2927
    %2929 = vrot.lane.b32.xlu0 %v2875, 126
    %v2930 = vpop.permute.xlu0 %2929
    %2931 = vrot.lane.b32.xlu0 %v2876, 126
    %v2932 = vpop.permute.xlu0 %2931
    %v2933 = vsel %vm101, %v2914, %v2916
    %v2934 = vsel %vm101, %v2916, %v2918
    %v2935 = vsel %vm101, %v2918, %v2920
    %v2936 = vsel %vm101, %v2920, %v2922
    %v2937 = vsel %vm101, %v2924, %v2926
    %v2938 = vsel %vm101, %v2926, %v2928
    %v2939 = vsel %vm101, %v2928, %v2930
    %v2940 = vsel %vm101, %v2930, %v2932
    %v2949 = vld [vmem:[%s4] sm:$0xf]
    %v2950 = vld [vmem:[%s4 + $0x4] sm:$0xf]
    %v2951 = vld [vmem:[%s4 + $0x8] sm:$0xf]
    %v2952 = vld [vmem:[%s4 + $0xc] sm:$0xf]
    %v2953 = vld [vmem:[%s4 + $0x10] sm:$0xf]
    %v2954 = vld [vmem:[%s4 + $0x14] sm:$0xf]
    %v2955 = vld [vmem:[%s4 + $0x18] sm:$0xf]
    %v2956 = vld [vmem:[%s4 + $0x1c] sm:$0xf]
    %s2957 = scalar_lea.vmem %s4, 32
    %v2958 = vld [vmem:[%s2957] sm:$0xf]
    %v2959 = vld [vmem:[%s2957 + $0x4] sm:$0xf]
    %v2960 = vld [vmem:[%s2957 + $0x8] sm:$0xf]
    %v2961 = vld [vmem:[%s2957 + $0xc] sm:$0xf]
    %v2962 = vld [vmem:[%s2957 + $0x10] sm:$0xf]
    %v2963 = vld [vmem:[%s2957 + $0x14] sm:$0xf]
    %v2964 = vld [vmem:[%s2957 + $0x18] sm:$0xf]
    %v2965 = vld [vmem:[%s2957 + $0x1c] sm:$0xf]
    %v2974 = vunpack.c.l.b16 %v2958
    %v2975 = vunpack.c.l.b16 %v2959
    %v2976 = vunpack.c.l.b16 %v2960
    %v2977 = vunpack.c.l.b16 %v2961
    %v2978 = vunpack.c.l.b16 %v2962
    %v2979 = vunpack.c.l.b16 %v2963
    %v2980 = vunpack.c.l.b16 %v2964
    %v2981 = vunpack.c.l.b16 %v2965
    %v2982 = vpack.c.b16 %v2975, %v2974
    %v2983 = vpack.c.b16 %v2977, %v2976
    %v2984 = vpack.c.b16 %v2979, %v2978
    %v2985 = vpack.c.b16 %v2981, %v2980
    %2986 = vrot.lane.b32.xlu0 %v2867, 112
    %v2987 = vpop.permute.xlu0 %2986
    %2988 = vrot.lane.b32.xlu0 %v2868, 112
    %v2989 = vpop.permute.xlu0 %2988
    %2990 = vrot.lane.b32.xlu0 %v2869, 112
    %v2991 = vpop.permute.xlu0 %2990
    %2992 = vrot.lane.b32.xlu0 %v2870, 112
    %v2993 = vpop.permute.xlu0 %2992
    %2994 = vrot.lane.b32.xlu0 %v2871, 112
    %v2995 = vpop.permute.xlu0 %2994
    %2996 = vrot.lane.b32.xlu0 %v2872, 112
    %v2997 = vpop.permute.xlu0 %2996
    %2998 = vrot.lane.b32.xlu0 %v2873, 112
    %v2999 = vpop.permute.xlu0 %2998
    %3000 = vrot.lane.b32.xlu0 %v2874, 112
    %v3001 = vpop.permute.xlu0 %3000
    %3002 = vrot.lane.b32.xlu0 %v2875, 112
    %v3003 = vpop.permute.xlu0 %3002
    %3004 = vrot.lane.b32.xlu0 %v2876, 112
    %v3005 = vpop.permute.xlu0 %3004
    %3006 = vrot.lane.b32.xlu0 %v2897, 112
    %v3007 = vpop.permute.xlu0 %3006
    %3008 = vrot.lane.b32.xlu0 %v2898, 112
    %v3009 = vpop.permute.xlu0 %3008
    %3010 = vrot.lane.b32.xlu0 %v2899, 112
    %v3011 = vpop.permute.xlu0 %3010
    %3012 = vrot.lane.b32.xlu0 %v2900, 112
    %v3013 = vpop.permute.xlu0 %3012
    %3014 = vrot.lane.b32.xlu0 %v2886, 112
    %v3015 = vpop.permute.xlu0 %3014
    %3016 = vrot.lane.b32.xlu0 %v2901, 112
    %v3017 = vpop.permute.xlu0 %3016
    %3018 = vrot.lane.b32.xlu0 %v2902, 112
    %v3019 = vpop.permute.xlu0 %3018
    %3020 = vrot.lane.b32.xlu0 %v2903, 112
    %v3021 = vpop.permute.xlu0 %3020
    %3022 = vrot.lane.b32.xlu0 %v2904, 112
    %v3023 = vpop.permute.xlu0 %3022
    %3024 = vrot.lane.b32.xlu0 %v2896, 112
    %v3025 = vpop.permute.xlu0 %3024
    %3026 = vrot.lane.b32.xlu0 %v2933, 112
    %v3027 = vpop.permute.xlu0 %3026
    %3028 = vrot.lane.b32.xlu0 %v2934, 112
    %v3029 = vpop.permute.xlu0 %3028
    %3030 = vrot.lane.b32.xlu0 %v2935, 112
    %v3031 = vpop.permute.xlu0 %3030
    %3032 = vrot.lane.b32.xlu0 %v2936, 112
    %v3033 = vpop.permute.xlu0 %3032
    %3034 = vrot.lane.b32.xlu0 %v2922, 112
    %v3035 = vpop.permute.xlu0 %3034
    %3036 = vrot.lane.b32.xlu0 %v2937, 112
    %v3037 = vpop.permute.xlu0 %3036
    %3038 = vrot.lane.b32.xlu0 %v2938, 112
    %v3039 = vpop.permute.xlu0 %3038
    %3040 = vrot.lane.b32.xlu0 %v2939, 112
    %v3041 = vpop.permute.xlu0 %3040
    %3042 = vrot.lane.b32.xlu0 %v2940, 112
    %v3043 = vpop.permute.xlu0 %3042
    %3044 = vrot.lane.b32.xlu0 %v2932, 112
    %v3045 = vpop.permute.xlu0 %3044
    %v3046 = vsel %vm336, %v2987, %v2989
    %v3047 = vsel %vm336, %v2989, %v2991
    %v3048 = vsel %vm336, %v2991, %v2993
    %v3049 = vsel %vm336, %v2993, %v2995
    %v3050 = vsel %vm336, %v2997, %v2999
    %v3051 = vsel %vm336, %v2999, %v3001
    %v3052 = vsel %vm336, %v3001, %v3003
    %v3053 = vsel %vm336, %v3003, %v3005
    %v3054 = vsel %vm336, %v3007, %v3009
    %v3055 = vsel %vm336, %v3009, %v3011
    %v3056 = vsel %vm336, %v3011, %v3013
    %v3057 = vsel %vm336, %v3013, %v3015
    %v3058 = vsel %vm336, %v3017, %v3019
    %v3059 = vsel %vm336, %v3019, %v3021
    %v3060 = vsel %vm336, %v3021, %v3023
    %v3061 = vsel %vm336, %v3023, %v3025
    %v3062 = vsel %vm336, %v3027, %v3029
    %v3063 = vsel %vm336, %v3029, %v3031
    %v3064 = vsel %vm336, %v3031, %v3033
    %v3065 = vsel %vm336, %v3033, %v3035
    %v3066 = vsel %vm336, %v3037, %v3039
    %v3067 = vsel %vm336, %v3039, %v3041
    %v3068 = vsel %vm336, %v3041, %v3043
    %v3069 = vsel %vm336, %v3043, %v3045
    %vm3094 = vcmask 785408
    %v3096 = vsel %vm3094, %v2982, 0
    %v3099 = vsel %vm3094, %v2983, 0
    %v3102 = vsel %vm3094, %v2984, 0
    %v3105 = vsel %vm3094, %v2985, 0
    %3107 = vmatprep.subr.bf16.mxu0 0
    %3108 = vmatpush1.bf16.msra.mxu0 0
    %3109 = vmatprep.subr.bf16.mxu0 0
    %3110 = vmatpush1.bf16.msra.mxu0 0
    %3111 = vmatprep.subr.bf16.mxu0 %v3067
    %3112 = vmatpush1.bf16.msra.mxu0 %v3066
    %3113 = vmatprep.subr.bf16.mxu0 %v3063
    %3114 = vmatpush1.bf16.msra.mxu0 %v3062
    %3115 = vmatprep.subr.bf16.mxu0 %v3059
    %3116 = vmatpush1.bf16.msra.mxu0 %v3058
    %3117 = vmatprep.subr.bf16.mxu0 %v3055
    %3118 = vmatpush1.bf16.msra.mxu0 %v3054
    %3119 = vmatprep.subr.bf16.mxu0 %v3051
    %3120 = vmatpush1.bf16.msra.mxu0 %v3050
    %3121 = vmatprep.subr.bf16.mxu0 %v3047
    %3122 = vmatpush1.bf16.msra.mxu0 %v3046
    %3123 = vmatprep.subr.bf16.mxu0 0
    %3124 = vmatpush2.bf16.msra.mxu0 0
    %3125 = vmatprep.subr.bf16.mxu0 0
    %3126 = vmatpush2.bf16.msra.mxu0 0
    %3127 = vmatprep.subr.bf16.mxu0 0
    %3128 = vmatpush2.bf16.msra.mxu0 0
    %3129 = vmatprep.subr.bf16.mxu0 0
    %3130 = vmatpush2.bf16.msra.mxu0 0
    %3131 = vmatprep.subr.bf16.mxu0 0
    %3132 = vmatpush2.bf16.msra.mxu0 0
    %3133 = vmatprep.subr.bf16.mxu0 0
    %3134 = vmatpush2.bf16.msra.mxu0 0
    %3135 = vmatprep.subr.bf16.mxu0 0
    %3136 = vmatpush2.bf16.msra.mxu0 0
    %3137 = vmatprep.subr.bf16.mxu0 0
    %3138 = vmatpush2.bf16.msra.mxu0 0
    %3139 = vmatprep.mubr.bf16.mxu0 0
    %3140 = vmatmul.mubr.bf16.gmra.mxu0 %v3096
    %v3141 = vpop.f32.mrf.mxu0
    %v3142 = vadd.f32 0.0, %v3141
    %v3143 = vpop.f32.mrf.mxu0
    %v3144 = vpop.f32.mrf.mxu0
    %v3145 = vadd.f32 0.0, %v3144
    %v3146 = vpop.f32.mrf.mxu0
    %3147 = vmatprep.mubr.bf16.mxu0 0
    %3148 = vmatmul.mubr.bf16.gmra.mxu0 %v3099
    %v3149 = vpop.f32.mrf.mxu0
    %v3150 = vadd.f32 0.0, %v3149
    %v3151 = vpop.f32.mrf.mxu0
    %v3152 = vpop.f32.mrf.mxu0
    %v3153 = vadd.f32 0.0, %v3152
    %v3154 = vpop.f32.mrf.mxu0
    %3155 = vmatprep.mubr.bf16.mxu0 0
    %3156 = vmatmul.mubr.bf16.gmra.mxu0 %v3102
    %v3157 = vpop.f32.mrf.mxu0
    %v3158 = vadd.f32 0.0, %v3157
    %v3159 = vpop.f32.mrf.mxu0
    %v3160 = vpop.f32.mrf.mxu0
    %v3161 = vadd.f32 0.0, %v3160
    %v3162 = vpop.f32.mrf.mxu0
    %3163 = vmatprep.mubr.bf16.mxu0 0
    %3164 = vmatmul.mubr.bf16.gmra.mxu0 %v3105
    %v3165 = vpop.f32.mrf.mxu0
    %v3166 = vadd.f32 0.0, %v3165
    %v3167 = vpop.f32.mrf.mxu0
    %v3168 = vpop.f32.mrf.mxu0
    %v3169 = vadd.f32 0.0, %v3168
    %v3170 = vpop.f32.mrf.mxu0
    %3171 = vdwg.mxu0
    %3172 = vmatprep.subr.bf16.mxu0 0
    %3173 = vmatpush1.bf16.msra.mxu0 0
    %3174 = vmatprep.subr.bf16.mxu0 0
    %3175 = vmatpush1.bf16.msra.mxu0 0
    %3176 = vmatprep.subr.bf16.mxu0 %v3069
    %3177 = vmatpush1.bf16.msra.mxu0 %v3068
    %3178 = vmatprep.subr.bf16.mxu0 %v3065
    %3179 = vmatpush1.bf16.msra.mxu0 %v3064
    %3180 = vmatprep.subr.bf16.mxu0 %v3061
    %3181 = vmatpush1.bf16.msra.mxu0 %v3060
    %3182 = vmatprep.subr.bf16.mxu0 %v3057
    %3183 = vmatpush1.bf16.msra.mxu0 %v3056
    %3184 = vmatprep.subr.bf16.mxu0 %v3053
    %3185 = vmatpush1.bf16.msra.mxu0 %v3052
    %3186 = vmatprep.subr.bf16.mxu0 %v3049
    %3187 = vmatpush1.bf16.msra.mxu0 %v3048
    %3188 = vmatprep.subr.bf16.mxu0 0
    %3189 = vmatpush2.bf16.msra.mxu0 0
    %3190 = vmatprep.subr.bf16.mxu0 0
    %3191 = vmatpush2.bf16.msra.mxu0 0
    %3192 = vmatprep.subr.bf16.mxu0 0
    %3193 = vmatpush2.bf16.msra.mxu0 0
    %3194 = vmatprep.subr.bf16.mxu0 0
    %3195 = vmatpush2.bf16.msra.mxu0 0
    %3196 = vmatprep.subr.bf16.mxu0 0
    %3197 = vmatpush2.bf16.msra.mxu0 0
    %3198 = vmatprep.subr.bf16.mxu0 0
    %3199 = vmatpush2.bf16.msra.mxu0 0
    %3200 = vmatprep.subr.bf16.mxu0 0
    %3201 = vmatpush2.bf16.msra.mxu0 0
    %3202 = vmatprep.subr.bf16.mxu0 0
    %3203 = vmatpush2.bf16.msra.mxu0 0
    %3204 = vmatprep.mubr.bf16.mxu0 0
    %3205 = vmatmul.mubr.bf16.gmra.mxu0 %v3096
    %v3206 = vpop.f32.mrf.mxu0
    %v3207 = vadd.f32 0.0, %v3206
    %v3208 = vpop.f32.mrf.mxu0
    %v3209 = vpop.f32.mrf.mxu0
    %v3210 = vadd.f32 0.0, %v3209
    %v3211 = vpop.f32.mrf.mxu0
    %3212 = vmatprep.mubr.bf16.mxu0 0
    %3213 = vmatmul.mubr.bf16.gmra.mxu0 %v3099
    %v3214 = vpop.f32.mrf.mxu0
    %v3215 = vadd.f32 0.0, %v3214
    %v3216 = vpop.f32.mrf.mxu0
    %v3217 = vpop.f32.mrf.mxu0
    %v3218 = vadd.f32 0.0, %v3217
    %v3219 = vpop.f32.mrf.mxu0
    %3220 = vmatprep.mubr.bf16.mxu0 0
    %3221 = vmatmul.mubr.bf16.gmra.mxu0 %v3102
    %v3222 = vpop.f32.mrf.mxu0
    %v3223 = vadd.f32 0.0, %v3222
    %v3224 = vpop.f32.mrf.mxu0
    %v3225 = vpop.f32.mrf.mxu0
    %v3226 = vadd.f32 0.0, %v3225
    %v3227 = vpop.f32.mrf.mxu0
    %3228 = vmatprep.mubr.bf16.mxu0 0
    %3229 = vmatmul.mubr.bf16.gmra.mxu0 %v3105
    %v3230 = vpop.f32.mrf.mxu0
    %v3231 = vadd.f32 0.0, %v3230
    %v3232 = vpop.f32.mrf.mxu0
    %v3233 = vpop.f32.mrf.mxu0
    %v3234 = vadd.f32 0.0, %v3233
    %v3235 = vpop.f32.mrf.mxu0
    %3236 = vdwg.mxu0
    %v3245 = vunpack.c.l.b16 %v2949
    %v3246 = vunpack.c.l.b16 %v2950
    %v3247 = vunpack.c.l.b16 %v2951
    %v3248 = vunpack.c.l.b16 %v2952
    %v3249 = vunpack.c.l.b16 %v2953
    %v3250 = vunpack.c.l.b16 %v2954
    %v3251 = vunpack.c.l.b16 %v2955
    %v3252 = vunpack.c.l.b16 %v2956
    %v3253 = vpack.c.b16 %v3246, %v3245
    %v3254 = vpack.c.b16 %v3248, %v3247
    %v3255 = vpack.c.b16 %v3250, %v3249
    %v3256 = vpack.c.b16 %v3252, %v3251
    %v3258 = vsel %vm3094, %v3253, 0
    %v3261 = vsel %vm3094, %v3254, 0
    %v3264 = vsel %vm3094, %v3255, 0
    %v3267 = vsel %vm3094, %v3256, 0
    %3269 = vmatprep.subr.bf16.mxu0 0
    %3270 = vmatpush1.bf16.msra.mxu0 0
    %3271 = vmatprep.subr.bf16.mxu0 0
    %3272 = vmatpush1.bf16.msra.mxu0 0
    %3273 = vmatprep.subr.bf16.mxu0 %v2938
    %3274 = vmatpush1.bf16.msra.mxu0 %v2937
    %3275 = vmatprep.subr.bf16.mxu0 %v2934
    %3276 = vmatpush1.bf16.msra.mxu0 %v2933
    %3277 = vmatprep.subr.bf16.mxu0 %v2902
    %3278 = vmatpush1.bf16.msra.mxu0 %v2901
    %3279 = vmatprep.subr.bf16.mxu0 %v2898
    %3280 = vmatpush1.bf16.msra.mxu0 %v2897
    %3281 = vmatprep.subr.bf16.mxu0 %v2824
    %3282 = vmatpush1.bf16.msra.mxu0 %v2823
    %3283 = vmatprep.subr.bf16.mxu0 %v2820
    %3284 = vmatpush1.bf16.msra.mxu0 %v2819
    %3285 = vmatprep.subr.bf16.mxu0 0
    %3286 = vmatpush2.bf16.msra.mxu0 0
    %3287 = vmatprep.subr.bf16.mxu0 0
    %3288 = vmatpush2.bf16.msra.mxu0 0
    %3289 = vmatprep.subr.bf16.mxu0 0
    %3290 = vmatpush2.bf16.msra.mxu0 0
    %3291 = vmatprep.subr.bf16.mxu0 0
    %3292 = vmatpush2.bf16.msra.mxu0 0
    %3293 = vmatprep.subr.bf16.mxu0 0
    %3294 = vmatpush2.bf16.msra.mxu0 0
    %3295 = vmatprep.subr.bf16.mxu0 0
    %3296 = vmatpush2.bf16.msra.mxu0 0
    %3297 = vmatprep.subr.bf16.mxu0 0
    %3298 = vmatpush2.bf16.msra.mxu0 0
    %3299 = vmatprep.subr.bf16.mxu0 0
    %3300 = vmatpush2.bf16.msra.mxu0 0
    %3301 = vmatprep.mubr.bf16.mxu0 0
    %3302 = vmatmul.mubr.bf16.gmra.mxu0 %v3258
    %v3303 = vpop.f32.mrf.mxu0
    %v3304 = vadd.f32 %v3142, %v3303
    %v3305 = vpop.f32.mrf.mxu0
    %v3306 = vpop.f32.mrf.mxu0
    %v3307 = vadd.f32 %v3145, %v3306
    %v3308 = vpop.f32.mrf.mxu0
    %3309 = vmatprep.mubr.bf16.mxu0 0
    %3310 = vmatmul.mubr.bf16.gmra.mxu0 %v3261
    %v3311 = vpop.f32.mrf.mxu0
    %v3312 = vadd.f32 %v3150, %v3311
    %v3313 = vpop.f32.mrf.mxu0
    %v3314 = vpop.f32.mrf.mxu0
    %v3315 = vadd.f32 %v3153, %v3314
    %v3316 = vpop.f32.mrf.mxu0
    %3317 = vmatprep.mubr.bf16.mxu0 0
    %3318 = vmatmul.mubr.bf16.gmra.mxu0 %v3264
    %v3319 = vpop.f32.mrf.mxu0
    %v3320 = vadd.f32 %v3158, %v3319
    %v3321 = vpop.f32.mrf.mxu0
    %v3322 = vpop.f32.mrf.mxu0
    %v3323 = vadd.f32 %v3161, %v3322
    %v3324 = vpop.f32.mrf.mxu0
    %3325 = vmatprep.mubr.bf16.mxu0 0
    %3326 = vmatmul.mubr.bf16.gmra.mxu0 %v3267
    %v3327 = vpop.f32.mrf.mxu0
    %v3328 = vadd.f32 %v3166, %v3327
    %v3329 = vpop.f32.mrf.mxu0
    %v3330 = vpop.f32.mrf.mxu0
    %v3331 = vadd.f32 %v3169, %v3330
    %v3332 = vpop.f32.mrf.mxu0
    %3333 = vdwg.mxu0
    %3334 = vmatprep.subr.bf16.mxu0 0
    %3335 = vmatpush1.bf16.msra.mxu0 0
    %3336 = vmatprep.subr.bf16.mxu0 0
    %3337 = vmatpush1.bf16.msra.mxu0 0
    %3338 = vmatprep.subr.bf16.mxu0 %v2940
    %3339 = vmatpush1.bf16.msra.mxu0 %v2939
    %3340 = vmatprep.subr.bf16.mxu0 %v2936
    %3341 = vmatpush1.bf16.msra.mxu0 %v2935
    %3342 = vmatprep.subr.bf16.mxu0 %v2904
    %3343 = vmatpush1.bf16.msra.mxu0 %v2903
    %3344 = vmatprep.subr.bf16.mxu0 %v2900
    %3345 = vmatpush1.bf16.msra.mxu0 %v2899
    %3346 = vmatprep.subr.bf16.mxu0 %v2826
    %3347 = vmatpush1.bf16.msra.mxu0 %v2825
    %3348 = vmatprep.subr.bf16.mxu0 %v2822
    %3349 = vmatpush1.bf16.msra.mxu0 %v2821
    %3350 = vmatprep.subr.bf16.mxu0 0
    %3351 = vmatpush2.bf16.msra.mxu0 0
    %3352 = vmatprep.subr.bf16.mxu0 0
    %3353 = vmatpush2.bf16.msra.mxu0 0
    %3354 = vmatprep.subr.bf16.mxu0 0
    %3355 = vmatpush2.bf16.msra.mxu0 0
    %3356 = vmatprep.subr.bf16.mxu0 0
    %3357 = vmatpush2.bf16.msra.mxu0 0
    %3358 = vmatprep.subr.bf16.mxu0 0
    %3359 = vmatpush2.bf16.msra.mxu0 0
    %3360 = vmatprep.subr.bf16.mxu0 0
    %3361 = vmatpush2.bf16.msra.mxu0 0
    %3362 = vmatprep.subr.bf16.mxu0 0
    %3363 = vmatpush2.bf16.msra.mxu0 0
    %3364 = vmatprep.subr.bf16.mxu0 0
    %3365 = vmatpush2.bf16.msra.mxu0 0
    %3366 = vmatprep.mubr.bf16.mxu0 0
    %3367 = vmatmul.mubr.bf16.gmra.mxu0 %v3258
    %v3368 = vpop.f32.mrf.mxu0
    %v3369 = vadd.f32 %v3207, %v3368
    %v3370 = vpop.f32.mrf.mxu0
    %v3371 = vpop.f32.mrf.mxu0
    %v3372 = vadd.f32 %v3210, %v3371
    %v3373 = vpop.f32.mrf.mxu0
    %3374 = vmatprep.mubr.bf16.mxu0 0
    %3375 = vmatmul.mubr.bf16.gmra.mxu0 %v3261
    %v3376 = vpop.f32.mrf.mxu0
    %v3377 = vadd.f32 %v3215, %v3376
    %v3378 = vpop.f32.mrf.mxu0
    %v3379 = vpop.f32.mrf.mxu0
    %v3380 = vadd.f32 %v3218, %v3379
    %v3381 = vpop.f32.mrf.mxu0
    %3382 = vmatprep.mubr.bf16.mxu0 0
    %3383 = vmatmul.mubr.bf16.gmra.mxu0 %v3264
    %v3384 = vpop.f32.mrf.mxu0
    %v3385 = vadd.f32 %v3223, %v3384
    %v3386 = vpop.f32.mrf.mxu0
    %v3387 = vpop.f32.mrf.mxu0
    %v3388 = vadd.f32 %v3226, %v3387
    %v3389 = vpop.f32.mrf.mxu0
    %3390 = vmatprep.mubr.bf16.mxu0 0
    %3391 = vmatmul.mubr.bf16.gmra.mxu0 %v3267
    %v3392 = vpop.f32.mrf.mxu0
    %v3393 = vadd.f32 %v3231, %v3392
    %v3394 = vpop.f32.mrf.mxu0
    %v3395 = vpop.f32.mrf.mxu0
    %v3396 = vadd.f32 %v3234, %v3395
    %v3397 = vpop.f32.mrf.mxu0
    %3398 = vdwg.mxu0
    %s3399 = scalar_lea.vmem %s4, 64
    %v3400 = vld [vmem:[%s3399] sm:$0xf]
    %v3401 = vld [vmem:[%s3399 + $0x4] sm:$0xf]
    %v3402 = vld [vmem:[%s3399 + $0x8] sm:$0xf]
    %v3403 = vld [vmem:[%s3399 + $0xc] sm:$0xf]
    %v3404 = vld [vmem:[%s3399 + $0x10] sm:$0xf]
    %v3405 = vld [vmem:[%s3399 + $0x14] sm:$0xf]
    %v3406 = vld [vmem:[%s3399 + $0x18] sm:$0xf]
    %v3407 = vld [vmem:[%s3399 + $0x1c] sm:$0xf]
    %v3416 = vunpack.c.l.b16 %v3400
    %v3417 = vunpack.c.l.b16 %v3401
    %v3418 = vunpack.c.l.b16 %v3402
    %v3419 = vunpack.c.l.b16 %v3403
    %v3420 = vunpack.c.l.b16 %v3404
    %v3421 = vunpack.c.l.b16 %v3405
    %v3422 = vunpack.c.l.b16 %v3406
    %v3423 = vunpack.c.l.b16 %v3407
    %v3424 = vpack.c.b16 %v3417, %v3416
    %v3425 = vpack.c.b16 %v3419, %v3418
    %v3426 = vpack.c.b16 %v3421, %v3420
    %v3427 = vpack.c.b16 %v3423, %v3422
    %3428 = vrot.lane.b32.xlu0 %v2867, 96
    %v3429 = vpop.permute.xlu0 %3428
    %3430 = vrot.lane.b32.xlu0 %v2868, 96
    %v3431 = vpop.permute.xlu0 %3430
    %3432 = vrot.lane.b32.xlu0 %v2869, 96
    %v3433 = vpop.permute.xlu0 %3432
    %3434 = vrot.lane.b32.xlu0 %v2870, 96
    %v3435 = vpop.permute.xlu0 %3434
    %3436 = vrot.lane.b32.xlu0 %v2871, 96
    %v3437 = vpop.permute.xlu0 %3436
    %3438 = vrot.lane.b32.xlu0 %v2872, 96
    %v3439 = vpop.permute.xlu0 %3438
    %3440 = vrot.lane.b32.xlu0 %v2873, 96
    %v3441 = vpop.permute.xlu0 %3440
    %3442 = vrot.lane.b32.xlu0 %v2874, 96
    %v3443 = vpop.permute.xlu0 %3442
    %3444 = vrot.lane.b32.xlu0 %v2875, 96
    %v3445 = vpop.permute.xlu0 %3444
    %3446 = vrot.lane.b32.xlu0 %v2876, 96
    %v3447 = vpop.permute.xlu0 %3446
    %3448 = vrot.lane.b32.xlu0 %v2897, 96
    %v3449 = vpop.permute.xlu0 %3448
    %3450 = vrot.lane.b32.xlu0 %v2898, 96
    %v3451 = vpop.permute.xlu0 %3450
    %3452 = vrot.lane.b32.xlu0 %v2899, 96
    %v3453 = vpop.permute.xlu0 %3452
    %3454 = vrot.lane.b32.xlu0 %v2900, 96
    %v3455 = vpop.permute.xlu0 %3454
    %3456 = vrot.lane.b32.xlu0 %v2886, 96
    %v3457 = vpop.permute.xlu0 %3456
    %3458 = vrot.lane.b32.xlu0 %v2901, 96
    %v3459 = vpop.permute.xlu0 %3458
    %3460 = vrot.lane.b32.xlu0 %v2902, 96
    %v3461 = vpop.permute.xlu0 %3460
    %3462 = vrot.lane.b32.xlu0 %v2903, 96
    %v3463 = vpop.permute.xlu0 %3462
    %3464 = vrot.lane.b32.xlu0 %v2904, 96
    %v3465 = vpop.permute.xlu0 %3464
    %3466 = vrot.lane.b32.xlu0 %v2896, 96
    %v3467 = vpop.permute.xlu0 %3466
    %3468 = vrot.lane.b32.xlu0 %v2933, 96
    %v3469 = vpop.permute.xlu0 %3468
    %3470 = vrot.lane.b32.xlu0 %v2934, 96
    %v3471 = vpop.permute.xlu0 %3470
    %3472 = vrot.lane.b32.xlu0 %v2935, 96
    %v3473 = vpop.permute.xlu0 %3472
    %3474 = vrot.lane.b32.xlu0 %v2936, 96
    %v3475 = vpop.permute.xlu0 %3474
    %3476 = vrot.lane.b32.xlu0 %v2922, 96
    %v3477 = vpop.permute.xlu0 %3476
    %3478 = vrot.lane.b32.xlu0 %v2937, 96
    %v3479 = vpop.permute.xlu0 %3478
    %3480 = vrot.lane.b32.xlu0 %v2938, 96
    %v3481 = vpop.permute.xlu0 %3480
    %3482 = vrot.lane.b32.xlu0 %v2939, 96
    %v3483 = vpop.permute.xlu0 %3482
    %3484 = vrot.lane.b32.xlu0 %v2940, 96
    %v3485 = vpop.permute.xlu0 %3484
    %3486 = vrot.lane.b32.xlu0 %v2932, 96
    %v3487 = vpop.permute.xlu0 %3486
    %v3488 = vsel %vm601, %v3429, %v3431
    %v3489 = vsel %vm601, %v3431, %v3433
    %v3490 = vsel %vm601, %v3433, %v3435
    %v3491 = vsel %vm601, %v3435, %v3437
    %v3492 = vsel %vm601, %v3439, %v3441
    %v3493 = vsel %vm601, %v3441, %v3443
    %v3494 = vsel %vm601, %v3443, %v3445
    %v3495 = vsel %vm601, %v3445, %v3447
    %v3496 = vsel %vm601, %v3449, %v3451
    %v3497 = vsel %vm601, %v3451, %v3453
    %v3498 = vsel %vm601, %v3453, %v3455
    %v3499 = vsel %vm601, %v3455, %v3457
    %v3500 = vsel %vm601, %v3459, %v3461
    %v3501 = vsel %vm601, %v3461, %v3463
    %v3502 = vsel %vm601, %v3463, %v3465
    %v3503 = vsel %vm601, %v3465, %v3467
    %v3504 = vsel %vm601, %v3469, %v3471
    %v3505 = vsel %vm601, %v3471, %v3473
    %v3506 = vsel %vm601, %v3473, %v3475
    %v3507 = vsel %vm601, %v3475, %v3477
    %v3508 = vsel %vm601, %v3479, %v3481
    %v3509 = vsel %vm601, %v3481, %v3483
    %v3510 = vsel %vm601, %v3483, %v3485
    %v3511 = vsel %vm601, %v3485, %v3487
    %v3537 = vsel %vm3094, %v3424, 0
    %v3540 = vsel %vm3094, %v3425, 0
    %v3543 = vsel %vm3094, %v3426, 0
    %v3546 = vsel %vm3094, %v3427, 0
    %3548 = vmatprep.subr.bf16.mxu0 0
    %3549 = vmatpush1.bf16.msra.mxu0 0
    %3550 = vmatprep.subr.bf16.mxu0 0
    %3551 = vmatpush1.bf16.msra.mxu0 0
    %3552 = vmatprep.subr.bf16.mxu0 %v3509
    %3553 = vmatpush1.bf16.msra.mxu0 %v3508
    %3554 = vmatprep.subr.bf16.mxu0 %v3505
    %3555 = vmatpush1.bf16.msra.mxu0 %v3504
    %3556 = vmatprep.subr.bf16.mxu0 %v3501
    %3557 = vmatpush1.bf16.msra.mxu0 %v3500
    %3558 = vmatprep.subr.bf16.mxu0 %v3497
    %3559 = vmatpush1.bf16.msra.mxu0 %v3496
    %3560 = vmatprep.subr.bf16.mxu0 %v3493
    %3561 = vmatpush1.bf16.msra.mxu0 %v3492
    %3562 = vmatprep.subr.bf16.mxu0 %v3489
    %3563 = vmatpush1.bf16.msra.mxu0 %v3488
    %3564 = vmatprep.subr.bf16.mxu0 0
    %3565 = vmatpush2.bf16.msra.mxu0 0
    %3566 = vmatprep.subr.bf16.mxu0 0
    %3567 = vmatpush2.bf16.msra.mxu0 0
    %3568 = vmatprep.subr.bf16.mxu0 0
    %3569 = vmatpush2.bf16.msra.mxu0 0
    %3570 = vmatprep.subr.bf16.mxu0 0
    %3571 = vmatpush2.bf16.msra.mxu0 0
    %3572 = vmatprep.subr.bf16.mxu0 0
    %3573 = vmatpush2.bf16.msra.mxu0 0
    %3574 = vmatprep.subr.bf16.mxu0 0
    %3575 = vmatpush2.bf16.msra.mxu0 0
    %3576 = vmatprep.subr.bf16.mxu0 0
    %3577 = vmatpush2.bf16.msra.mxu0 0
    %3578 = vmatprep.subr.bf16.mxu0 0
    %3579 = vmatpush2.bf16.msra.mxu0 0
    %3580 = vmatprep.mubr.bf16.mxu0 0
    %3581 = vmatmul.mubr.bf16.gmra.mxu0 %v3537
    %v3582 = vpop.f32.mrf.mxu0
    %v3583 = vadd.f32 0.0, %v3582
    %v3584 = vpop.f32.mrf.mxu0
    %v3585 = vpop.f32.mrf.mxu0
    %v3586 = vadd.f32 0.0, %v3585
    %v3587 = vpop.f32.mrf.mxu0
    %3588 = vmatprep.mubr.bf16.mxu0 0
    %3589 = vmatmul.mubr.bf16.gmra.mxu0 %v3540
    %v3590 = vpop.f32.mrf.mxu0
    %v3591 = vadd.f32 0.0, %v3590
    %v3592 = vpop.f32.mrf.mxu0
    %v3593 = vpop.f32.mrf.mxu0
    %v3594 = vadd.f32 0.0, %v3593
    %v3595 = vpop.f32.mrf.mxu0
    %3596 = vmatprep.mubr.bf16.mxu0 0
    %3597 = vmatmul.mubr.bf16.gmra.mxu0 %v3543
    %v3598 = vpop.f32.mrf.mxu0
    %v3599 = vadd.f32 0.0, %v3598
    %v3600 = vpop.f32.mrf.mxu0
    %v3601 = vpop.f32.mrf.mxu0
    %v3602 = vadd.f32 0.0, %v3601
    %v3603 = vpop.f32.mrf.mxu0
    %3604 = vmatprep.mubr.bf16.mxu0 0
    %3605 = vmatmul.mubr.bf16.gmra.mxu0 %v3546
    %v3606 = vpop.f32.mrf.mxu0
    %v3607 = vadd.f32 0.0, %v3606
    %v3608 = vpop.f32.mrf.mxu0
    %v3609 = vpop.f32.mrf.mxu0
    %v3610 = vadd.f32 0.0, %v3609
    %v3611 = vpop.f32.mrf.mxu0
    %3612 = vdwg.mxu0
    %3613 = vmatprep.subr.bf16.mxu0 0
    %3614 = vmatpush1.bf16.msra.mxu0 0
    %3615 = vmatprep.subr.bf16.mxu0 0
    %3616 = vmatpush1.bf16.msra.mxu0 0
    %3617 = vmatprep.subr.bf16.mxu0 %v3511
    %3618 = vmatpush1.bf16.msra.mxu0 %v3510
    %3619 = vmatprep.subr.bf16.mxu0 %v3507
    %3620 = vmatpush1.bf16.msra.mxu0 %v3506
    %3621 = vmatprep.subr.bf16.mxu0 %v3503
    %3622 = vmatpush1.bf16.msra.mxu0 %v3502
    %3623 = vmatprep.subr.bf16.mxu0 %v3499
    %3624 = vmatpush1.bf16.msra.mxu0 %v3498
    %3625 = vmatprep.subr.bf16.mxu0 %v3495
    %3626 = vmatpush1.bf16.msra.mxu0 %v3494
    %3627 = vmatprep.subr.bf16.mxu0 %v3491
    %3628 = vmatpush1.bf16.msra.mxu0 %v3490
    %3629 = vmatprep.subr.bf16.mxu0 0
    %3630 = vmatpush2.bf16.msra.mxu0 0
    %3631 = vmatprep.subr.bf16.mxu0 0
    %3632 = vmatpush2.bf16.msra.mxu0 0
    %3633 = vmatprep.subr.bf16.mxu0 0
    %3634 = vmatpush2.bf16.msra.mxu0 0
    %3635 = vmatprep.subr.bf16.mxu0 0
    %3636 = vmatpush2.bf16.msra.mxu0 0
    %3637 = vmatprep.subr.bf16.mxu0 0
    %3638 = vmatpush2.bf16.msra.mxu0 0
    %3639 = vmatprep.subr.bf16.mxu0 0
    %3640 = vmatpush2.bf16.msra.mxu0 0
    %3641 = vmatprep.subr.bf16.mxu0 0
    %3642 = vmatpush2.bf16.msra.mxu0 0
    %3643 = vmatprep.subr.bf16.mxu0 0
    %3644 = vmatpush2.bf16.msra.mxu0 0
    %3645 = vmatprep.mubr.bf16.mxu0 0
    %3646 = vmatmul.mubr.bf16.gmra.mxu0 %v3537
    %v3647 = vpop.f32.mrf.mxu0
    %v3648 = vadd.f32 0.0, %v3647
    %v3649 = vpop.f32.mrf.mxu0
    %v3650 = vpop.f32.mrf.mxu0
    %v3651 = vadd.f32 0.0, %v3650
    %v3652 = vpop.f32.mrf.mxu0
    %3653 = vmatprep.mubr.bf16.mxu0 0
    %3654 = vmatmul.mubr.bf16.gmra.mxu0 %v3540
    %v3655 = vpop.f32.mrf.mxu0
    %v3656 = vadd.f32 0.0, %v3655
    %v3657 = vpop.f32.mrf.mxu0
    %v3658 = vpop.f32.mrf.mxu0
    %v3659 = vadd.f32 0.0, %v3658
    %v3660 = vpop.f32.mrf.mxu0
    %3661 = vmatprep.mubr.bf16.mxu0 0
    %3662 = vmatmul.mubr.bf16.gmra.mxu0 %v3543
    %v3663 = vpop.f32.mrf.mxu0
    %v3664 = vadd.f32 0.0, %v3663
    %v3665 = vpop.f32.mrf.mxu0
    %v3666 = vpop.f32.mrf.mxu0
    %v3667 = vadd.f32 0.0, %v3666
    %v3668 = vpop.f32.mrf.mxu0
    %3669 = vmatprep.mubr.bf16.mxu0 0
    %3670 = vmatmul.mubr.bf16.gmra.mxu0 %v3546
    %v3671 = vpop.f32.mrf.mxu0
    %v3672 = vadd.f32 0.0, %v3671
    %v3673 = vpop.f32.mrf.mxu0
    %v3674 = vpop.f32.mrf.mxu0
    %v3675 = vadd.f32 0.0, %v3674
    %v3676 = vpop.f32.mrf.mxu0
    %3677 = vdwg.mxu0
    %v3678 = vadd.f32 %v3304, %v3583
    %v3679 = vadd.f32 %v3369, %v3648
    %v3680 = vadd.f32 %v3307, %v3586
    %v3681 = vadd.f32 %v3372, %v3651
    %v3682 = vadd.f32 %v3312, %v3591
    %v3683 = vadd.f32 %v3377, %v3656
    %v3684 = vadd.f32 %v3315, %v3594
    %v3685 = vadd.f32 %v3380, %v3659
    %v3686 = vadd.f32 %v3320, %v3599
    %v3687 = vadd.f32 %v3385, %v3664
    %v3688 = vadd.f32 %v3323, %v3602
    %v3689 = vadd.f32 %v3388, %v3667
    %v3690 = vadd.f32 %v3328, %v3607
    %v3691 = vadd.f32 %v3393, %v3672
    %v3692 = vadd.f32 %v3331, %v3610
    %v3693 = vadd.f32 %v3396, %v3675
    %3695 = vset.pattern.permute.xlu0 2
    %3696 = vperm.xlu0 %3695, %v2767
    %v3697 = vpop.permute.xlu0 %3696
    %3700 = vset.pattern.permute.xlu0 2
    %3701 = vperm.xlu0 %3700, %v2768
    %v3702 = vpop.permute.xlu0 %3701
    %3705 = vset.pattern.permute.xlu0 2
    %3706 = vperm.xlu0 %3705, %v2769
    %v3707 = vpop.permute.xlu0 %3706
    %3710 = vset.pattern.permute.xlu0 2
    %3711 = vperm.xlu0 %3710, %v2770
    %v3712 = vpop.permute.xlu0 %3711
    %3715 = vset.pattern.permute.xlu0 2
    %3716 = vperm.xlu0 %3715, %v2771
    %v3717 = vpop.permute.xlu0 %3716
    %3720 = vset.pattern.permute.xlu0 2
    %3721 = vperm.xlu0 %3720, %v2772
    %v3722 = vpop.permute.xlu0 %3721
    %3725 = vset.pattern.permute.xlu0 2
    %3726 = vperm.xlu0 %3725, %v2773
    %v3727 = vpop.permute.xlu0 %3726
    %3730 = vset.pattern.permute.xlu0 2
    %3731 = vperm.xlu0 %3730, %v2774
    %v3732 = vpop.permute.xlu0 %3731
    %v3734 = vadd.f32 %v3678, %v3697
    %v3735 = vadd.f32 %v3679, %v3697
    %v3736 = vadd.f32 %v3680, %v3702
    %v3737 = vadd.f32 %v3681, %v3702
    %v3738 = vadd.f32 %v3682, %v3707
    %v3739 = vadd.f32 %v3683, %v3707
    %v3740 = vadd.f32 %v3684, %v3712
    %v3741 = vadd.f32 %v3685, %v3712
    %v3742 = vadd.f32 %v3686, %v3717
    %v3743 = vadd.f32 %v3687, %v3717
    %v3744 = vadd.f32 %v3688, %v3722
    %v3745 = vadd.f32 %v3689, %v3722
    %v3746 = vadd.f32 %v3690, %v3727
    %v3747 = vadd.f32 %v3691, %v3727
    %v3748 = vadd.f32 %v3692, %v3732
    %v3749 = vadd.f32 %v3693, %v3732
    %v3750 = vmax.f32 %v3734, 0.0
    %v3751 = vmax.f32 %v3735, 0.0
    %v3752 = vmax.f32 %v3736, 0.0
    %v3753 = vmax.f32 %v3737, 0.0
    %v3754 = vmax.f32 %v3738, 0.0
    %v3755 = vmax.f32 %v3739, 0.0
    %v3756 = vmax.f32 %v3740, 0.0
    %v3757 = vmax.f32 %v3741, 0.0
    %v3758 = vmax.f32 %v3742, 0.0
    %v3759 = vmax.f32 %v3743, 0.0
    %v3760 = vmax.f32 %v3744, 0.0
    %v3761 = vmax.f32 %v3745, 0.0
    %v3762 = vmax.f32 %v3746, 0.0
    %v3763 = vmax.f32 %v3747, 0.0
    %v3764 = vmax.f32 %v3748, 0.0
    %v3765 = vmax.f32 %v3749, 0.0
    %3774 = vrot.lane.b32.xlu0 %v3750, 116
    %v3775 = vpop.permute.xlu0 %3774
    %3776 = vrot.lane.b32.xlu0 %v3752, 116
    %v3777 = vpop.permute.xlu0 %3776
    %3778 = vrot.lane.b32.xlu0 %v3754, 116
    %v3779 = vpop.permute.xlu0 %3778
    %3780 = vrot.lane.b32.xlu0 %v3756, 116
    %v3781 = vpop.permute.xlu0 %3780
    %3782 = vrot.lane.b32.xlu0 %v3758, 116
    %v3783 = vpop.permute.xlu0 %3782
    %3784 = vrot.lane.b32.xlu0 %v3760, 116
    %v3785 = vpop.permute.xlu0 %3784
    %3786 = vrot.lane.b32.xlu0 %v3762, 116
    %v3787 = vpop.permute.xlu0 %3786
    %3788 = vrot.lane.b32.xlu0 %v3764, 116
    %v3789 = vpop.permute.xlu0 %3788
    %3798 = vrot.lane.b32.xlu0 %v3750, 104
    %v3799 = vpop.permute.xlu0 %3798
    %3800 = vrot.lane.b32.xlu0 %v3752, 104
    %v3801 = vpop.permute.xlu0 %3800
    %3802 = vrot.lane.b32.xlu0 %v3754, 104
    %v3803 = vpop.permute.xlu0 %3802
    %3804 = vrot.lane.b32.xlu0 %v3756, 104
    %v3805 = vpop.permute.xlu0 %3804
    %3806 = vrot.lane.b32.xlu0 %v3758, 104
    %v3807 = vpop.permute.xlu0 %3806
    %3808 = vrot.lane.b32.xlu0 %v3760, 104
    %v3809 = vpop.permute.xlu0 %3808
    %3810 = vrot.lane.b32.xlu0 %v3762, 104
    %v3811 = vpop.permute.xlu0 %3810
    %3812 = vrot.lane.b32.xlu0 %v3764, 104
    %v3813 = vpop.permute.xlu0 %3812
    %3822 = vrot.lane.b32.xlu0 %v3750, 92
    %v3823 = vpop.permute.xlu0 %3822
    %3824 = vrot.lane.b32.xlu0 %v3752, 92
    %v3825 = vpop.permute.xlu0 %3824
    %3826 = vrot.lane.b32.xlu0 %v3754, 92
    %v3827 = vpop.permute.xlu0 %3826
    %3828 = vrot.lane.b32.xlu0 %v3756, 92
    %v3829 = vpop.permute.xlu0 %3828
    %3830 = vrot.lane.b32.xlu0 %v3758, 92
    %v3831 = vpop.permute.xlu0 %3830
    %3832 = vrot.lane.b32.xlu0 %v3760, 92
    %v3833 = vpop.permute.xlu0 %3832
    %3834 = vrot.lane.b32.xlu0 %v3762, 92
    %v3835 = vpop.permute.xlu0 %3834
    %3836 = vrot.lane.b32.xlu0 %v3764, 92
    %v3837 = vpop.permute.xlu0 %3836
    %3854 = vrot.lane.b32.xlu0 %v3751, 16
    %v3855 = vpop.permute.xlu0 %3854
    %3856 = vrot.lane.b32.xlu0 %v3753, 16
    %v3857 = vpop.permute.xlu0 %3856
    %3858 = vrot.lane.b32.xlu0 %v3755, 16
    %v3859 = vpop.permute.xlu0 %3858
    %3860 = vrot.lane.b32.xlu0 %v3757, 16
    %v3861 = vpop.permute.xlu0 %3860
    %3862 = vrot.lane.b32.xlu0 %v3759, 16
    %v3863 = vpop.permute.xlu0 %3862
    %3864 = vrot.lane.b32.xlu0 %v3761, 16
    %v3865 = vpop.permute.xlu0 %3864
    %3866 = vrot.lane.b32.xlu0 %v3763, 16
    %v3867 = vpop.permute.xlu0 %3866
    %3868 = vrot.lane.b32.xlu0 %v3765, 16
    %v3869 = vpop.permute.xlu0 %3868
    %3878 = vrot.lane.b32.xlu0 %v3751, 4
    %v3879 = vpop.permute.xlu0 %3878
    %3880 = vrot.lane.b32.xlu0 %v3753, 4
    %v3881 = vpop.permute.xlu0 %3880
    %3882 = vrot.lane.b32.xlu0 %v3755, 4
    %v3883 = vpop.permute.xlu0 %3882
    %3884 = vrot.lane.b32.xlu0 %v3757, 4
    %v3885 = vpop.permute.xlu0 %3884
    %3886 = vrot.lane.b32.xlu0 %v3759, 4
    %v3887 = vpop.permute.xlu0 %3886
    %3888 = vrot.lane.b32.xlu0 %v3761, 4
    %v3889 = vpop.permute.xlu0 %3888
    %3890 = vrot.lane.b32.xlu0 %v3763, 4
    %v3891 = vpop.permute.xlu0 %3890
    %3892 = vrot.lane.b32.xlu0 %v3765, 4
    %v3893 = vpop.permute.xlu0 %3892
    %3902 = vrot.lane.b32.xlu0 %v3751, 120
    %v3903 = vpop.permute.xlu0 %3902
    %3904 = vrot.lane.b32.xlu0 %v3753, 120
    %v3905 = vpop.permute.xlu0 %3904
    %3906 = vrot.lane.b32.xlu0 %v3755, 120
    %v3907 = vpop.permute.xlu0 %3906
    %3908 = vrot.lane.b32.xlu0 %v3757, 120
    %v3909 = vpop.permute.xlu0 %3908
    %3910 = vrot.lane.b32.xlu0 %v3759, 120
    %v3911 = vpop.permute.xlu0 %3910
    %3912 = vrot.lane.b32.xlu0 %v3761, 120
    %v3913 = vpop.permute.xlu0 %3912
    %3914 = vrot.lane.b32.xlu0 %v3763, 120
    %v3915 = vpop.permute.xlu0 %3914
    %3916 = vrot.lane.b32.xlu0 %v3765, 120
    %v3917 = vpop.permute.xlu0 %3916
    %3926 = vrot.lane.b32.xlu0 %v3751, 108
    %v3927 = vpop.permute.xlu0 %3926
    %3928 = vrot.lane.b32.xlu0 %v3753, 108
    %v3929 = vpop.permute.xlu0 %3928
    %3930 = vrot.lane.b32.xlu0 %v3755, 108
    %v3931 = vpop.permute.xlu0 %3930
    %3932 = vrot.lane.b32.xlu0 %v3757, 108
    %v3933 = vpop.permute.xlu0 %3932
    %3934 = vrot.lane.b32.xlu0 %v3759, 108
    %v3935 = vpop.permute.xlu0 %3934
    %3936 = vrot.lane.b32.xlu0 %v3761, 108
    %v3937 = vpop.permute.xlu0 %3936
    %3938 = vrot.lane.b32.xlu0 %v3763, 108
    %v3939 = vpop.permute.xlu0 %3938
    %3940 = vrot.lane.b32.xlu0 %v3765, 108
    %v3941 = vpop.permute.xlu0 %3940
    %vm3950 = vcmask 31744
    %v3951 = vsel %vm3950, %v3750, %v3775
    %v3952 = vsel %vm3950, %v3752, %v3777
    %v3953 = vsel %vm3950, %v3754, %v3779
    %v3954 = vsel %vm3950, %v3756, %v3781
    %v3955 = vsel %vm3950, %v3758, %v3783
    %v3956 = vsel %vm3950, %v3760, %v3785
    %v3957 = vsel %vm3950, %v3762, %v3787
    %v3958 = vsel %vm3950, %v3764, %v3789
    %vm3959 = vcmask 64512
    %v3960 = vsel %vm3959, %v3951, %v3799
    %v3961 = vsel %vm3959, %v3952, %v3801
    %v3962 = vsel %vm3959, %v3953, %v3803
    %v3963 = vsel %vm3959, %v3954, %v3805
    %v3964 = vsel %vm3959, %v3955, %v3807
    %v3965 = vsel %vm3959, %v3956, %v3809
    %v3966 = vsel %vm3959, %v3957, %v3811
    %v3967 = vsel %vm3959, %v3958, %v3813
    %vm3968 = vcmask 97280
    %v3969 = vsel %vm3968, %v3960, %v3823
    %v3970 = vsel %vm3968, %v3961, %v3825
    %v3971 = vsel %vm3968, %v3962, %v3827
    %v3972 = vsel %vm3968, %v3963, %v3829
    %v3973 = vsel %vm3968, %v3964, %v3831
    %v3974 = vsel %vm3968, %v3965, %v3833
    %v3975 = vsel %vm3968, %v3966, %v3835
    %v3976 = vsel %vm3968, %v3967, %v3837
    %vm3977 = vcmask 130048
    %v3978 = vsel %vm3977, %v3969, %v3855
    %v3979 = vsel %vm3977, %v3970, %v3857
    %v3980 = vsel %vm3977, %v3971, %v3859
    %v3981 = vsel %vm3977, %v3972, %v3861
    %v3982 = vsel %vm3977, %v3973, %v3863
    %v3983 = vsel %vm3977, %v3974, %v3865
    %v3984 = vsel %vm3977, %v3975, %v3867
    %v3985 = vsel %vm3977, %v3976, %v3869
    %vm3986 = vcmask 162816
    %v3987 = vsel %vm3986, %v3978, %v3879
    %v3988 = vsel %vm3986, %v3979, %v3881
    %v3989 = vsel %vm3986, %v3980, %v3883
    %v3990 = vsel %vm3986, %v3981, %v3885
    %v3991 = vsel %vm3986, %v3982, %v3887
    %v3992 = vsel %vm3986, %v3983, %v3889
    %v3993 = vsel %vm3986, %v3984, %v3891
    %v3994 = vsel %vm3986, %v3985, %v3893
    %vm3995 = vcmask 195584
    %v3996 = vsel %vm3995, %v3987, %v3903
    %v3997 = vsel %vm3995, %v3988, %v3905
    %v3998 = vsel %vm3995, %v3989, %v3907
    %v3999 = vsel %vm3995, %v3990, %v3909
    %v4000 = vsel %vm3995, %v3991, %v3911
    %v4001 = vsel %vm3995, %v3992, %v3913
    %v4002 = vsel %vm3995, %v3993, %v3915
    %v4003 = vsel %vm3995, %v3994, %v3917
    %vm4004 = vcmask 228352
    %v4005 = vsel %vm4004, %v3996, %v3927
    %v4006 = vsel %vm4004, %v3997, %v3929
    %v4007 = vsel %vm4004, %v3998, %v3931
    %v4008 = vsel %vm4004, %v3999, %v3933
    %v4009 = vsel %vm4004, %v4000, %v3935
    %v4010 = vsel %vm4004, %v4001, %v3937
    %v4011 = vsel %vm4004, %v4002, %v3939
    %v4012 = vsel %vm4004, %v4003, %v3941
    %vm4013 = vcmask 261120
    %v4014 = vsel %vm4013, %v4005, 0.0
    %v4015 = vsel %vm4013, %v4006, 0.0
    %v4016 = vsel %vm4013, %v4007, 0.0
    %v4017 = vsel %vm4013, %v4008, 0.0
    %v4018 = vsel %vm4013, %v4009, 0.0
    %v4019 = vsel %vm4013, %v4010, 0.0
    %v4020 = vsel %vm4013, %v4011, 0.0
    %v4021 = vsel %vm4013, %v4012, 0.0
    %4022 = vxpose.xlu0.b32.start [1/16] %v4014, 128
    %4023 = vxpose.xlu0.b32.cont [2/16] %v4015, 128
    %4024 = vxpose.xlu0.b32.cont [3/16] %v4016, 128
    %4025 = vxpose.xlu0.b32.cont [4/16] %v4017, 128
    %4026 = vxpose.xlu0.b32.cont [5/16] %v4018, 128
    %4027 = vxpose.xlu0.b32.cont [6/16] %v4019, 128
    %4028 = vxpose.xlu0.b32.cont [7/16] %v4020, 128
    %4029 = vxpose.xlu0.b32.cont [8/16] %v4021, 128
    %4030 = vxpose.xlu0.b32.cont [9/16] 0.0, 128
    %4031 = vxpose.xlu0.b32.cont [10/16] 0.0, 128
    %4032 = vxpose.xlu0.b32.cont [11/16] 0.0, 128
    %4033 = vxpose.xlu0.b32.cont [12/16] 0.0, 128
    %4034 = vxpose.xlu0.b32.cont [13/16] 0.0, 128
    %4035 = vxpose.xlu0.b32.cont [14/16] 0.0, 128
    %4036 = vxpose.xlu0.b32.cont [15/16] 0.0, 128
    %4037 = vxpose.xlu0.b32.end [16/16] 0.0, 128
    %v4038 = vpop.trf.xlu0
    %v4039 = vpop.trf.xlu0
    %v4040 = vpop.trf.xlu0
    %v4041 = vpop.trf.xlu0
    %v4042 = vpop.trf.xlu0
    %v4043 = vpop.trf.xlu0
    %v4044 = vpop.trf.xlu0
    %v4045 = vpop.trf.xlu0
    %v4046 = vpop.trf.xlu0
    %v4047 = vpop.trf.xlu0
    %v4048 = vpop.trf.xlu0
    %v4049 = vpop.trf.xlu0
    %v4050 = vpop.trf.xlu0
    %v4051 = vpop.trf.xlu0
    %v4052 = vpop.trf.xlu0
    %v4053 = vpop.trf.xlu0
    %v4054 = vld [vmem:[%s1] sm:$0x3]
    %v4055 = vld [vmem:[%s6] sm:$0xff]
    %v4056 = vld [vmem:[%s6 + $0x8] sm:$0xff]
    %v4057 = vld [vmem:[%s6 + $0x10] sm:$0x7f]
    %v4058 = vld [vmem:[%s6 + $0x18] sm:$0x7f]
    %s4059 = smul.u32 4, 128
    %s4060 = smul.u32 %s4059, 2
    %s4061 = sshll.u32 %s4060, 4
    %4062 = dma.done [#allocation5], %s4061
    %v4064 = vrot.slane %v4040, 7
    %vm4066 = vcmask 1040384
    %v4067 = vsel %vm4066, %v4038, %v4064
    %v4068 = vpack.c.bf16 %v4067, %v4067
    %v4069 = vld [vmem:[#allocation4] sm:$0xff]
    %v4070 = vld [vmem:[#allocation4 + $0x8] sm:$0xff]
    %v4071 = vld [vmem:[#allocation4 + $0x10] sm:$0xff]
    %v4072 = vld [vmem:[#allocation4 + $0x18] sm:$0xff]
    %v4073 = vld [vmem:[#allocation4 + $0x20] sm:$0xff]
    %v4074 = vld [vmem:[#allocation4 + $0x28] sm:$0xff]
    %v4075 = vld [vmem:[#allocation4 + $0x30] sm:$0xff]
    %v4076 = vld [vmem:[#allocation4 + $0x38] sm:$0xff]
    %v4085 = vunpack.c.l.b16 %v4069
    %v4086 = vunpack.c.h.b16 %v4069
    %v4087 = vunpack.c.l.b16 %v4070
    %v4088 = vunpack.c.h.b16 %v4070
    %v4089 = vunpack.c.l.b16 %v4071
    %v4090 = vunpack.c.h.b16 %v4071
    %v4091 = vunpack.c.l.b16 %v4072
    %v4092 = vunpack.c.h.b16 %v4072
    %v4093 = vunpack.c.l.b16 %v4073
    %v4094 = vunpack.c.h.b16 %v4073
    %v4095 = vunpack.c.l.b16 %v4074
    %v4096 = vunpack.c.h.b16 %v4074
    %v4097 = vunpack.c.l.b16 %v4075
    %v4098 = vunpack.c.h.b16 %v4075
    %v4099 = vunpack.c.l.b16 %v4076
    %v4100 = vunpack.c.h.b16 %v4076
    %v4101 = vpack.c.b16 %v4087, %v4085
    %v4102 = vpack.c.b16 %v4088, %v4086
    %v4103 = vpack.c.b16 %v4091, %v4089
    %v4104 = vpack.c.b16 %v4092, %v4090
    %v4105 = vpack.c.b16 %v4095, %v4093
    %v4106 = vpack.c.b16 %v4096, %v4094
    %v4107 = vpack.c.b16 %v4099, %v4097
    %v4108 = vpack.c.b16 %v4100, %v4098
    %v4118 = vsel %vm369, %v4068, 0
    %4120 = vmatprep.subr.bf16.mxu0 0
    %4121 = vmatpush1.bf16.msra.mxu0 0
    %4122 = vmatprep.subr.bf16.mxu0 0
    %4123 = vmatpush1.bf16.msra.mxu0 0
    %4124 = vmatprep.subr.bf16.mxu0 0
    %4125 = vmatpush1.bf16.msra.mxu0 0
    %4126 = vmatprep.subr.bf16.mxu0 0
    %4127 = vmatpush1.bf16.msra.mxu0 0
    %4128 = vmatprep.subr.bf16.mxu0 %v4108
    %4129 = vmatpush1.bf16.msra.mxu0 %v4107
    %4130 = vmatprep.subr.bf16.mxu0 %v4106
    %4131 = vmatpush1.bf16.msra.mxu0 %v4105
    %4132 = vmatprep.subr.bf16.mxu0 %v4104
    %4133 = vmatpush1.bf16.msra.mxu0 %v4103
    %4134 = vmatprep.subr.bf16.mxu0 %v4102
    %4135 = vmatpush1.bf16.msra.mxu0 %v4101
    %4136 = vmatprep.subr.bf16.mxu0 0
    %4137 = vmatpush2.bf16.msra.mxu0 0
    %4138 = vmatprep.subr.bf16.mxu0 0
    %4139 = vmatpush2.bf16.msra.mxu0 0
    %4140 = vmatprep.subr.bf16.mxu0 0
    %4141 = vmatpush2.bf16.msra.mxu0 0
    %4142 = vmatprep.subr.bf16.mxu0 0
    %4143 = vmatpush2.bf16.msra.mxu0 0
    %4144 = vmatprep.subr.bf16.mxu0 0
    %4145 = vmatpush2.bf16.msra.mxu0 0
    %4146 = vmatprep.subr.bf16.mxu0 0
    %4147 = vmatpush2.bf16.msra.mxu0 0
    %4148 = vmatprep.subr.bf16.mxu0 0
    %4149 = vmatpush2.bf16.msra.mxu0 0
    %4150 = vmatprep.subr.bf16.mxu0 0
    %4151 = vmatpush2.bf16.msra.mxu0 0
    %4152 = vmatprep.mubr.bf16.mxu0 0
    %4153 = vmatmul.mubr.bf16.gmra.mxu0 %v4118
    %v4154 = vpop.f32.mrf.mxu0
    %v4155 = vadd.f32 0.0, %v4154
    %v4156 = vpop.f32.mrf.mxu0
    %v4157 = vadd.f32 0.0, %v4156
    %v4158 = vpop.f32.mrf.mxu0
    %v4159 = vpop.f32.mrf.mxu0
    %4160 = vdwg.mxu0
    %vm4161 = vcmask 121856
    %v4163 = vsel %vm4161, %v4054, 0
    %vm4165 = vcmask 1046528
    %v4167 = vsel %vm4165, %v4057, 0
    %v4170 = vsel %vm4165, %v4058, 0
    %4172 = vmatprep.subr.mxu0 0.0
    %4173 = vmatpush1.msra.mxu0 0.0
    %4174 = vmatprep.subr.mxu0 0.0
    %4175 = vmatpush1.msra.mxu0 0.0
    %4176 = vmatprep.subr.mxu0 0.0
    %4177 = vmatpush1.msra.mxu0 0.0
    %4178 = vmatprep.subr.mxu0 0.0
    %4179 = vmatpush1.msra.mxu0 0.0
    %4180 = vmatprep.subr.mxu0 0.0
    %4181 = vmatpush1.msra.mxu0 0.0
    %4182 = vmatprep.subr.mxu0 0.0
    %4183 = vmatpush1.msra.mxu0 0.0
    %4184 = vmatprep.subr.mxu0 0.0
    %4185 = vmatpush1.msra.mxu0 0.0
    %4186 = vmatprep.subr.mxu0 0.0
    %4187 = vmatpush1.msra.mxu0 0.0
    %4188 = vmatprep.subr.mxu0 0.0
    %4189 = vmatpush1.msra.mxu0 0.0
    %4190 = vmatprep.subr.mxu0 0.0
    %4191 = vmatpush1.msra.mxu0 0.0
    %4192 = vmatprep.subr.mxu0 0.0
    %4193 = vmatpush1.msra.mxu0 0.0
    %4194 = vmatprep.subr.mxu0 0.0
    %4195 = vmatpush1.msra.mxu0 0.0
    %4196 = vmatprep.subr.mxu0 0.0
    %4197 = vmatpush1.msra.mxu0 0.0
    %4198 = vmatprep.subr.mxu0 0.0
    %4199 = vmatpush1.msra.mxu0 0.0
    %4200 = vmatprep.subr.mxu0 %v4170
    %4201 = vmatpush1.msra.mxu0 %v4167
    %4202 = vmatprep.subr.mxu0 %v4056
    %4203 = vmatpush1.msra.mxu0 %v4055
    %4204 = vmatprep.subr.mxu0 0.0
    %4205 = vmatpush2.msra.mxu0 0.0
    %4206 = vmatprep.subr.mxu0 0.0
    %4207 = vmatpush2.msra.mxu0 0.0
    %4208 = vmatprep.subr.mxu0 0.0
    %4209 = vmatpush2.msra.mxu0 0.0
    %4210 = vmatprep.subr.mxu0 0.0
    %4211 = vmatpush2.msra.mxu0 0.0
    %4212 = vmatprep.subr.mxu0 0.0
    %4213 = vmatpush2.msra.mxu0 0.0
    %4214 = vmatprep.subr.mxu0 0.0
    %4215 = vmatpush2.msra.mxu0 0.0
    %4216 = vmatprep.subr.mxu0 0.0
    %4217 = vmatpush2.msra.mxu0 0.0
    %4218 = vmatprep.subr.mxu0 0.0
    %4219 = vmatpush2.msra.mxu0 0.0
    %4220 = vmatprep.subr.mxu0 0.0
    %4221 = vmatpush2.msra.mxu0 0.0
    %4222 = vmatprep.subr.mxu0 0.0
    %4223 = vmatpush2.msra.mxu0 0.0
    %4224 = vmatprep.subr.mxu0 0.0
    %4225 = vmatpush2.msra.mxu0 0.0
    %4226 = vmatprep.subr.mxu0 0.0
    %4227 = vmatpush2.msra.mxu0 0.0
    %4228 = vmatprep.subr.mxu0 0.0
    %4229 = vmatpush2.msra.mxu0 0.0
    %4230 = vmatprep.subr.mxu0 0.0
    %4231 = vmatpush2.msra.mxu0 0.0
    %4232 = vmatprep.subr.mxu0 0.0
    %4233 = vmatpush2.msra.mxu0 0.0
    %4234 = vmatprep.subr.mxu0 0.0
    %4235 = vmatpush2.msra.mxu0 0.0
    %4236 = vmatprep.mubr.f32.mxu0 0.0
    %4237 = vmatmul.mubr.f32.gmra.mxu0 %v4163
    %v4238 = vpop.f32.mrf.mxu0
    %v4239 = vadd.f32 %v4155, %v4238
    %v4240 = vpop.f32.mrf.mxu0
    %v4241 = vadd.f32 %v4157, %v4240
    %4242 = vdwg.mxu0
    %v4244 = vrot.slane %v4038, 1
    %v4246 = vsel %vm4066, %v4244, %v4040
    %v4247 = vpack.c.bf16 %v4246, %v4246
    %v4248 = vld [vmem:[#allocation4 + $0x40] sm:$0xff]
    %v4249 = vld [vmem:[#allocation4 + $0x48] sm:$0xff]
    %v4250 = vld [vmem:[#allocation4 + $0x50] sm:$0xff]
    %v4251 = vld [vmem:[#allocation4 + $0x58] sm:$0xff]
    %v4252 = vld [vmem:[#allocation4 + $0x60] sm:$0xff]
    %v4253 = vld [vmem:[#allocation4 + $0x68] sm:$0xff]
    %v4254 = vld [vmem:[#allocation4 + $0x70] sm:$0xff]
    %v4255 = vld [vmem:[#allocation4 + $0x78] sm:$0xff]
    %v4264 = vunpack.c.l.b16 %v4248
    %v4265 = vunpack.c.h.b16 %v4248
    %v4266 = vunpack.c.l.b16 %v4249
    %v4267 = vunpack.c.h.b16 %v4249
    %v4268 = vunpack.c.l.b16 %v4250
    %v4269 = vunpack.c.h.b16 %v4250
    %v4270 = vunpack.c.l.b16 %v4251
    %v4271 = vunpack.c.h.b16 %v4251
    %v4272 = vunpack.c.l.b16 %v4252
    %v4273 = vunpack.c.h.b16 %v4252
    %v4274 = vunpack.c.l.b16 %v4253
    %v4275 = vunpack.c.h.b16 %v4253
    %v4276 = vunpack.c.l.b16 %v4254
    %v4277 = vunpack.c.h.b16 %v4254
    %v4278 = vunpack.c.l.b16 %v4255
    %v4279 = vunpack.c.h.b16 %v4255
    %v4280 = vpack.c.b16 %v4266, %v4264
    %v4281 = vpack.c.b16 %v4267, %v4265
    %v4282 = vpack.c.b16 %v4270, %v4268
    %v4283 = vpack.c.b16 %v4271, %v4269
    %v4284 = vpack.c.b16 %v4274, %v4272
    %v4285 = vpack.c.b16 %v4275, %v4273
    %v4286 = vpack.c.b16 %v4278, %v4276
    %v4287 = vpack.c.b16 %v4279, %v4277
    %v4297 = vsel %vm369, %v4247, 0
    %4299 = vmatprep.subr.bf16.mxu0 0
    %4300 = vmatpush1.bf16.msra.mxu0 0
    %4301 = vmatprep.subr.bf16.mxu0 0
    %4302 = vmatpush1.bf16.msra.mxu0 0
    %4303 = vmatprep.subr.bf16.mxu0 0
    %4304 = vmatpush1.bf16.msra.mxu0 0
    %4305 = vmatprep.subr.bf16.mxu0 0
    %4306 = vmatpush1.bf16.msra.mxu0 0
    %4307 = vmatprep.subr.bf16.mxu0 %v4287
    %4308 = vmatpush1.bf16.msra.mxu0 %v4286
    %4309 = vmatprep.subr.bf16.mxu0 %v4285
    %4310 = vmatpush1.bf16.msra.mxu0 %v4284
    %4311 = vmatprep.subr.bf16.mxu0 %v4283
    %4312 = vmatpush1.bf16.msra.mxu0 %v4282
    %4313 = vmatprep.subr.bf16.mxu0 %v4281
    %4314 = vmatpush1.bf16.msra.mxu0 %v4280
    %4315 = vmatprep.subr.bf16.mxu0 0
    %4316 = vmatpush2.bf16.msra.mxu0 0
    %4317 = vmatprep.subr.bf16.mxu0 0
    %4318 = vmatpush2.bf16.msra.mxu0 0
    %4319 = vmatprep.subr.bf16.mxu0 0
    %4320 = vmatpush2.bf16.msra.mxu0 0
    %4321 = vmatprep.subr.bf16.mxu0 0
    %4322 = vmatpush2.bf16.msra.mxu0 0
    %4323 = vmatprep.subr.bf16.mxu0 0
    %4324 = vmatpush2.bf16.msra.mxu0 0
    %4325 = vmatprep.subr.bf16.mxu0 0
    %4326 = vmatpush2.bf16.msra.mxu0 0
    %4327 = vmatprep.subr.bf16.mxu0 0
    %4328 = vmatpush2.bf16.msra.mxu0 0
    %4329 = vmatprep.subr.bf16.mxu0 0
    %4330 = vmatpush2.bf16.msra.mxu0 0
    %4331 = vmatprep.mubr.bf16.mxu0 0
    %4332 = vmatmul.mubr.bf16.gmra.mxu0 %v4297
    %v4333 = vpop.f32.mrf.mxu0
    %v4334 = vadd.f32 0.0, %v4333
    %v4335 = vpop.f32.mrf.mxu0
    %v4336 = vadd.f32 0.0, %v4335
    %v4337 = vpop.f32.mrf.mxu0
    %v4338 = vpop.f32.mrf.mxu0
    %4339 = vdwg.mxu0
    %v4340 = vadd.f32 %v4239, %v4334
    %v4341 = vadd.f32 %v4241, %v4336
    %v4342 = vrot.slane %v4038, 2
    %v4344 = vrot.slane %v4040, 1
    %v4346 = vsel %vm4066, %v4342, %v4344
    %v4347 = vpack.c.bf16 %v4346, %v4346
    %v4348 = vld [vmem:[#allocation4 + $0x80] sm:$0xff]
    %v4349 = vld [vmem:[#allocation4 + $0x88] sm:$0xff]
    %v4350 = vld [vmem:[#allocation4 + $0x90] sm:$0xff]
    %v4351 = vld [vmem:[#allocation4 + $0x98] sm:$0xff]
    %v4352 = vld [vmem:[#allocation4 + $0xa0] sm:$0xff]
    %v4353 = vld [vmem:[#allocation4 + $0xa8] sm:$0xff]
    %v4354 = vld [vmem:[#allocation4 + $0xb0] sm:$0xff]
    %v4355 = vld [vmem:[#allocation4 + $0xb8] sm:$0xff]
    %v4364 = vunpack.c.l.b16 %v4348
    %v4365 = vunpack.c.h.b16 %v4348
    %v4366 = vunpack.c.l.b16 %v4349
    %v4367 = vunpack.c.h.b16 %v4349
    %v4368 = vunpack.c.l.b16 %v4350
    %v4369 = vunpack.c.h.b16 %v4350
    %v4370 = vunpack.c.l.b16 %v4351
    %v4371 = vunpack.c.h.b16 %v4351
    %v4372 = vunpack.c.l.b16 %v4352
    %v4373 = vunpack.c.h.b16 %v4352
    %v4374 = vunpack.c.l.b16 %v4353
    %v4375 = vunpack.c.h.b16 %v4353
    %v4376 = vunpack.c.l.b16 %v4354
    %v4377 = vunpack.c.h.b16 %v4354
    %v4378 = vunpack.c.l.b16 %v4355
    %v4379 = vunpack.c.h.b16 %v4355
    %v4380 = vpack.c.b16 %v4366, %v4364
    %v4381 = vpack.c.b16 %v4367, %v4365
    %v4382 = vpack.c.b16 %v4370, %v4368
    %v4383 = vpack.c.b16 %v4371, %v4369
    %v4384 = vpack.c.b16 %v4374, %v4372
    %v4385 = vpack.c.b16 %v4375, %v4373
    %v4386 = vpack.c.b16 %v4378, %v4376
    %v4387 = vpack.c.b16 %v4379, %v4377
    %v4397 = vsel %vm369, %v4347, 0
    %4399 = vmatprep.subr.bf16.mxu0 0
    %4400 = vmatpush1.bf16.msra.mxu0 0
    %4401 = vmatprep.subr.bf16.mxu0 0
    %4402 = vmatpush1.bf16.msra.mxu0 0
    %4403 = vmatprep.subr.bf16.mxu0 0
    %4404 = vmatpush1.bf16.msra.mxu0 0
    %4405 = vmatprep.subr.bf16.mxu0 0
    %4406 = vmatpush1.bf16.msra.mxu0 0
    %4407 = vmatprep.subr.bf16.mxu0 %v4387
    %4408 = vmatpush1.bf16.msra.mxu0 %v4386
    %4409 = vmatprep.subr.bf16.mxu0 %v4385
    %4410 = vmatpush1.bf16.msra.mxu0 %v4384
    %4411 = vmatprep.subr.bf16.mxu0 %v4383
    %4412 = vmatpush1.bf16.msra.mxu0 %v4382
    %4413 = vmatprep.subr.bf16.mxu0 %v4381
    %4414 = vmatpush1.bf16.msra.mxu0 %v4380
    %4415 = vmatprep.subr.bf16.mxu0 0
    %4416 = vmatpush2.bf16.msra.mxu0 0
    %4417 = vmatprep.subr.bf16.mxu0 0
    %4418 = vmatpush2.bf16.msra.mxu0 0
    %4419 = vmatprep.subr.bf16.mxu0 0
    %4420 = vmatpush2.bf16.msra.mxu0 0
    %4421 = vmatprep.subr.bf16.mxu0 0
    %4422 = vmatpush2.bf16.msra.mxu0 0
    %4423 = vmatprep.subr.bf16.mxu0 0
    %4424 = vmatpush2.bf16.msra.mxu0 0
    %4425 = vmatprep.subr.bf16.mxu0 0
    %4426 = vmatpush2.bf16.msra.mxu0 0
    %4427 = vmatprep.subr.bf16.mxu0 0
    %4428 = vmatpush2.bf16.msra.mxu0 0
    %4429 = vmatprep.subr.bf16.mxu0 0
    %4430 = vmatpush2.bf16.msra.mxu0 0
    %4431 = vmatprep.mubr.bf16.mxu0 0
    %4432 = vmatmul.mubr.bf16.gmra.mxu0 %v4397
    %v4433 = vpop.f32.mrf.mxu0
    %v4434 = vadd.f32 0.0, %v4433
    %v4435 = vpop.f32.mrf.mxu0
    %v4436 = vadd.f32 0.0, %v4435
    %v4437 = vpop.f32.mrf.mxu0
    %v4438 = vpop.f32.mrf.mxu0
    %4439 = vdwg.mxu0
    %v4440 = vadd.f32 %v4340, %v4434
    %v4441 = vadd.f32 %v4341, %v4436
    %v4442 = vrot.slane %v4038, 3
    %v4444 = vrot.slane %v4040, 2
    %v4446 = vsel %vm4066, %v4442, %v4444
    %v4447 = vpack.c.bf16 %v4446, %v4446
    %v4448 = vld [vmem:[#allocation4 + $0xc0] sm:$0xff]
    %v4449 = vld [vmem:[#allocation4 + $0xc8] sm:$0xff]
    %v4450 = vld [vmem:[#allocation4 + $0xd0] sm:$0xff]
    %v4451 = vld [vmem:[#allocation4 + $0xd8] sm:$0xff]
    %v4452 = vld [vmem:[#allocation4 + $0xe0] sm:$0xff]
    %v4453 = vld [vmem:[#allocation4 + $0xe8] sm:$0xff]
    %v4454 = vld [vmem:[#allocation4 + $0xf0] sm:$0xff]
    %v4455 = vld [vmem:[#allocation4 + $0xf8] sm:$0xff]
    %v4464 = vunpack.c.l.b16 %v4448
    %v4465 = vunpack.c.h.b16 %v4448
    %v4466 = vunpack.c.l.b16 %v4449
    %v4467 = vunpack.c.h.b16 %v4449
    %v4468 = vunpack.c.l.b16 %v4450
    %v4469 = vunpack.c.h.b16 %v4450
    %v4470 = vunpack.c.l.b16 %v4451
    %v4471 = vunpack.c.h.b16 %v4451
    %v4472 = vunpack.c.l.b16 %v4452
    %v4473 = vunpack.c.h.b16 %v4452
    %v4474 = vunpack.c.l.b16 %v4453
    %v4475 = vunpack.c.h.b16 %v4453
    %v4476 = vunpack.c.l.b16 %v4454
    %v4477 = vunpack.c.h.b16 %v4454
    %v4478 = vunpack.c.l.b16 %v4455
    %v4479 = vunpack.c.h.b16 %v4455
    %v4480 = vpack.c.b16 %v4466, %v4464
    %v4481 = vpack.c.b16 %v4467, %v4465
    %v4482 = vpack.c.b16 %v4470, %v4468
    %v4483 = vpack.c.b16 %v4471, %v4469
    %v4484 = vpack.c.b16 %v4474, %v4472
    %v4485 = vpack.c.b16 %v4475, %v4473
    %v4486 = vpack.c.b16 %v4478, %v4476
    %v4487 = vpack.c.b16 %v4479, %v4477
    %v4497 = vsel %vm369, %v4447, 0
    %4499 = vmatprep.subr.bf16.mxu0 0
    %4500 = vmatpush1.bf16.msra.mxu0 0
    %4501 = vmatprep.subr.bf16.mxu0 0
    %4502 = vmatpush1.bf16.msra.mxu0 0
    %4503 = vmatprep.subr.bf16.mxu0 0
    %4504 = vmatpush1.bf16.msra.mxu0 0
    %4505 = vmatprep.subr.bf16.mxu0 0
    %4506 = vmatpush1.bf16.msra.mxu0 0
    %4507 = vmatprep.subr.bf16.mxu0 %v4487
    %4508 = vmatpush1.bf16.msra.mxu0 %v4486
    %4509 = vmatprep.subr.bf16.mxu0 %v4485
    %4510 = vmatpush1.bf16.msra.mxu0 %v4484
    %4511 = vmatprep.subr.bf16.mxu0 %v4483
    %4512 = vmatpush1.bf16.msra.mxu0 %v4482
    %4513 = vmatprep.subr.bf16.mxu0 %v4481
    %4514 = vmatpush1.bf16.msra.mxu0 %v4480
    %4515 = vmatprep.subr.bf16.mxu0 0
    %4516 = vmatpush2.bf16.msra.mxu0 0
    %4517 = vmatprep.subr.bf16.mxu0 0
    %4518 = vmatpush2.bf16.msra.mxu0 0
    %4519 = vmatprep.subr.bf16.mxu0 0
    %4520 = vmatpush2.bf16.msra.mxu0 0
    %4521 = vmatprep.subr.bf16.mxu0 0
    %4522 = vmatpush2.bf16.msra.mxu0 0
    %4523 = vmatprep.subr.bf16.mxu0 0
    %4524 = vmatpush2.bf16.msra.mxu0 0
    %4525 = vmatprep.subr.bf16.mxu0 0
    %4526 = vmatpush2.bf16.msra.mxu0 0
    %4527 = vmatprep.subr.bf16.mxu0 0
    %4528 = vmatpush2.bf16.msra.mxu0 0
    %4529 = vmatprep.subr.bf16.mxu0 0
    %4530 = vmatpush2.bf16.msra.mxu0 0
    %4531 = vmatprep.mubr.bf16.mxu0 0
    %4532 = vmatmul.mubr.bf16.gmra.mxu0 %v4497
    %v4533 = vpop.f32.mrf.mxu0
    %v4534 = vadd.f32 0.0, %v4533
    %v4535 = vpop.f32.mrf.mxu0
    %v4536 = vadd.f32 0.0, %v4535
    %v4537 = vpop.f32.mrf.mxu0
    %v4538 = vpop.f32.mrf.mxu0
    %4539 = vdwg.mxu0
    %v4540 = vadd.f32 %v4440, %v4534
    %v4541 = vadd.f32 %v4441, %v4536
    %v4542 = vrot.slane %v4038, 4
    %v4544 = vrot.slane %v4040, 3
    %v4546 = vsel %vm4066, %v4542, %v4544
    %v4547 = vpack.c.bf16 %v4546, %v4546
    %v4548 = vld [vmem:[#allocation4 + $0x100] sm:$0xff]
    %v4549 = vld [vmem:[#allocation4 + $0x108] sm:$0xff]
    %v4550 = vld [vmem:[#allocation4 + $0x110] sm:$0xff]
    %v4551 = vld [vmem:[#allocation4 + $0x118] sm:$0xff]
    %v4552 = vld [vmem:[#allocation4 + $0x120] sm:$0xff]
    %v4553 = vld [vmem:[#allocation4 + $0x128] sm:$0xff]
    %v4554 = vld [vmem:[#allocation4 + $0x130] sm:$0xff]
    %v4555 = vld [vmem:[#allocation4 + $0x138] sm:$0xff]
    %v4564 = vunpack.c.l.b16 %v4548
    %v4565 = vunpack.c.h.b16 %v4548
    %v4566 = vunpack.c.l.b16 %v4549
    %v4567 = vunpack.c.h.b16 %v4549
    %v4568 = vunpack.c.l.b16 %v4550
    %v4569 = vunpack.c.h.b16 %v4550
    %v4570 = vunpack.c.l.b16 %v4551
    %v4571 = vunpack.c.h.b16 %v4551
    %v4572 = vunpack.c.l.b16 %v4552
    %v4573 = vunpack.c.h.b16 %v4552
    %v4574 = vunpack.c.l.b16 %v4553
    %v4575 = vunpack.c.h.b16 %v4553
    %v4576 = vunpack.c.l.b16 %v4554
    %v4577 = vunpack.c.h.b16 %v4554
    %v4578 = vunpack.c.l.b16 %v4555
    %v4579 = vunpack.c.h.b16 %v4555
    %v4580 = vpack.c.b16 %v4566, %v4564
    %v4581 = vpack.c.b16 %v4567, %v4565
    %v4582 = vpack.c.b16 %v4570, %v4568
    %v4583 = vpack.c.b16 %v4571, %v4569
    %v4584 = vpack.c.b16 %v4574, %v4572
    %v4585 = vpack.c.b16 %v4575, %v4573
    %v4586 = vpack.c.b16 %v4578, %v4576
    %v4587 = vpack.c.b16 %v4579, %v4577
    %v4597 = vsel %vm369, %v4547, 0
    %4599 = vmatprep.subr.bf16.mxu0 0
    %4600 = vmatpush1.bf16.msra.mxu0 0
    %4601 = vmatprep.subr.bf16.mxu0 0
    %4602 = vmatpush1.bf16.msra.mxu0 0
    %4603 = vmatprep.subr.bf16.mxu0 0
    %4604 = vmatpush1.bf16.msra.mxu0 0
    %4605 = vmatprep.subr.bf16.mxu0 0
    %4606 = vmatpush1.bf16.msra.mxu0 0
    %4607 = vmatprep.subr.bf16.mxu0 %v4587
    %4608 = vmatpush1.bf16.msra.mxu0 %v4586
    %4609 = vmatprep.subr.bf16.mxu0 %v4585
    %4610 = vmatpush1.bf16.msra.mxu0 %v4584
    %4611 = vmatprep.subr.bf16.mxu0 %v4583
    %4612 = vmatpush1.bf16.msra.mxu0 %v4582
    %4613 = vmatprep.subr.bf16.mxu0 %v4581
    %4614 = vmatpush1.bf16.msra.mxu0 %v4580
    %4615 = vmatprep.subr.bf16.mxu0 0
    %4616 = vmatpush2.bf16.msra.mxu0 0
    %4617 = vmatprep.subr.bf16.mxu0 0
    %4618 = vmatpush2.bf16.msra.mxu0 0
    %4619 = vmatprep.subr.bf16.mxu0 0
    %4620 = vmatpush2.bf16.msra.mxu0 0
    %4621 = vmatprep.subr.bf16.mxu0 0
    %4622 = vmatpush2.bf16.msra.mxu0 0
    %4623 = vmatprep.subr.bf16.mxu0 0
    %4624 = vmatpush2.bf16.msra.mxu0 0
    %4625 = vmatprep.subr.bf16.mxu0 0
    %4626 = vmatpush2.bf16.msra.mxu0 0
    %4627 = vmatprep.subr.bf16.mxu0 0
    %4628 = vmatpush2.bf16.msra.mxu0 0
    %4629 = vmatprep.subr.bf16.mxu0 0
    %4630 = vmatpush2.bf16.msra.mxu0 0
    %4631 = vmatprep.mubr.bf16.mxu0 0
    %4632 = vmatmul.mubr.bf16.gmra.mxu0 %v4597
    %v4633 = vpop.f32.mrf.mxu0
    %v4634 = vadd.f32 0.0, %v4633
    %v4635 = vpop.f32.mrf.mxu0
    %v4636 = vadd.f32 0.0, %v4635
    %v4637 = vpop.f32.mrf.mxu0
    %v4638 = vpop.f32.mrf.mxu0
    %4639 = vdwg.mxu0
    %v4640 = vadd.f32 %v4540, %v4634
    %v4641 = vadd.f32 %v4541, %v4636
    %v4642 = vrot.slane %v4038, 5
    %v4644 = vrot.slane %v4040, 4
    %v4646 = vsel %vm4066, %v4642, %v4644
    %v4647 = vpack.c.bf16 %v4646, %v4646
    %v4648 = vld [vmem:[#allocation4 + $0x140] sm:$0xff]
    %v4649 = vld [vmem:[#allocation4 + $0x148] sm:$0xff]
    %v4650 = vld [vmem:[#allocation4 + $0x150] sm:$0xff]
    %v4651 = vld [vmem:[#allocation4 + $0x158] sm:$0xff]
    %v4652 = vld [vmem:[#allocation4 + $0x160] sm:$0xff]
    %v4653 = vld [vmem:[#allocation4 + $0x168] sm:$0xff]
    %v4654 = vld [vmem:[#allocation4 + $0x170] sm:$0xff]
    %v4655 = vld [vmem:[#allocation4 + $0x178] sm:$0xff]
    %v4664 = vunpack.c.l.b16 %v4648
    %v4665 = vunpack.c.h.b16 %v4648
    %v4666 = vunpack.c.l.b16 %v4649
    %v4667 = vunpack.c.h.b16 %v4649
    %v4668 = vunpack.c.l.b16 %v4650
    %v4669 = vunpack.c.h.b16 %v4650
    %v4670 = vunpack.c.l.b16 %v4651
    %v4671 = vunpack.c.h.b16 %v4651
    %v4672 = vunpack.c.l.b16 %v4652
    %v4673 = vunpack.c.h.b16 %v4652
    %v4674 = vunpack.c.l.b16 %v4653
    %v4675 = vunpack.c.h.b16 %v4653
    %v4676 = vunpack.c.l.b16 %v4654
    %v4677 = vunpack.c.h.b16 %v4654
    %v4678 = vunpack.c.l.b16 %v4655
    %v4679 = vunpack.c.h.b16 %v4655
    %v4680 = vpack.c.b16 %v4666, %v4664
    %v4681 = vpack.c.b16 %v4667, %v4665
    %v4682 = vpack.c.b16 %v4670, %v4668
    %v4683 = vpack.c.b16 %v4671, %v4669
    %v4684 = vpack.c.b16 %v4674, %v4672
    %v4685 = vpack.c.b16 %v4675, %v4673
    %v4686 = vpack.c.b16 %v4678, %v4676
    %v4687 = vpack.c.b16 %v4679, %v4677
    %v4697 = vsel %vm369, %v4647, 0
    %4699 = vmatprep.subr.bf16.mxu0 0
    %4700 = vmatpush1.bf16.msra.mxu0 0
    %4701 = vmatprep.subr.bf16.mxu0 0
    %4702 = vmatpush1.bf16.msra.mxu0 0
    %4703 = vmatprep.subr.bf16.mxu0 0
    %4704 = vmatpush1.bf16.msra.mxu0 0
    %4705 = vmatprep.subr.bf16.mxu0 0
    %4706 = vmatpush1.bf16.msra.mxu0 0
    %4707 = vmatprep.subr.bf16.mxu0 %v4687
    %4708 = vmatpush1.bf16.msra.mxu0 %v4686
    %4709 = vmatprep.subr.bf16.mxu0 %v4685
    %4710 = vmatpush1.bf16.msra.mxu0 %v4684
    %4711 = vmatprep.subr.bf16.mxu0 %v4683
    %4712 = vmatpush1.bf16.msra.mxu0 %v4682
    %4713 = vmatprep.subr.bf16.mxu0 %v4681
    %4714 = vmatpush1.bf16.msra.mxu0 %v4680
    %4715 = vmatprep.subr.bf16.mxu0 0
    %4716 = vmatpush2.bf16.msra.mxu0 0
    %4717 = vmatprep.subr.bf16.mxu0 0
    %4718 = vmatpush2.bf16.msra.mxu0 0
    %4719 = vmatprep.subr.bf16.mxu0 0
    %4720 = vmatpush2.bf16.msra.mxu0 0
    %4721 = vmatprep.subr.bf16.mxu0 0
    %4722 = vmatpush2.bf16.msra.mxu0 0
    %4723 = vmatprep.subr.bf16.mxu0 0
    %4724 = vmatpush2.bf16.msra.mxu0 0
    %4725 = vmatprep.subr.bf16.mxu0 0
    %4726 = vmatpush2.bf16.msra.mxu0 0
    %4727 = vmatprep.subr.bf16.mxu0 0
    %4728 = vmatpush2.bf16.msra.mxu0 0
    %4729 = vmatprep.subr.bf16.mxu0 0
    %4730 = vmatpush2.bf16.msra.mxu0 0
    %4731 = vmatprep.mubr.bf16.mxu0 0
    %4732 = vmatmul.mubr.bf16.gmra.mxu0 %v4697
    %v4733 = vpop.f32.mrf.mxu0
    %v4734 = vadd.f32 0.0, %v4733
    %v4735 = vpop.f32.mrf.mxu0
    %v4736 = vadd.f32 0.0, %v4735
    %v4737 = vpop.f32.mrf.mxu0
    %v4738 = vpop.f32.mrf.mxu0
    %4739 = vdwg.mxu0
    %v4740 = vadd.f32 %v4640, %v4734
    %v4741 = vadd.f32 %v4641, %v4736
    %v4742 = vrot.slane %v4038, 6
    %v4744 = vrot.slane %v4040, 5
    %v4746 = vsel %vm4066, %v4742, %v4744
    %v4747 = vpack.c.bf16 %v4746, %v4746
    %v4748 = vld [vmem:[#allocation4 + $0x180] sm:$0xff]
    %v4749 = vld [vmem:[#allocation4 + $0x188] sm:$0xff]
    %v4750 = vld [vmem:[#allocation4 + $0x190] sm:$0xff]
    %v4751 = vld [vmem:[#allocation4 + $0x198] sm:$0xff]
    %v4752 = vld [vmem:[#allocation4 + $0x1a0] sm:$0xff]
    %v4753 = vld [vmem:[#allocation4 + $0x1a8] sm:$0xff]
    %v4754 = vld [vmem:[#allocation4 + $0x1b0] sm:$0xff]
    %v4755 = vld [vmem:[#allocation4 + $0x1b8] sm:$0xff]
    %v4764 = vunpack.c.l.b16 %v4748
    %v4765 = vunpack.c.h.b16 %v4748
    %v4766 = vunpack.c.l.b16 %v4749
    %v4767 = vunpack.c.h.b16 %v4749
    %v4768 = vunpack.c.l.b16 %v4750
    %v4769 = vunpack.c.h.b16 %v4750
    %v4770 = vunpack.c.l.b16 %v4751
    %v4771 = vunpack.c.h.b16 %v4751
    %v4772 = vunpack.c.l.b16 %v4752
    %v4773 = vunpack.c.h.b16 %v4752
    %v4774 = vunpack.c.l.b16 %v4753
    %v4775 = vunpack.c.h.b16 %v4753
    %v4776 = vunpack.c.l.b16 %v4754
    %v4777 = vunpack.c.h.b16 %v4754
    %v4778 = vunpack.c.l.b16 %v4755
    %v4779 = vunpack.c.h.b16 %v4755
    %v4780 = vpack.c.b16 %v4766, %v4764
    %v4781 = vpack.c.b16 %v4767, %v4765
    %v4782 = vpack.c.b16 %v4770, %v4768
    %v4783 = vpack.c.b16 %v4771, %v4769
    %v4784 = vpack.c.b16 %v4774, %v4772
    %v4785 = vpack.c.b16 %v4775, %v4773
    %v4786 = vpack.c.b16 %v4778, %v4776
    %v4787 = vpack.c.b16 %v4779, %v4777
    %v4797 = vsel %vm369, %v4747, 0
    %4799 = vmatprep.subr.bf16.mxu0 0
    %4800 = vmatpush1.bf16.msra.mxu0 0
    %4801 = vmatprep.subr.bf16.mxu0 0
    %4802 = vmatpush1.bf16.msra.mxu0 0
    %4803 = vmatprep.subr.bf16.mxu0 0
    %4804 = vmatpush1.bf16.msra.mxu0 0
    %4805 = vmatprep.subr.bf16.mxu0 0
    %4806 = vmatpush1.bf16.msra.mxu0 0
    %4807 = vmatprep.subr.bf16.mxu0 %v4787
    %4808 = vmatpush1.bf16.msra.mxu0 %v4786
    %4809 = vmatprep.subr.bf16.mxu0 %v4785
    %4810 = vmatpush1.bf16.msra.mxu0 %v4784
    %4811 = vmatprep.subr.bf16.mxu0 %v4783
    %4812 = vmatpush1.bf16.msra.mxu0 %v4782
    %4813 = vmatprep.subr.bf16.mxu0 %v4781
    %4814 = vmatpush1.bf16.msra.mxu0 %v4780
    %4815 = vmatprep.subr.bf16.mxu0 0
    %4816 = vmatpush2.bf16.msra.mxu0 0
    %4817 = vmatprep.subr.bf16.mxu0 0
    %4818 = vmatpush2.bf16.msra.mxu0 0
    %4819 = vmatprep.subr.bf16.mxu0 0
    %4820 = vmatpush2.bf16.msra.mxu0 0
    %4821 = vmatprep.subr.bf16.mxu0 0
    %4822 = vmatpush2.bf16.msra.mxu0 0
    %4823 = vmatprep.subr.bf16.mxu0 0
    %4824 = vmatpush2.bf16.msra.mxu0 0
    %4825 = vmatprep.subr.bf16.mxu0 0
    %4826 = vmatpush2.bf16.msra.mxu0 0
    %4827 = vmatprep.subr.bf16.mxu0 0
    %4828 = vmatpush2.bf16.msra.mxu0 0
    %4829 = vmatprep.subr.bf16.mxu0 0
    %4830 = vmatpush2.bf16.msra.mxu0 0
    %4831 = vmatprep.mubr.bf16.mxu0 0
    %4832 = vmatmul.mubr.bf16.gmra.mxu0 %v4797
    %v4833 = vpop.f32.mrf.mxu0
    %v4834 = vadd.f32 0.0, %v4833
    %v4835 = vpop.f32.mrf.mxu0
    %v4836 = vadd.f32 0.0, %v4835
    %v4837 = vpop.f32.mrf.mxu0
    %v4838 = vpop.f32.mrf.mxu0
    %4839 = vdwg.mxu0
    %v4840 = vadd.f32 %v4740, %v4834
    %v4841 = vadd.f32 %v4741, %v4836
    %v4842 = vrot.slane %v4038, 7
    %v4844 = vrot.slane %v4040, 6
    %v4846 = vsel %vm4066, %v4842, %v4844
    %v4847 = vpack.c.bf16 %v4846, %v4846
    %v4848 = vld [vmem:[#allocation4 + $0x1c0] sm:$0xff]
    %v4849 = vld [vmem:[#allocation4 + $0x1c8] sm:$0xff]
    %v4850 = vld [vmem:[#allocation4 + $0x1d0] sm:$0xff]
    %v4851 = vld [vmem:[#allocation4 + $0x1d8] sm:$0xff]
    %v4852 = vld [vmem:[#allocation4 + $0x1e0] sm:$0xff]
    %v4853 = vld [vmem:[#allocation4 + $0x1e8] sm:$0xff]
    %v4854 = vld [vmem:[#allocation4 + $0x1f0] sm:$0xff]
    %v4855 = vld [vmem:[#allocation4 + $0x1f8] sm:$0xff]
    %v4864 = vunpack.c.l.b16 %v4848
    %v4865 = vunpack.c.h.b16 %v4848
    %v4866 = vunpack.c.l.b16 %v4849
    %v4867 = vunpack.c.h.b16 %v4849
    %v4868 = vunpack.c.l.b16 %v4850
    %v4869 = vunpack.c.h.b16 %v4850
    %v4870 = vunpack.c.l.b16 %v4851
    %v4871 = vunpack.c.h.b16 %v4851
    %v4872 = vunpack.c.l.b16 %v4852
    %v4873 = vunpack.c.h.b16 %v4852
    %v4874 = vunpack.c.l.b16 %v4853
    %v4875 = vunpack.c.h.b16 %v4853
    %v4876 = vunpack.c.l.b16 %v4854
    %v4877 = vunpack.c.h.b16 %v4854
    %v4878 = vunpack.c.l.b16 %v4855
    %v4879 = vunpack.c.h.b16 %v4855
    %v4880 = vpack.c.b16 %v4866, %v4864
    %v4881 = vpack.c.b16 %v4867, %v4865
    %v4882 = vpack.c.b16 %v4870, %v4868
    %v4883 = vpack.c.b16 %v4871, %v4869
    %v4884 = vpack.c.b16 %v4874, %v4872
    %v4885 = vpack.c.b16 %v4875, %v4873
    %v4886 = vpack.c.b16 %v4878, %v4876
    %v4887 = vpack.c.b16 %v4879, %v4877
    %v4897 = vsel %vm369, %v4847, 0
    %4899 = vmatprep.subr.bf16.mxu0 0
    %4900 = vmatpush1.bf16.msra.mxu0 0
    %4901 = vmatprep.subr.bf16.mxu0 0
    %4902 = vmatpush1.bf16.msra.mxu0 0
    %4903 = vmatprep.subr.bf16.mxu0 0
    %4904 = vmatpush1.bf16.msra.mxu0 0
    %4905 = vmatprep.subr.bf16.mxu0 0
    %4906 = vmatpush1.bf16.msra.mxu0 0
    %4907 = vmatprep.subr.bf16.mxu0 %v4887
    %4908 = vmatpush1.bf16.msra.mxu0 %v4886
    %4909 = vmatprep.subr.bf16.mxu0 %v4885
    %4910 = vmatpush1.bf16.msra.mxu0 %v4884
    %4911 = vmatprep.subr.bf16.mxu0 %v4883
    %4912 = vmatpush1.bf16.msra.mxu0 %v4882
    %4913 = vmatprep.subr.bf16.mxu0 %v4881
    %4914 = vmatpush1.bf16.msra.mxu0 %v4880
    %4915 = vmatprep.subr.bf16.mxu0 0
    %4916 = vmatpush2.bf16.msra.mxu0 0
    %4917 = vmatprep.subr.bf16.mxu0 0
    %4918 = vmatpush2.bf16.msra.mxu0 0
    %4919 = vmatprep.subr.bf16.mxu0 0
    %4920 = vmatpush2.bf16.msra.mxu0 0
    %4921 = vmatprep.subr.bf16.mxu0 0
    %4922 = vmatpush2.bf16.msra.mxu0 0
    %4923 = vmatprep.subr.bf16.mxu0 0
    %4924 = vmatpush2.bf16.msra.mxu0 0
    %4925 = vmatprep.subr.bf16.mxu0 0
    %4926 = vmatpush2.bf16.msra.mxu0 0
    %4927 = vmatprep.subr.bf16.mxu0 0
    %4928 = vmatpush2.bf16.msra.mxu0 0
    %4929 = vmatprep.subr.bf16.mxu0 0
    %4930 = vmatpush2.bf16.msra.mxu0 0
    %4931 = vmatprep.mubr.bf16.mxu0 0
    %4932 = vmatmul.mubr.bf16.gmra.mxu0 %v4897
    %v4933 = vpop.f32.mrf.mxu0
    %v4934 = vadd.f32 0.0, %v4933
    %v4935 = vpop.f32.mrf.mxu0
    %v4936 = vadd.f32 0.0, %v4935
    %v4937 = vpop.f32.mrf.mxu0
    %v4938 = vpop.f32.mrf.mxu0
    %4939 = vdwg.mxu0
    %v4940 = vadd.f32 %v4840, %v4934
    %v4941 = vadd.f32 %v4841, %v4936
    %v4943 = vrot.slane %v4041, 7
    %v4945 = vsel %vm4066, %v4039, %v4943
    %v4946 = vpack.c.bf16 %v4945, %v4945
    %v4947 = vld [vmem:[#allocation4 + $0x200] sm:$0xff]
    %v4948 = vld [vmem:[#allocation4 + $0x208] sm:$0xff]
    %v4949 = vld [vmem:[#allocation4 + $0x210] sm:$0xff]
    %v4950 = vld [vmem:[#allocation4 + $0x218] sm:$0xff]
    %v4951 = vld [vmem:[#allocation4 + $0x220] sm:$0xff]
    %v4952 = vld [vmem:[#allocation4 + $0x228] sm:$0xff]
    %v4953 = vld [vmem:[#allocation4 + $0x230] sm:$0xff]
    %v4954 = vld [vmem:[#allocation4 + $0x238] sm:$0xff]
    %v4963 = vunpack.c.l.b16 %v4947
    %v4964 = vunpack.c.h.b16 %v4947
    %v4965 = vunpack.c.l.b16 %v4948
    %v4966 = vunpack.c.h.b16 %v4948
    %v4967 = vunpack.c.l.b16 %v4949
    %v4968 = vunpack.c.h.b16 %v4949
    %v4969 = vunpack.c.l.b16 %v4950
    %v4970 = vunpack.c.h.b16 %v4950
    %v4971 = vunpack.c.l.b16 %v4951
    %v4972 = vunpack.c.h.b16 %v4951
    %v4973 = vunpack.c.l.b16 %v4952
    %v4974 = vunpack.c.h.b16 %v4952
    %v4975 = vunpack.c.l.b16 %v4953
    %v4976 = vunpack.c.h.b16 %v4953
    %v4977 = vunpack.c.l.b16 %v4954
    %v4978 = vunpack.c.h.b16 %v4954
    %v4979 = vpack.c.b16 %v4965, %v4963
    %v4980 = vpack.c.b16 %v4966, %v4964
    %v4981 = vpack.c.b16 %v4969, %v4967
    %v4982 = vpack.c.b16 %v4970, %v4968
    %v4983 = vpack.c.b16 %v4973, %v4971
    %v4984 = vpack.c.b16 %v4974, %v4972
    %v4985 = vpack.c.b16 %v4977, %v4975
    %v4986 = vpack.c.b16 %v4978, %v4976
    %v4996 = vsel %vm369, %v4946, 0
    %4998 = vmatprep.subr.bf16.mxu0 0
    %4999 = vmatpush1.bf16.msra.mxu0 0
    %5000 = vmatprep.subr.bf16.mxu0 0
    %5001 = vmatpush1.bf16.msra.mxu0 0
    %5002 = vmatprep.subr.bf16.mxu0 0
    %5003 = vmatpush1.bf16.msra.mxu0 0
    %5004 = vmatprep.subr.bf16.mxu0 0
    %5005 = vmatpush1.bf16.msra.mxu0 0
    %5006 = vmatprep.subr.bf16.mxu0 %v4986
    %5007 = vmatpush1.bf16.msra.mxu0 %v4985
    %5008 = vmatprep.subr.bf16.mxu0 %v4984
    %5009 = vmatpush1.bf16.msra.mxu0 %v4983
    %5010 = vmatprep.subr.bf16.mxu0 %v4982
    %5011 = vmatpush1.bf16.msra.mxu0 %v4981
    %5012 = vmatprep.subr.bf16.mxu0 %v4980
    %5013 = vmatpush1.bf16.msra.mxu0 %v4979
    %5014 = vmatprep.subr.bf16.mxu0 0
    %5015 = vmatpush2.bf16.msra.mxu0 0
    %5016 = vmatprep.subr.bf16.mxu0 0
    %5017 = vmatpush2.bf16.msra.mxu0 0
    %5018 = vmatprep.subr.bf16.mxu0 0
    %5019 = vmatpush2.bf16.msra.mxu0 0
    %5020 = vmatprep.subr.bf16.mxu0 0
    %5021 = vmatpush2.bf16.msra.mxu0 0
    %5022 = vmatprep.subr.bf16.mxu0 0
    %5023 = vmatpush2.bf16.msra.mxu0 0
    %5024 = vmatprep.subr.bf16.mxu0 0
    %5025 = vmatpush2.bf16.msra.mxu0 0
    %5026 = vmatprep.subr.bf16.mxu0 0
    %5027 = vmatpush2.bf16.msra.mxu0 0
    %5028 = vmatprep.subr.bf16.mxu0 0
    %5029 = vmatpush2.bf16.msra.mxu0 0
    %5030 = vmatprep.mubr.bf16.mxu0 0
    %5031 = vmatmul.mubr.bf16.gmra.mxu0 %v4996
    %v5032 = vpop.f32.mrf.mxu0
    %v5033 = vadd.f32 0.0, %v5032
    %v5034 = vpop.f32.mrf.mxu0
    %v5035 = vadd.f32 0.0, %v5034
    %v5036 = vpop.f32.mrf.mxu0
    %v5037 = vpop.f32.mrf.mxu0
    %5038 = vdwg.mxu0
    %v5039 = vadd.f32 %v4940, %v5033
    %v5040 = vadd.f32 %v4941, %v5035
    %v5042 = vrot.slane %v4039, 1
    %v5044 = vsel %vm4066, %v5042, %v4041
    %v5045 = vpack.c.bf16 %v5044, %v5044
    %v5046 = vld [vmem:[#allocation4 + $0x240] sm:$0xff]
    %v5047 = vld [vmem:[#allocation4 + $0x248] sm:$0xff]
    %v5048 = vld [vmem:[#allocation4 + $0x250] sm:$0xff]
    %v5049 = vld [vmem:[#allocation4 + $0x258] sm:$0xff]
    %v5050 = vld [vmem:[#allocation4 + $0x260] sm:$0xff]
    %v5051 = vld [vmem:[#allocation4 + $0x268] sm:$0xff]
    %v5052 = vld [vmem:[#allocation4 + $0x270] sm:$0xff]
    %v5053 = vld [vmem:[#allocation4 + $0x278] sm:$0xff]
    %v5062 = vunpack.c.l.b16 %v5046
    %v5063 = vunpack.c.h.b16 %v5046
    %v5064 = vunpack.c.l.b16 %v5047
    %v5065 = vunpack.c.h.b16 %v5047
    %v5066 = vunpack.c.l.b16 %v5048
    %v5067 = vunpack.c.h.b16 %v5048
    %v5068 = vunpack.c.l.b16 %v5049
    %v5069 = vunpack.c.h.b16 %v5049
    %v5070 = vunpack.c.l.b16 %v5050
    %v5071 = vunpack.c.h.b16 %v5050
    %v5072 = vunpack.c.l.b16 %v5051
    %v5073 = vunpack.c.h.b16 %v5051
    %v5074 = vunpack.c.l.b16 %v5052
    %v5075 = vunpack.c.h.b16 %v5052
    %v5076 = vunpack.c.l.b16 %v5053
    %v5077 = vunpack.c.h.b16 %v5053
    %v5078 = vpack.c.b16 %v5064, %v5062
    %v5079 = vpack.c.b16 %v5065, %v5063
    %v5080 = vpack.c.b16 %v5068, %v5066
    %v5081 = vpack.c.b16 %v5069, %v5067
    %v5082 = vpack.c.b16 %v5072, %v5070
    %v5083 = vpack.c.b16 %v5073, %v5071
    %v5084 = vpack.c.b16 %v5076, %v5074
    %v5085 = vpack.c.b16 %v5077, %v5075
    %v5095 = vsel %vm369, %v5045, 0
    %5097 = vmatprep.subr.bf16.mxu0 0
    %5098 = vmatpush1.bf16.msra.mxu0 0
    %5099 = vmatprep.subr.bf16.mxu0 0
    %5100 = vmatpush1.bf16.msra.mxu0 0
    %5101 = vmatprep.subr.bf16.mxu0 0
    %5102 = vmatpush1.bf16.msra.mxu0 0
    %5103 = vmatprep.subr.bf16.mxu0 0
    %5104 = vmatpush1.bf16.msra.mxu0 0
    %5105 = vmatprep.subr.bf16.mxu0 %v5085
    %5106 = vmatpush1.bf16.msra.mxu0 %v5084
    %5107 = vmatprep.subr.bf16.mxu0 %v5083
    %5108 = vmatpush1.bf16.msra.mxu0 %v5082
    %5109 = vmatprep.subr.bf16.mxu0 %v5081
    %5110 = vmatpush1.bf16.msra.mxu0 %v5080
    %5111 = vmatprep.subr.bf16.mxu0 %v5079
    %5112 = vmatpush1.bf16.msra.mxu0 %v5078
    %5113 = vmatprep.subr.bf16.mxu0 0
    %5114 = vmatpush2.bf16.msra.mxu0 0
    %5115 = vmatprep.subr.bf16.mxu0 0
    %5116 = vmatpush2.bf16.msra.mxu0 0
    %5117 = vmatprep.subr.bf16.mxu0 0
    %5118 = vmatpush2.bf16.msra.mxu0 0
    %5119 = vmatprep.subr.bf16.mxu0 0
    %5120 = vmatpush2.bf16.msra.mxu0 0
    %5121 = vmatprep.subr.bf16.mxu0 0
    %5122 = vmatpush2.bf16.msra.mxu0 0
    %5123 = vmatprep.subr.bf16.mxu0 0
    %5124 = vmatpush2.bf16.msra.mxu0 0
    %5125 = vmatprep.subr.bf16.mxu0 0
    %5126 = vmatpush2.bf16.msra.mxu0 0
    %5127 = vmatprep.subr.bf16.mxu0 0
    %5128 = vmatpush2.bf16.msra.mxu0 0
    %5129 = vmatprep.mubr.bf16.mxu0 0
    %5130 = vmatmul.mubr.bf16.gmra.mxu0 %v5095
    %v5131 = vpop.f32.mrf.mxu0
    %v5132 = vadd.f32 0.0, %v5131
    %v5133 = vpop.f32.mrf.mxu0
    %v5134 = vadd.f32 0.0, %v5133
    %v5135 = vpop.f32.mrf.mxu0
    %v5136 = vpop.f32.mrf.mxu0
    %5137 = vdwg.mxu0
    %v5138 = vadd.f32 %v5039, %v5132
    %v5139 = vadd.f32 %v5040, %v5134
    %v5140 = vrot.slane %v4039, 2
    %v5142 = vrot.slane %v4041, 1
    %v5144 = vsel %vm4066, %v5140, %v5142
    %v5145 = vpack.c.bf16 %v5144, %v5144
    %v5146 = vld [vmem:[#allocation4 + $0x280] sm:$0xff]
    %v5147 = vld [vmem:[#allocation4 + $0x288] sm:$0xff]
    %v5148 = vld [vmem:[#allocation4 + $0x290] sm:$0xff]
    %v5149 = vld [vmem:[#allocation4 + $0x298] sm:$0xff]
    %v5150 = vld [vmem:[#allocation4 + $0x2a0] sm:$0xff]
    %v5151 = vld [vmem:[#allocation4 + $0x2a8] sm:$0xff]
    %v5152 = vld [vmem:[#allocation4 + $0x2b0] sm:$0xff]
    %v5153 = vld [vmem:[#allocation4 + $0x2b8] sm:$0xff]
    %v5162 = vunpack.c.l.b16 %v5146
    %v5163 = vunpack.c.h.b16 %v5146
    %v5164 = vunpack.c.l.b16 %v5147
    %v5165 = vunpack.c.h.b16 %v5147
    %v5166 = vunpack.c.l.b16 %v5148
    %v5167 = vunpack.c.h.b16 %v5148
    %v5168 = vunpack.c.l.b16 %v5149
    %v5169 = vunpack.c.h.b16 %v5149
    %v5170 = vunpack.c.l.b16 %v5150
    %v5171 = vunpack.c.h.b16 %v5150
    %v5172 = vunpack.c.l.b16 %v5151
    %v5173 = vunpack.c.h.b16 %v5151
    %v5174 = vunpack.c.l.b16 %v5152
    %v5175 = vunpack.c.h.b16 %v5152
    %v5176 = vunpack.c.l.b16 %v5153
    %v5177 = vunpack.c.h.b16 %v5153
    %v5178 = vpack.c.b16 %v5164, %v5162
    %v5179 = vpack.c.b16 %v5165, %v5163
    %v5180 = vpack.c.b16 %v5168, %v5166
    %v5181 = vpack.c.b16 %v5169, %v5167
    %v5182 = vpack.c.b16 %v5172, %v5170
    %v5183 = vpack.c.b16 %v5173, %v5171
    %v5184 = vpack.c.b16 %v5176, %v5174
    %v5185 = vpack.c.b16 %v5177, %v5175
    %v5195 = vsel %vm369, %v5145, 0
    %5197 = vmatprep.subr.bf16.mxu0 0
    %5198 = vmatpush1.bf16.msra.mxu0 0
    %5199 = vmatprep.subr.bf16.mxu0 0
    %5200 = vmatpush1.bf16.msra.mxu0 0
    %5201 = vmatprep.subr.bf16.mxu0 0
    %5202 = vmatpush1.bf16.msra.mxu0 0
    %5203 = vmatprep.subr.bf16.mxu0 0
    %5204 = vmatpush1.bf16.msra.mxu0 0
    %5205 = vmatprep.subr.bf16.mxu0 %v5185
    %5206 = vmatpush1.bf16.msra.mxu0 %v5184
    %5207 = vmatprep.subr.bf16.mxu0 %v5183
    %5208 = vmatpush1.bf16.msra.mxu0 %v5182
    %5209 = vmatprep.subr.bf16.mxu0 %v5181
    %5210 = vmatpush1.bf16.msra.mxu0 %v5180
    %5211 = vmatprep.subr.bf16.mxu0 %v5179
    %5212 = vmatpush1.bf16.msra.mxu0 %v5178
    %5213 = vmatprep.subr.bf16.mxu0 0
    %5214 = vmatpush2.bf16.msra.mxu0 0
    %5215 = vmatprep.subr.bf16.mxu0 0
    %5216 = vmatpush2.bf16.msra.mxu0 0
    %5217 = vmatprep.subr.bf16.mxu0 0
    %5218 = vmatpush2.bf16.msra.mxu0 0
    %5219 = vmatprep.subr.bf16.mxu0 0
    %5220 = vmatpush2.bf16.msra.mxu0 0
    %5221 = vmatprep.subr.bf16.mxu0 0
    %5222 = vmatpush2.bf16.msra.mxu0 0
    %5223 = vmatprep.subr.bf16.mxu0 0
    %5224 = vmatpush2.bf16.msra.mxu0 0
    %5225 = vmatprep.subr.bf16.mxu0 0
    %5226 = vmatpush2.bf16.msra.mxu0 0
    %5227 = vmatprep.subr.bf16.mxu0 0
    %5228 = vmatpush2.bf16.msra.mxu0 0
    %5229 = vmatprep.mubr.bf16.mxu0 0
    %5230 = vmatmul.mubr.bf16.gmra.mxu0 %v5195
    %v5231 = vpop.f32.mrf.mxu0
    %v5232 = vadd.f32 0.0, %v5231
    %v5233 = vpop.f32.mrf.mxu0
    %v5234 = vadd.f32 0.0, %v5233
    %v5235 = vpop.f32.mrf.mxu0
    %v5236 = vpop.f32.mrf.mxu0
    %5237 = vdwg.mxu0
    %v5238 = vadd.f32 %v5138, %v5232
    %v5239 = vadd.f32 %v5139, %v5234
    %v5240 = vrot.slane %v4039, 3
    %v5242 = vrot.slane %v4041, 2
    %v5244 = vsel %vm4066, %v5240, %v5242
    %v5245 = vpack.c.bf16 %v5244, %v5244
    %v5246 = vld [vmem:[#allocation4 + $0x2c0] sm:$0xff]
    %v5247 = vld [vmem:[#allocation4 + $0x2c8] sm:$0xff]
    %v5248 = vld [vmem:[#allocation4 + $0x2d0] sm:$0xff]
    %v5249 = vld [vmem:[#allocation4 + $0x2d8] sm:$0xff]
    %v5250 = vld [vmem:[#allocation4 + $0x2e0] sm:$0xff]
    %v5251 = vld [vmem:[#allocation4 + $0x2e8] sm:$0xff]
    %v5252 = vld [vmem:[#allocation4 + $0x2f0] sm:$0xff]
    %v5253 = vld [vmem:[#allocation4 + $0x2f8] sm:$0xff]
    %v5262 = vunpack.c.l.b16 %v5246
    %v5263 = vunpack.c.h.b16 %v5246
    %v5264 = vunpack.c.l.b16 %v5247
    %v5265 = vunpack.c.h.b16 %v5247
    %v5266 = vunpack.c.l.b16 %v5248
    %v5267 = vunpack.c.h.b16 %v5248
    %v5268 = vunpack.c.l.b16 %v5249
    %v5269 = vunpack.c.h.b16 %v5249
    %v5270 = vunpack.c.l.b16 %v5250
    %v5271 = vunpack.c.h.b16 %v5250
    %v5272 = vunpack.c.l.b16 %v5251
    %v5273 = vunpack.c.h.b16 %v5251
    %v5274 = vunpack.c.l.b16 %v5252
    %v5275 = vunpack.c.h.b16 %v5252
    %v5276 = vunpack.c.l.b16 %v5253
    %v5277 = vunpack.c.h.b16 %v5253
    %v5278 = vpack.c.b16 %v5264, %v5262
    %v5279 = vpack.c.b16 %v5265, %v5263
    %v5280 = vpack.c.b16 %v5268, %v5266
    %v5281 = vpack.c.b16 %v5269, %v5267
    %v5282 = vpack.c.b16 %v5272, %v5270
    %v5283 = vpack.c.b16 %v5273, %v5271
    %v5284 = vpack.c.b16 %v5276, %v5274
    %v5285 = vpack.c.b16 %v5277, %v5275
    %v5295 = vsel %vm369, %v5245, 0
    %5297 = vmatprep.subr.bf16.mxu0 0
    %5298 = vmatpush1.bf16.msra.mxu0 0
    %5299 = vmatprep.subr.bf16.mxu0 0
    %5300 = vmatpush1.bf16.msra.mxu0 0
    %5301 = vmatprep.subr.bf16.mxu0 0
    %5302 = vmatpush1.bf16.msra.mxu0 0
    %5303 = vmatprep.subr.bf16.mxu0 0
    %5304 = vmatpush1.bf16.msra.mxu0 0
    %5305 = vmatprep.subr.bf16.mxu0 %v5285
    %5306 = vmatpush1.bf16.msra.mxu0 %v5284
    %5307 = vmatprep.subr.bf16.mxu0 %v5283
    %5308 = vmatpush1.bf16.msra.mxu0 %v5282
    %5309 = vmatprep.subr.bf16.mxu0 %v5281
    %5310 = vmatpush1.bf16.msra.mxu0 %v5280
    %5311 = vmatprep.subr.bf16.mxu0 %v5279
    %5312 = vmatpush1.bf16.msra.mxu0 %v5278
    %5313 = vmatprep.subr.bf16.mxu0 0
    %5314 = vmatpush2.bf16.msra.mxu0 0
    %5315 = vmatprep.subr.bf16.mxu0 0
    %5316 = vmatpush2.bf16.msra.mxu0 0
    %5317 = vmatprep.subr.bf16.mxu0 0
    %5318 = vmatpush2.bf16.msra.mxu0 0
    %5319 = vmatprep.subr.bf16.mxu0 0
    %5320 = vmatpush2.bf16.msra.mxu0 0
    %5321 = vmatprep.subr.bf16.mxu0 0
    %5322 = vmatpush2.bf16.msra.mxu0 0
    %5323 = vmatprep.subr.bf16.mxu0 0
    %5324 = vmatpush2.bf16.msra.mxu0 0
    %5325 = vmatprep.subr.bf16.mxu0 0
    %5326 = vmatpush2.bf16.msra.mxu0 0
    %5327 = vmatprep.subr.bf16.mxu0 0
    %5328 = vmatpush2.bf16.msra.mxu0 0
    %5329 = vmatprep.mubr.bf16.mxu0 0
    %5330 = vmatmul.mubr.bf16.gmra.mxu0 %v5295
    %v5331 = vpop.f32.mrf.mxu0
    %v5332 = vadd.f32 0.0, %v5331
    %v5333 = vpop.f32.mrf.mxu0
    %v5334 = vadd.f32 0.0, %v5333
    %v5335 = vpop.f32.mrf.mxu0
    %v5336 = vpop.f32.mrf.mxu0
    %5337 = vdwg.mxu0
    %v5338 = vadd.f32 %v5238, %v5332
    %v5339 = vadd.f32 %v5239, %v5334
    %v5340 = vrot.slane %v4039, 4
    %v5342 = vrot.slane %v4041, 3
    %v5344 = vsel %vm4066, %v5340, %v5342
    %v5345 = vpack.c.bf16 %v5344, %v5344
    %v5346 = vld [vmem:[#allocation4 + $0x300] sm:$0xff]
    %v5347 = vld [vmem:[#allocation4 + $0x308] sm:$0xff]
    %v5348 = vld [vmem:[#allocation4 + $0x310] sm:$0xff]
    %v5349 = vld [vmem:[#allocation4 + $0x318] sm:$0xff]
    %v5350 = vld [vmem:[#allocation4 + $0x320] sm:$0xff]
    %v5351 = vld [vmem:[#allocation4 + $0x328] sm:$0xff]
    %v5352 = vld [vmem:[#allocation4 + $0x330] sm:$0xff]
    %v5353 = vld [vmem:[#allocation4 + $0x338] sm:$0xff]
    %v5362 = vunpack.c.l.b16 %v5346
    %v5363 = vunpack.c.h.b16 %v5346
    %v5364 = vunpack.c.l.b16 %v5347
    %v5365 = vunpack.c.h.b16 %v5347
    %v5366 = vunpack.c.l.b16 %v5348
    %v5367 = vunpack.c.h.b16 %v5348
    %v5368 = vunpack.c.l.b16 %v5349
    %v5369 = vunpack.c.h.b16 %v5349
    %v5370 = vunpack.c.l.b16 %v5350
    %v5371 = vunpack.c.h.b16 %v5350
    %v5372 = vunpack.c.l.b16 %v5351
    %v5373 = vunpack.c.h.b16 %v5351
    %v5374 = vunpack.c.l.b16 %v5352
    %v5375 = vunpack.c.h.b16 %v5352
    %v5376 = vunpack.c.l.b16 %v5353
    %v5377 = vunpack.c.h.b16 %v5353
    %v5378 = vpack.c.b16 %v5364, %v5362
    %v5379 = vpack.c.b16 %v5365, %v5363
    %v5380 = vpack.c.b16 %v5368, %v5366
    %v5381 = vpack.c.b16 %v5369, %v5367
    %v5382 = vpack.c.b16 %v5372, %v5370
    %v5383 = vpack.c.b16 %v5373, %v5371
    %v5384 = vpack.c.b16 %v5376, %v5374
    %v5385 = vpack.c.b16 %v5377, %v5375
    %v5395 = vsel %vm369, %v5345, 0
    %5397 = vmatprep.subr.bf16.mxu0 0
    %5398 = vmatpush1.bf16.msra.mxu0 0
    %5399 = vmatprep.subr.bf16.mxu0 0
    %5400 = vmatpush1.bf16.msra.mxu0 0
    %5401 = vmatprep.subr.bf16.mxu0 0
    %5402 = vmatpush1.bf16.msra.mxu0 0
    %5403 = vmatprep.subr.bf16.mxu0 0
    %5404 = vmatpush1.bf16.msra.mxu0 0
    %5405 = vmatprep.subr.bf16.mxu0 %v5385
    %5406 = vmatpush1.bf16.msra.mxu0 %v5384
    %5407 = vmatprep.subr.bf16.mxu0 %v5383
    %5408 = vmatpush1.bf16.msra.mxu0 %v5382
    %5409 = vmatprep.subr.bf16.mxu0 %v5381
    %5410 = vmatpush1.bf16.msra.mxu0 %v5380
    %5411 = vmatprep.subr.bf16.mxu0 %v5379
    %5412 = vmatpush1.bf16.msra.mxu0 %v5378
    %5413 = vmatprep.subr.bf16.mxu0 0
    %5414 = vmatpush2.bf16.msra.mxu0 0
    %5415 = vmatprep.subr.bf16.mxu0 0
    %5416 = vmatpush2.bf16.msra.mxu0 0
    %5417 = vmatprep.subr.bf16.mxu0 0
    %5418 = vmatpush2.bf16.msra.mxu0 0
    %5419 = vmatprep.subr.bf16.mxu0 0
    %5420 = vmatpush2.bf16.msra.mxu0 0
    %5421 = vmatprep.subr.bf16.mxu0 0
    %5422 = vmatpush2.bf16.msra.mxu0 0
    %5423 = vmatprep.subr.bf16.mxu0 0
    %5424 = vmatpush2.bf16.msra.mxu0 0
    %5425 = vmatprep.subr.bf16.mxu0 0
    %5426 = vmatpush2.bf16.msra.mxu0 0
    %5427 = vmatprep.subr.bf16.mxu0 0
    %5428 = vmatpush2.bf16.msra.mxu0 0
    %5429 = vmatprep.mubr.bf16.mxu0 0
    %5430 = vmatmul.mubr.bf16.gmra.mxu0 %v5395
    %v5431 = vpop.f32.mrf.mxu0
    %v5432 = vadd.f32 0.0, %v5431
    %v5433 = vpop.f32.mrf.mxu0
    %v5434 = vadd.f32 0.0, %v5433
    %v5435 = vpop.f32.mrf.mxu0
    %v5436 = vpop.f32.mrf.mxu0
    %5437 = vdwg.mxu0
    %v5438 = vadd.f32 %v5338, %v5432
    %v5439 = vadd.f32 %v5339, %v5434
    %v5440 = vrot.slane %v4039, 5
    %v5442 = vrot.slane %v4041, 4
    %v5444 = vsel %vm4066, %v5440, %v5442
    %v5445 = vpack.c.bf16 %v5444, %v5444
    %v5446 = vld [vmem:[#allocation4 + $0x340] sm:$0xff]
    %v5447 = vld [vmem:[#allocation4 + $0x348] sm:$0xff]
    %v5448 = vld [vmem:[#allocation4 + $0x350] sm:$0xff]
    %v5449 = vld [vmem:[#allocation4 + $0x358] sm:$0xff]
    %v5450 = vld [vmem:[#allocation4 + $0x360] sm:$0xff]
    %v5451 = vld [vmem:[#allocation4 + $0x368] sm:$0xff]
    %v5452 = vld [vmem:[#allocation4 + $0x370] sm:$0xff]
    %v5453 = vld [vmem:[#allocation4 + $0x378] sm:$0xff]
    %v5462 = vunpack.c.l.b16 %v5446
    %v5463 = vunpack.c.h.b16 %v5446
    %v5464 = vunpack.c.l.b16 %v5447
    %v5465 = vunpack.c.h.b16 %v5447
    %v5466 = vunpack.c.l.b16 %v5448
    %v5467 = vunpack.c.h.b16 %v5448
    %v5468 = vunpack.c.l.b16 %v5449
    %v5469 = vunpack.c.h.b16 %v5449
    %v5470 = vunpack.c.l.b16 %v5450
    %v5471 = vunpack.c.h.b16 %v5450
    %v5472 = vunpack.c.l.b16 %v5451
    %v5473 = vunpack.c.h.b16 %v5451
    %v5474 = vunpack.c.l.b16 %v5452
    %v5475 = vunpack.c.h.b16 %v5452
    %v5476 = vunpack.c.l.b16 %v5453
    %v5477 = vunpack.c.h.b16 %v5453
    %v5478 = vpack.c.b16 %v5464, %v5462
    %v5479 = vpack.c.b16 %v5465, %v5463
    %v5480 = vpack.c.b16 %v5468, %v5466
    %v5481 = vpack.c.b16 %v5469, %v5467
    %v5482 = vpack.c.b16 %v5472, %v5470
    %v5483 = vpack.c.b16 %v5473, %v5471
    %v5484 = vpack.c.b16 %v5476, %v5474
    %v5485 = vpack.c.b16 %v5477, %v5475
    %v5495 = vsel %vm369, %v5445, 0
    %5497 = vmatprep.subr.bf16.mxu0 0
    %5498 = vmatpush1.bf16.msra.mxu0 0
    %5499 = vmatprep.subr.bf16.mxu0 0
    %5500 = vmatpush1.bf16.msra.mxu0 0
    %5501 = vmatprep.subr.bf16.mxu0 0
    %5502 = vmatpush1.bf16.msra.mxu0 0
    %5503 = vmatprep.subr.bf16.mxu0 0
    %5504 = vmatpush1.bf16.msra.mxu0 0
    %5505 = vmatprep.subr.bf16.mxu0 %v5485
    %5506 = vmatpush1.bf16.msra.mxu0 %v5484
    %5507 = vmatprep.subr.bf16.mxu0 %v5483
    %5508 = vmatpush1.bf16.msra.mxu0 %v5482
    %5509 = vmatprep.subr.bf16.mxu0 %v5481
    %5510 = vmatpush1.bf16.msra.mxu0 %v5480
    %5511 = vmatprep.subr.bf16.mxu0 %v5479
    %5512 = vmatpush1.bf16.msra.mxu0 %v5478
    %5513 = vmatprep.subr.bf16.mxu0 0
    %5514 = vmatpush2.bf16.msra.mxu0 0
    %5515 = vmatprep.subr.bf16.mxu0 0
    %5516 = vmatpush2.bf16.msra.mxu0 0
    %5517 = vmatprep.subr.bf16.mxu0 0
    %5518 = vmatpush2.bf16.msra.mxu0 0
    %5519 = vmatprep.subr.bf16.mxu0 0
    %5520 = vmatpush2.bf16.msra.mxu0 0
    %5521 = vmatprep.subr.bf16.mxu0 0
    %5522 = vmatpush2.bf16.msra.mxu0 0
    %5523 = vmatprep.subr.bf16.mxu0 0
    %5524 = vmatpush2.bf16.msra.mxu0 0
    %5525 = vmatprep.subr.bf16.mxu0 0
    %5526 = vmatpush2.bf16.msra.mxu0 0
    %5527 = vmatprep.subr.bf16.mxu0 0
    %5528 = vmatpush2.bf16.msra.mxu0 0
    %5529 = vmatprep.mubr.bf16.mxu0 0
    %5530 = vmatmul.mubr.bf16.gmra.mxu0 %v5495
    %v5531 = vpop.f32.mrf.mxu0
    %v5532 = vadd.f32 0.0, %v5531
    %v5533 = vpop.f32.mrf.mxu0
    %v5534 = vadd.f32 0.0, %v5533
    %v5535 = vpop.f32.mrf.mxu0
    %v5536 = vpop.f32.mrf.mxu0
    %5537 = vdwg.mxu0
    %v5538 = vadd.f32 %v5438, %v5532
    %v5539 = vadd.f32 %v5439, %v5534
    %v5540 = vrot.slane %v4039, 6
    %v5542 = vrot.slane %v4041, 5
    %v5544 = vsel %vm4066, %v5540, %v5542
    %v5545 = vpack.c.bf16 %v5544, %v5544
    %v5546 = vld [vmem:[#allocation4 + $0x380] sm:$0xff]
    %v5547 = vld [vmem:[#allocation4 + $0x388] sm:$0xff]
    %v5548 = vld [vmem:[#allocation4 + $0x390] sm:$0xff]
    %v5549 = vld [vmem:[#allocation4 + $0x398] sm:$0xff]
    %v5550 = vld [vmem:[#allocation4 + $0x3a0] sm:$0xff]
    %v5551 = vld [vmem:[#allocation4 + $0x3a8] sm:$0xff]
    %v5552 = vld [vmem:[#allocation4 + $0x3b0] sm:$0xff]
    %v5553 = vld [vmem:[#allocation4 + $0x3b8] sm:$0xff]
    %v5562 = vunpack.c.l.b16 %v5546
    %v5563 = vunpack.c.h.b16 %v5546
    %v5564 = vunpack.c.l.b16 %v5547
    %v5565 = vunpack.c.h.b16 %v5547
    %v5566 = vunpack.c.l.b16 %v5548
    %v5567 = vunpack.c.h.b16 %v5548
    %v5568 = vunpack.c.l.b16 %v5549
    %v5569 = vunpack.c.h.b16 %v5549
    %v5570 = vunpack.c.l.b16 %v5550
    %v5571 = vunpack.c.h.b16 %v5550
    %v5572 = vunpack.c.l.b16 %v5551
    %v5573 = vunpack.c.h.b16 %v5551
    %v5574 = vunpack.c.l.b16 %v5552
    %v5575 = vunpack.c.h.b16 %v5552
    %v5576 = vunpack.c.l.b16 %v5553
    %v5577 = vunpack.c.h.b16 %v5553
    %v5578 = vpack.c.b16 %v5564, %v5562
    %v5579 = vpack.c.b16 %v5565, %v5563
    %v5580 = vpack.c.b16 %v5568, %v5566
    %v5581 = vpack.c.b16 %v5569, %v5567
    %v5582 = vpack.c.b16 %v5572, %v5570
    %v5583 = vpack.c.b16 %v5573, %v5571
    %v5584 = vpack.c.b16 %v5576, %v5574
    %v5585 = vpack.c.b16 %v5577, %v5575
    %v5595 = vsel %vm369, %v5545, 0
    %5597 = vmatprep.subr.bf16.mxu0 0
    %5598 = vmatpush1.bf16.msra.mxu0 0
    %5599 = vmatprep.subr.bf16.mxu0 0
    %5600 = vmatpush1.bf16.msra.mxu0 0
    %5601 = vmatprep.subr.bf16.mxu0 0
    %5602 = vmatpush1.bf16.msra.mxu0 0
    %5603 = vmatprep.subr.bf16.mxu0 0
    %5604 = vmatpush1.bf16.msra.mxu0 0
    %5605 = vmatprep.subr.bf16.mxu0 %v5585
    %5606 = vmatpush1.bf16.msra.mxu0 %v5584
    %5607 = vmatprep.subr.bf16.mxu0 %v5583
    %5608 = vmatpush1.bf16.msra.mxu0 %v5582
    %5609 = vmatprep.subr.bf16.mxu0 %v5581
    %5610 = vmatpush1.bf16.msra.mxu0 %v5580
    %5611 = vmatprep.subr.bf16.mxu0 %v5579
    %5612 = vmatpush1.bf16.msra.mxu0 %v5578
    %5613 = vmatprep.subr.bf16.mxu0 0
    %5614 = vmatpush2.bf16.msra.mxu0 0
    %5615 = vmatprep.subr.bf16.mxu0 0
    %5616 = vmatpush2.bf16.msra.mxu0 0
    %5617 = vmatprep.subr.bf16.mxu0 0
    %5618 = vmatpush2.bf16.msra.mxu0 0
    %5619 = vmatprep.subr.bf16.mxu0 0
    %5620 = vmatpush2.bf16.msra.mxu0 0
    %5621 = vmatprep.subr.bf16.mxu0 0
    %5622 = vmatpush2.bf16.msra.mxu0 0
    %5623 = vmatprep.subr.bf16.mxu0 0
    %5624 = vmatpush2.bf16.msra.mxu0 0
    %5625 = vmatprep.subr.bf16.mxu0 0
    %5626 = vmatpush2.bf16.msra.mxu0 0
    %5627 = vmatprep.subr.bf16.mxu0 0
    %5628 = vmatpush2.bf16.msra.mxu0 0
    %5629 = vmatprep.mubr.bf16.mxu0 0
    %5630 = vmatmul.mubr.bf16.gmra.mxu0 %v5595
    %v5631 = vpop.f32.mrf.mxu0
    %v5632 = vadd.f32 0.0, %v5631
    %v5633 = vpop.f32.mrf.mxu0
    %v5634 = vadd.f32 0.0, %v5633
    %v5635 = vpop.f32.mrf.mxu0
    %v5636 = vpop.f32.mrf.mxu0
    %5637 = vdwg.mxu0
    %v5638 = vadd.f32 %v5538, %v5632
    %v5639 = vadd.f32 %v5539, %v5634
    %v5640 = vrot.slane %v4039, 7
    %v5642 = vrot.slane %v4041, 6
    %v5644 = vsel %vm4066, %v5640, %v5642
    %v5645 = vpack.c.bf16 %v5644, %v5644
    %v5646 = vld [vmem:[#allocation4 + $0x3c0] sm:$0xff]
    %v5647 = vld [vmem:[#allocation4 + $0x3c8] sm:$0xff]
    %v5648 = vld [vmem:[#allocation4 + $0x3d0] sm:$0xff]
    %v5649 = vld [vmem:[#allocation4 + $0x3d8] sm:$0xff]
    %v5650 = vld [vmem:[#allocation4 + $0x3e0] sm:$0xff]
    %v5651 = vld [vmem:[#allocation4 + $0x3e8] sm:$0xff]
    %v5652 = vld [vmem:[#allocation4 + $0x3f0] sm:$0xff]
    %v5653 = vld [vmem:[#allocation4 + $0x3f8] sm:$0xff]
    %v5662 = vunpack.c.l.b16 %v5646
    %v5663 = vunpack.c.h.b16 %v5646
    %v5664 = vunpack.c.l.b16 %v5647
    %v5665 = vunpack.c.h.b16 %v5647
    %v5666 = vunpack.c.l.b16 %v5648
    %v5667 = vunpack.c.h.b16 %v5648
    %v5668 = vunpack.c.l.b16 %v5649
    %v5669 = vunpack.c.h.b16 %v5649
    %v5670 = vunpack.c.l.b16 %v5650
    %v5671 = vunpack.c.h.b16 %v5650
    %v5672 = vunpack.c.l.b16 %v5651
    %v5673 = vunpack.c.h.b16 %v5651
    %v5674 = vunpack.c.l.b16 %v5652
    %v5675 = vunpack.c.h.b16 %v5652
    %v5676 = vunpack.c.l.b16 %v5653
    %v5677 = vunpack.c.h.b16 %v5653
    %v5678 = vpack.c.b16 %v5664, %v5662
    %v5679 = vpack.c.b16 %v5665, %v5663
    %v5680 = vpack.c.b16 %v5668, %v5666
    %v5681 = vpack.c.b16 %v5669, %v5667
    %v5682 = vpack.c.b16 %v5672, %v5670
    %v5683 = vpack.c.b16 %v5673, %v5671
    %v5684 = vpack.c.b16 %v5676, %v5674
    %v5685 = vpack.c.b16 %v5677, %v5675
    %v5695 = vsel %vm369, %v5645, 0
    %5697 = vmatprep.subr.bf16.mxu0 0
    %5698 = vmatpush1.bf16.msra.mxu0 0
    %5699 = vmatprep.subr.bf16.mxu0 0
    %5700 = vmatpush1.bf16.msra.mxu0 0
    %5701 = vmatprep.subr.bf16.mxu0 0
    %5702 = vmatpush1.bf16.msra.mxu0 0
    %5703 = vmatprep.subr.bf16.mxu0 0
    %5704 = vmatpush1.bf16.msra.mxu0 0
    %5705 = vmatprep.subr.bf16.mxu0 %v5685
    %5706 = vmatpush1.bf16.msra.mxu0 %v5684
    %5707 = vmatprep.subr.bf16.mxu0 %v5683
    %5708 = vmatpush1.bf16.msra.mxu0 %v5682
    %5709 = vmatprep.subr.bf16.mxu0 %v5681
    %5710 = vmatpush1.bf16.msra.mxu0 %v5680
    %5711 = vmatprep.subr.bf16.mxu0 %v5679
    %5712 = vmatpush1.bf16.msra.mxu0 %v5678
    %5713 = vmatprep.subr.bf16.mxu0 0
    %5714 = vmatpush2.bf16.msra.mxu0 0
    %5715 = vmatprep.subr.bf16.mxu0 0
    %5716 = vmatpush2.bf16.msra.mxu0 0
    %5717 = vmatprep.subr.bf16.mxu0 0
    %5718 = vmatpush2.bf16.msra.mxu0 0
    %5719 = vmatprep.subr.bf16.mxu0 0
    %5720 = vmatpush2.bf16.msra.mxu0 0
    %5721 = vmatprep.subr.bf16.mxu0 0
    %5722 = vmatpush2.bf16.msra.mxu0 0
    %5723 = vmatprep.subr.bf16.mxu0 0
    %5724 = vmatpush2.bf16.msra.mxu0 0
    %5725 = vmatprep.subr.bf16.mxu0 0
    %5726 = vmatpush2.bf16.msra.mxu0 0
    %5727 = vmatprep.subr.bf16.mxu0 0
    %5728 = vmatpush2.bf16.msra.mxu0 0
    %5729 = vmatprep.mubr.bf16.mxu0 0
    %5730 = vmatmul.mubr.bf16.gmra.mxu0 %v5695
    %v5731 = vpop.f32.mrf.mxu0
    %v5732 = vadd.f32 0.0, %v5731
    %v5733 = vpop.f32.mrf.mxu0
    %v5734 = vadd.f32 0.0, %v5733
    %v5735 = vpop.f32.mrf.mxu0
    %v5736 = vpop.f32.mrf.mxu0
    %5737 = vdwg.mxu0
    %v5738 = vadd.f32 %v5638, %v5732
    %v5739 = vadd.f32 %v5639, %v5734
    %v5740 = vmax.f32 %v5738, 0.0
    %v5741 = vmax.f32 %v5739, 0.0
    %v5744 = vcombine.low %v5740, %v5741
    %v5746 = vunpack.c.l.s4 1983009808
    %v5747 = vunpack.c.0.s8 %v5746
    %v5748 = vlaneseq
    %v5749 = vshrl.u32 %v5748, 7
    %v5750 = vsub.s32 %v5747, %v5749
    %v5751 = vrot.slane %v5744, %v5750
    %5753 = vst [vmem:[#allocation6] sm:$0xf] %v5751
    // Predicated region
    $region34: #{conv_encoder_forward.1} parent=1 // pred_check
      _
    $region35: #{conv_encoder_forward.1} parent=1 // pred_check_branch
      %5755 = sbr.rel (0) target = $region37
    $region36: #{conv_encoder_forward.1} parent=1 // pred_region
      %s5757 = ssub.s32 64, 64
      %5758 = vsyncadd [#allocation7], %s5757
      %s5760 = sshll.u32 [#allocation6], 4
      %s5761 = int_to_ptr.vmem [resolvable:$true] %s5760
      %5763 = dma.vmem_to_hbm [thread:$0]  %s5761, 64, %s8, [#allocation7]
    $region37: #{conv_encoder_forward.1} parent=1 // pred_fallthru
      _
    // Predicated region
    $region38: #{conv_encoder_forward.1} parent=1 // pred_check
      _
    $region39: #{conv_encoder_forward.1} parent=1 // pred_check_branch
      %5765 = sbr.rel (0) target = $region41
    $region40: #{conv_encoder_forward.1} parent=1 // pred_region
      %5766 = dma.done [#allocation7], 64
    $region41: #{conv_encoder_forward.1} parent=1 // pred_fallthru
      _
    %5767 = vsyncpa [#allocation7], 1
  %5768 = vsyncmov [#allocation5]
  %s5769 = vpop.sfrf %5768
  %p5770 = scmp.eq.s32.totalorder %s5769, 0
  %p5771 = pneg %p5770
  %5773 = shalt.err (%p5771)

</llo_original>
